<compile_context>
chip_gen: v7x
topology: tpu7x:2x2x1
jax: 0.10.0
libtpu: 0.0.40
codegen_flags: <defaults>
</compile_context>

<pallas_src>
import functools

import jax
import jax.numpy as jnp
from jax.experimental import pallas as pl
from jax.experimental.pallas import tpu as pltpu


def _hal_loss_kernel(x_ref, hal_ref, diag_ref, s_ref, part_ref, *,
                     inv_temperature, n_col_tiles, tiles_per_group, needs_guard):
    g = pl.program_id(0)            # column-tile group (megacore / parallel axis)
    j = pl.program_id(1)            # tile index inside the group (carry axis)
    t = g * tiles_per_group + j     # global column-tile index

    # Outputs double as VMEM-resident accumulators for the whole group.
    @pl.when(j == 0)
    def _init():
        s_ref[...] = jnp.zeros_like(s_ref)
        part_ref[...] = jnp.zeros_like(part_ref)

    def _tile():
        inv_t = jnp.float32(inv_temperature)
        # Fixed logsumexp reference C = max|x| / T = 1 / T (cosine-sim contract).
        c = inv_t

        ex = jnp.exp(x_ref[...].astype(jnp.float32) * inv_t - c)      # (N, TC)
        eh = jnp.exp(hal_ref[...].astype(jnp.float32) * inv_t - c)    # (neg, TC)

        n_rows, tc = ex.shape
        ones_row = jnp.ones((1, n_rows), jnp.float32)
        ones_col = jnp.ones((tc, 1), jnp.float32)

        # Column-wise sum of exp over cat([x, hal_sel], 0)/T (exact per tile:
        # the full column lives in this block).  MXU matvec + tiny VPU sum.
        col_s = (jnp.dot(ones_row, ex, preferred_element_type=jnp.float32)
                 + jnp.sum(eh, axis=0, keepdims=True))                 # (1, TC)
        lse_col = jnp.log(col_s) + c                                   # (1, TC)

        # Diagonal of x/T restricted to this tile's columns (pre-gathered).
        diag_scaled = diag_ref[...].astype(jnp.float32) * inv_t        # (1, TC)

        tile_part = jnp.sum(lse_col - 2.0 * diag_scaled, keepdims=True)  # (1, 1)
        part_ref[...] += tile_part.reshape(1, 1, 1)

        # Row-wise partial sums of exp(x/T - C), accumulated across column
        # tiles; fixed reference -> plain adds, no per-tile rescale exps.
        rowdot = jnp.dot(ex, ones_col, preferred_element_type=jnp.float32)  # (N, 1)
        s_ref[0] = s_ref[0] + rowdot

    if needs_guard:
        pl.when(t < n_col_tiles)(_tile)   # skip the padded trailing step(s)
    else:
        _tile()


def _pick_tile_cols(n, requested, itemsize, x_slab_budget_bytes=24 * 1024 * 1024):
    """Largest lane-aligned divisor of n <= requested whose double-buffered
    (n, tc) x slab stays inside the VMEM budget (v7x only has 64 MiB)."""
    if n % 128 != 0:
        # TODO(synk): pad N up to a multiple of 128 (with row/column masking)
        # instead of a single full-width block for large, unaligned N.
        return n
    cap = x_slab_budget_bytes // (2 * itemsize * n)
    cap = max(128, (cap // 128) * 128)
    target = max(128, min(requested, cap, n))
    best = 128
    for d in range(128, n + 1, 128):
        if n % d == 0 and d <= target:
            best = d
    return best


def hal_softmax_loss(x, hal_x, temperature=0.05, tile_cols=512):
    n = x.shape[0]
    assert x.shape == (n, n), "x must be a square (N, N) similarity matrix"
    assert hal_x.shape[1] == n and hal_x.shape[0] % n == 0
    neg_num = hal_x.shape[0] // n
    itemsize = jnp.dtype(x.dtype).itemsize

    # Pre-gather in plain JAX (O(neg*N) + O(N) elements):
    #   hal_sel[k, i] = hal_x[i*neg + k, i]   -> (neg, N)
    #   x_diag[0, i]  = x[i, i]               -> (1, N)
    hal_sel = jnp.diagonal(hal_x.reshape(n, neg_num, n), axis1=0, axis2=2)
    x_diag = jnp.diagonal(x)[None, :]

    tc = _pick_tile_cols(n, tile_cols, itemsize)
    nt = n // tc
    # Leading "parallel" group axis: shards across TensorCores on multi-TC
    # chips; on 1-TC v5e/v6e it only duplicates two tiny accumulators (~free).
    # TODO(synk): verify "parallel" engages both v7x TensorCores; if not,
    # switch to pltpu.CORE_PARALLEL / a core_map sized from get_tpu_info().
    groups = 2 if nt >= 2 else 1
    tpg = -(-nt // groups)                    # ceil(nt / groups)
    needs_guard = (groups * tpg != nt)        # odd tile count -> padded step

    def col_tile(g, j):
        t = g * tpg + j
        if needs_guard:
            t = jnp.minimum(t, nt - 1)        # clamp padded steps (guarded in-kernel)
        return t

    kernel = functools.partial(
        _hal_loss_kernel, inv_temperature=1.0 / temperature,
        n_col_tiles=nt, tiles_per_group=tpg, needs_guard=needs_guard)

    # VMEM: double-buffered inputs + f32 exp intermediate + outputs + slack.
    vmem_need = (2 * n * tc * itemsize + 4 * n * tc
                 + 2 * (neg_num + 1) * tc * itemsize
                 + groups * (n + 2) * 4 + (8 << 20))
    vmem_limit = int(min(max(vmem_need, 32 << 20), 48 << 20))

    row_s, part = pl.pallas_call(
        kernel,
        out_shape=(jax.ShapeDtypeStruct((groups, n, 1), jnp.float32),
                   jax.ShapeDtypeStruct((groups, 1, 1), jnp.float32)),
        grid=(groups, tpg),
        in_specs=[
            pl.BlockSpec((n, tc), lambda g, j: (0, col_tile(g, j))),         # x column slab
            pl.BlockSpec((neg_num, tc), lambda g, j: (0, col_tile(g, j))),   # hal diag slab
            pl.BlockSpec((1, tc), lambda g, j: (0, col_tile(g, j))),         # x diagonal
        ],
        out_specs=(
            pl.BlockSpec((1, n, 1), lambda g, j: (g, 0, 0)),   # per-group row exp-sums
            pl.BlockSpec((1, 1, 1), lambda g, j: (g, 0, 0)),   # per-group (col lse - 2*diag)
        ),
        compiler_params=pltpu.CompilerParams(
            dimension_semantics=("parallel", "arbitrary"),
            vmem_limit_bytes=vmem_limit),
    )(x, hal_sel, x_diag)

    # Tiny cross-group combine in plain JAX (purely additive thanks to the
    # fixed logsumexp reference C = 1/T).
    c = 1.0 / temperature
    s_tot = jnp.sum(row_s[:, :, 0], axis=0)                   # (N,)
    lse_row_sum = jnp.sum(jnp.log(s_tot)) + n * c
    return (lse_row_sum + jnp.sum(part)) / jnp.float32(n)


def _reference(x, hal_x, t=0.05):
    """Pure-JAX transcription of the PyTorch forward, for verification."""
    n = x.shape[0]
    neg_num = hal_x.shape[0] // n
    i_logsm = jax.nn.log_softmax(x / t, axis=1)
    loss_i = jnp.sum(jnp.diag(i_logsm)) / n
    rows = jnp.arange(n)[None, :] * neg_num + jnp.arange(neg_num)[:, None]  # (neg, n)
    hal_sel = hal_x[rows, jnp.arange(n)[None, :]]                           # (neg, n)
    xc = jnp.concatenate([x, hal_sel], axis=0)
    j_logsm = jax.nn.log_softmax(xc.T / t, axis=1)
    loss_hal = jnp.sum(jnp.diagonal(j_logsm)) / n
    return -loss_i - loss_hal


if __name__ == "__main__":
    key = jax.random.PRNGKey(0)

    def run_case(seed, n, neg, tile_cols=512, dtype=jnp.float32):
        k1, k2 = jax.random.split(jax.random.fold_in(key, seed))
        x = jax.random.uniform(k1, (n, n), jnp.float32, minval=-1.0, maxval=1.0)
        hal = jax.random.uniform(k2, (neg * n, n), jnp.float32, minval=-1.0, maxval=1.0)
        x = x.astype(dtype)
        hal = hal.astype(dtype)
        loss = hal_softmax_loss(x, hal, temperature=0.05, tile_cols=tile_cols)
        jax.block_until_ready(loss)
        ref = _reference(x.astype(jnp.float32), hal.astype(jnp.float32), t=0.05)
        assert jnp.allclose(loss, ref, rtol=1e-3, atol=1e-2), (
            n, neg, tile_cols, dtype, loss, ref)

    # Single wide tile (tc = N = 512): one grid step, groups = 1.
    run_case(0, 512, 10, tile_cols=512)
    # 4 column tiles of 128: 2 "parallel" groups x 2 carried tiles.
    run_case(1, 512, 10, tile_cols=128)
    # Odd tile count (3): exercises the clamped index_map + pl.when guard.
    run_case(2, 384, 10, tile_cols=128)
    # bf16 inputs at the pallas_call boundary (in-kernel f32 upcast).
    run_case(3, 512, 10, tile_cols=128, dtype=jnp.bfloat16)
    # Small unaligned N -> single full-block fallback, docstring-scale shapes.
    run_case(4, 8, 10)

    print("KERNEL_OK")
</pallas_src>

<mosaic_0001>
module attributes {stable_mosaic.version = 11 : i64} {
  func.func @_hal_loss_kernel(%arg0: i32, %arg1: i32, %arg2: memref<512x512xf32, #tpu.memory_space<vmem>>, %arg3: memref<10x512xf32, #tpu.memory_space<vmem>>, %arg4: memref<1x512xf32, #tpu.memory_space<vmem>>, %arg5: memref<1x512x1xf32, #tpu.memory_space<vmem>>, %arg6: memref<1x1x1xf32, #tpu.memory_space<vmem>>) attributes {dimension_semantics = [#tpu.dimension_semantics<parallel>, #tpu.dimension_semantics<arbitrary>], iteration_bounds = array<i64: 1, 1>, scalar_prefetch = 0 : i64, scratch_operands = 0 : i64, tpu.core_type = #tpu.core_type<tc>, window_params = [{transform_indices = @transform_0, window_bounds = array<i64: 512, 512>}, {transform_indices = @transform_1, window_bounds = array<i64: 10, 512>}, {transform_indices = @transform_2, window_bounds = array<i64: 1, 512>}, {transform_indices = @transform_3, window_bounds = array<i64: 1, 512, 1>}, {transform_indices = @transform_4, window_bounds = array<i64: 1, 1, 1>}]} {
    %c0_i32 = arith.constant 0 : i32
    %0 = arith.cmpi eq, %arg1, %c0_i32 : i32
    %1 = arith.extui %0 : i1 to i32
    %c0_i32_0 = arith.constant 0 : i32
    %2 = arith.cmpi ne, %1, %c0_i32_0 : i32
    scf.if %2 {
      %cst_30 = arith.constant 0.000000e+00 : f32
      %46 = vector.broadcast %cst_30 : f32 to vector<1x512x1xf32>
      %c0_31 = arith.constant 0 : index
      %c0_32 = arith.constant 0 : index
      %c0_33 = arith.constant 0 : index
      %47 = vector.load %arg5[%c0_31, %c0_32, %c0_33] : memref<1x512x1xf32, #tpu.memory_space<vmem>>, vector<1x512x1xf32>
      tpu.vector_store %arg5[%c0_31, %c0_32, %c0_33], %46 {strides = array<i32>} : memref<1x512x1xf32, #tpu.memory_space<vmem>>, vector<1x512x1xf32>,
      %cst_34 = arith.constant 0.000000e+00 : f32
      %48 = vector.broadcast %cst_34 : f32 to vector<1x1x1xf32>
      %c0_35 = arith.constant 0 : index
      %c0_36 = arith.constant 0 : index
      %c0_37 = arith.constant 0 : index
      %49 = vector.load %arg6[%c0_35, %c0_36, %c0_37] : memref<1x1x1xf32, #tpu.memory_space<vmem>>, vector<1x1x1xf32>
      tpu.vector_store %arg6[%c0_35, %c0_36, %c0_37], %48 {strides = array<i32>} : memref<1x1x1xf32, #tpu.memory_space<vmem>>, vector<1x1x1xf32>,
    } else {
    }
    %c0 = arith.constant 0 : index
    %c0_1 = arith.constant 0 : index
    %3 = vector.load %arg2[%c0, %c0_1] : memref<512x512xf32, #tpu.memory_space<vmem>>, vector<512x512xf32>
    %cst = arith.constant 2.000000e+01 : f32
    %4 = vector.broadcast %cst : f32 to vector<512x512xf32>
    %5 = arith.mulf %3, %4 : vector<512x512xf32>
    %cst_2 = arith.constant 2.000000e+01 : f32
    %6 = vector.broadcast %cst_2 : f32 to vector<512x512xf32>
    %7 = arith.subf %5, %6 : vector<512x512xf32>
    %8 = math.exp %7 : vector<512x512xf32>
    %c0_3 = arith.constant 0 : index
    %c0_4 = arith.constant 0 : index
    %9 = vector.load %arg3[%c0_3, %c0_4] : memref<10x512xf32, #tpu.memory_space<vmem>>, vector<10x512xf32>
    %cst_5 = arith.constant 2.000000e+01 : f32
    %10 = vector.broadcast %cst_5 : f32 to vector<10x512xf32>
    %11 = arith.mulf %9, %10 : vector<10x512xf32>
    %cst_6 = arith.constant 2.000000e+01 : f32
    %12 = vector.broadcast %cst_6 : f32 to vector<10x512xf32>
    %13 = arith.subf %11, %12 : vector<10x512xf32>
    %14 = math.exp %13 : vector<10x512xf32>
    %cst_7 = arith.constant 1.000000e+00 : f32
    %15 = vector.broadcast %cst_7 : f32 to vector<1x512xf32>
    %cst_8 = arith.constant 1.000000e+00 : f32
    %16 = vector.broadcast %cst_8 : f32 to vector<512x1xf32>
    %cst_9 = arith.constant dense<0.000000e+00> : vector<1x512xf32>
    %17 = tpu.matmul %15, %8, %cst_9 {dimension_numbers = #tpu.dot_dimension_numbers<[1], [0], [0], [1], [0, 0, 1, 1], [], []>} : vector<1x512xf32>, vector<512x512xf32>, vector<1x512xf32> -> vector<1x512xf32>
    %cst_10 = arith.constant dense<0.000000e+00> : vector<512xf32>
    %18 = vector.multi_reduction <add>, %14, %cst_10 [0] : vector<10x512xf32> to vector<512xf32>
    %19 = vector.shape_cast %18 : vector<512xf32> to vector<1x512xf32>
    %20 = arith.addf %17, %19 : vector<1x512xf32>
    %21 = math.log %20 : vector<1x512xf32>
    %cst_11 = arith.constant 2.000000e+01 : f32
    %22 = vector.broadcast %cst_11 : f32 to vector<1x512xf32>
    %23 = arith.addf %21, %22 : vector<1x512xf32>
    %c0_12 = arith.constant 0 : index
    %c0_13 = arith.constant 0 : index
    %24 = vector.load %arg4[%c0_12, %c0_13] : memref<1x512xf32, #tpu.memory_space<vmem>>, vector<1x512xf32>
    %cst_14 = arith.constant 2.000000e+01 : f32
    %25 = vector.broadcast %cst_14 : f32 to vector<1x512xf32>
    %26 = arith.mulf %24, %25 : vector<1x512xf32>
    %cst_15 = arith.constant 2.000000e+00 : f32
    %27 = vector.broadcast %cst_15 : f32 to vector<1x512xf32>
    %28 = arith.mulf %27, %26 : vector<1x512xf32>
    %29 = arith.subf %23, %28 : vector<1x512xf32>
    %30 = vector.shape_cast %29 : vector<1x512xf32> to vector<1x1x512xf32>
    %cst_16 = arith.constant dense<0.000000e+00> : vector<1xf32>
    %31 = vector.multi_reduction <add>, %30, %cst_16 [1, 2] : vector<1x1x512xf32> to vector<1xf32>
    %32 = vector.shape_cast %31 : vector<1xf32> to vector<1x1x1xf32>
    %33 = vector.extract %32[0, 0, 0] : f32 from vector<1x1x1xf32>
    %34 = vector.broadcast %33 : f32 to vector<1x1xf32>
    %c0_17 = arith.constant 0 : index
    %c0_18 = arith.constant 0 : index
    %c0_19 = arith.constant 0 : index
    %35 = vector.load %arg6[%c0_17, %c0_18, %c0_19] : memref<1x1x1xf32, #tpu.memory_space<vmem>>, vector<1x1x1xf32>
    %36 = vector.shape_cast %34 : vector<1x1xf32> to vector<1x1x1xf32>
    %37 = arith.addf %35, %36 : vector<1x1x1xf32>
    %c0_20 = arith.constant 0 : index
    %c0_21 = arith.constant 0 : index
    %c0_22 = arith.constant 0 : index
    %38 = vector.load %arg6[%c0_20, %c0_21, %c0_22] : memref<1x1x1xf32, #tpu.memory_space<vmem>>, vector<1x1x1xf32>
    tpu.vector_store %arg6[%c0_20, %c0_21, %c0_22], %37 {strides = array<i32>} : memref<1x1x1xf32, #tpu.memory_space<vmem>>, vector<1x1x1xf32>,
    %cst_23 = arith.constant dense<0.000000e+00> : vector<512x1xf32>
    %39 = tpu.matmul %8, %16, %cst_23 {dimension_numbers = #tpu.dot_dimension_numbers<[1], [0], [0], [1], [0, 0, 1, 1], [], []>} : vector<512x512xf32>, vector<512x1xf32>, vector<512x1xf32> -> vector<512x1xf32>
    %c0_24 = arith.constant 0 : index
    %c0_25 = arith.constant 0 : index
    %c0_26 = arith.constant 0 : index
    %40 = vector.load %arg5[%c0_24, %c0_25, %c0_26] : memref<1x512x1xf32, #tpu.memory_space<vmem>>, vector<1x512x1xf32>
    %41 = vector.shape_cast %40 : vector<1x512x1xf32> to vector<512x1xf32>
    %42 = arith.addf %41, %39 : vector<512x1xf32>
    %c0_27 = arith.constant 0 : index
    %c0_28 = arith.constant 0 : index
    %c0_29 = arith.constant 0 : index
    %43 = vector.load %arg5[%c0_27, %c0_28, %c0_29] : memref<1x512x1xf32, #tpu.memory_space<vmem>>, vector<1x512x1xf32>
    %44 = vector.shape_cast %43 : vector<1x512x1xf32> to vector<512x1xf32>
    %45 = vector.shape_cast %42 : vector<512x1xf32> to vector<1x512x1xf32>
    tpu.vector_store %arg5[%c0_27, %c0_28, %c0_29], %45 {strides = array<i32>} : memref<1x512x1xf32, #tpu.memory_space<vmem>>, vector<1x512x1xf32>,
    return
  }
  func.func @transform_0(%arg0: i32, %arg1: i32) -> (i32, i32) {
    %c1_i32 = arith.constant 1 : i32
    %0 = arith.muli %arg0, %c1_i32 : i32
    %1 = arith.addi %0, %arg1 : i32
    %c0_i32 = arith.constant 0 : i32
    %c0_i32_0 = arith.constant 0 : i32
    return %c0_i32, %1 : i32, i32
  }
  func.func @transform_1(%arg0: i32, %arg1: i32) -> (i32, i32) {
    %c1_i32 = arith.constant 1 : i32
    %0 = arith.muli %arg0, %c1_i32 : i32
    %1 = arith.addi %0, %arg1 : i32
    %c0_i32 = arith.constant 0 : i32
    %c0_i32_0 = arith.constant 0 : i32
    return %c0_i32, %1 : i32, i32
  }
  func.func @transform_2(%arg0: i32, %arg1: i32) -> (i32, i32) {
    %c1_i32 = arith.constant 1 : i32
    %0 = arith.muli %arg0, %c1_i32 : i32
    %1 = arith.addi %0, %arg1 : i32
    %c0_i32 = arith.constant 0 : i32
    %c0_i32_0 = arith.constant 0 : i32
    return %c0_i32, %1 : i32, i32
  }
  func.func @transform_3(%arg0: i32, %arg1: i32) -> (i32, i32, i32) {
    %c0_i32 = arith.constant 0 : i32
    %c0_i32_0 = arith.constant 0 : i32
    %c0_i32_1 = arith.constant 0 : i32
    return %arg0, %c0_i32, %c0_i32_0 : i32, i32, i32
  }
  func.func @transform_4(%arg0: i32, %arg1: i32) -> (i32, i32, i32) {
    %c0_i32 = arith.constant 0 : i32
    %c0_i32_0 = arith.constant 0 : i32
    %c0_i32_1 = arith.constant 0 : i32
    return %arg0, %c0_i32, %c0_i32_0 : i32, i32, i32
  }
}

</mosaic_0001>

<llo_original>
// kernel: tpu_custom_call.1
$region0: #{tpu_custom_call.1}
  #allocation0 [shape = 'u32[]', space=smem, size = 0x4, offset = 0x4, fixed_abs, tag = 'smem constant byte address 0x4 - core index']
  #allocation1 [shape = 'u32[144,128]{1,0:T(1,128)}', space=vmem, size = 0x12000, scoped, tag = 'internal scratch']
  %s0 = inlined_call_operand.hbm [shape: f32[512,512], index: 0, kind: input, shape index: {}]
  %s1 = inlined_call_operand.hbm [shape: f32[10,512], index: 1, kind: input, shape index: {}]
  %s2 = inlined_call_operand.vmem [shape: f32[1,512], index: 2, kind: input, shape index: {}]
  %s3 = inlined_call_operand.vmem [shape: f32[1,512,1], index: 3, kind: output, shape index: {0}]
  %s4 = inlined_call_operand.hbm [shape: f32[1,1,1], index: 4, kind: output, shape index: {1}]
  %5 = xla_tuple %s3, %s4
  %s6 = sld [smem:[#allocation0]]
  $region42: #{tpu_custom_call.1} parent=0
    _
  %s8 = ssub.s32 1, %s6
  %s9 = scalar_select 0, %s8, %s6
  $region1: #{tpu_custom_call.1} parent=0
    #allocation2 [shape = 'u8[1048576]{0}', space=vmem, size = 0x100000, scoped, tag = 'input window, operand 0, single buffered']
    #allocation3 [shape = 's32[1]{0}', space=sflag, size = 0x4, scoped, tag = 'scoped memory for tpu_custom_call.1']
    #allocation4 [shape = 's32[1]{0}', space=sflag, size = 0x4, scoped, tag = 'scoped memory for tpu_custom_call.1']
    #allocation5 [shape = 'u8[32768]{0}', space=vmem, size = 0x8000, scoped, tag = 'input window, operand 1, single buffered']
    #allocation6 [shape = 's32[1]{0}', space=sflag, size = 0x4, scoped, tag = 'scoped memory for tpu_custom_call.1']
    #allocation7 [shape = 'u8[512]{0}', space=vmem, size = 0x400, scoped, tag = 'output window, operand 1, single buffered']
    %10 = vsyncpa [#allocation3], 0
    %11 = vsyncpa [#allocation6], 0
    %12 = vsyncpa [#allocation4], 0
    // Predicated region
    $region2: #{tpu_custom_call.1} parent=1 // pred_check
      _
    $region3: #{tpu_custom_call.1} parent=1 // pred_check_branch
      %14 = sbr.rel (0) target = $region5
    $region4: #{tpu_custom_call.1} parent=1 // pred_region
      %s15 = sadd.s32 0, 0
      %s16 = smul.u32 4, %s15
      %s18 = ssub.s32 32768, 32768
      %19 = vsyncadd [#allocation3], %s18
      %s20 = smul.addr %s16, 128
      %s21 = scalar_lea.hbm %s0, %s20
      %s22 = sshll.u32 [#allocation2], 4
      %s23 = int_to_ptr.vmem [resolvable:$true] %s22
      %28 = dma.hbm_to_vmem [thread:$0]  %s21, 32768, %s23, [#allocation3], 512, 512, 32
    $region5: #{tpu_custom_call.1} parent=1 // pred_fallthru
      _
    // Predicated region
    $region6: #{tpu_custom_call.1} parent=1 // pred_check
      _
    $region7: #{tpu_custom_call.1} parent=1 // pred_check_branch
      %30 = sbr.rel (0) target = $region9
    $region8: #{tpu_custom_call.1} parent=1 // pred_region
      %s31 = sadd.s32 0, 0
      %s32 = smul.u32 4, %s31
      %s34 = ssub.s32 1024, 1024
      %35 = vsyncadd [#allocation6], %s34
      %s36 = smul.addr %s32, 128
      %s37 = scalar_lea.hbm %s1, %s36
      %s38 = sshll.u32 [#allocation5], 4
      %s39 = int_to_ptr.vmem [resolvable:$true] %s38
      %44 = dma.hbm_to_vmem [thread:$0]  %s37, 1024, %s39, [#allocation6], 512, 512, 32
    $region9: #{tpu_custom_call.1} parent=1 // pred_fallthru
      _
    // Predicated region
    $region10: #{tpu_custom_call.1} parent=1 // pred_check
      _
    $region11: #{tpu_custom_call.1} parent=1 // pred_check_branch
      %46 = sbr.rel (0) target = $region13
    $region12: #{tpu_custom_call.1} parent=1 // pred_region
      %s47 = sadd.s32 0, 0
      %s48 = smul.u32 4, %s47
      %p49 = scmp.lt.s32.totalorder %s48, 3
      %s50 = scalar_select %p49, %s48, 3
      %s51 = scalar_lea.vmem %s2, %s50
      %s52 = sadd.s32 0, 0
      %s53 = smul.u32 4, %s52
    $region13: #{tpu_custom_call.1} parent=1 // pred_fallthru
      _
    // Predicated region
    $region14: #{tpu_custom_call.1} parent=1 // pred_check
      _
    $region15: #{tpu_custom_call.1} parent=1 // pred_check_branch
      %55 = sbr.rel (0) target = $region17
    $region16: #{tpu_custom_call.1} parent=1 // pred_region
      %56 = dma.done [#allocation3], 32768
    $region17: #{tpu_custom_call.1} parent=1 // pred_fallthru
      _
    // Predicated region
    $region18: #{tpu_custom_call.1} parent=1 // pred_check
      _
    $region19: #{tpu_custom_call.1} parent=1 // pred_check_branch
      %58 = sbr.rel (0) target = $region21
    $region20: #{tpu_custom_call.1} parent=1 // pred_region
      %59 = dma.done [#allocation6], 1024
    $region21: #{tpu_custom_call.1} parent=1 // pred_fallthru
      _
    %s60 = sadd.s32 0, 0
    %s61 = smul.u32 4, %s60
    %p62 = scmp.lt.s32.totalorder %s61, 3
    %s63 = scalar_select %p62, %s61, 3
    %s64 = scalar_lea.vmem %s2, %s63
    %s65 = sadd.s32 0, 0
    %s66 = smul.u32 4, %s65
    %s67 = sadd.s32 0, 0
    %s68 = smul.u32 4, %s67
    %s69 = sadd.s32 0, 0
    %s70 = smul.u32 4, %s69
    %p71 = scmp.lt.s32.totalorder %s70, 3
    %s72 = scalar_select %p71, %s70, 3
    %s73 = scalar_lea.vmem %s2, %s72
    %s74 = sadd.s32 0, 0
    %s75 = smul.u32 4, %s74
    %p76 = scmp.eq.s32.totalorder 0, 0
    // Predicated region
    $region22: #{tpu_custom_call.1} parent=1 // pred_check
      %p77 = pneg %p76
    $region23: #{tpu_custom_call.1} parent=1 // pred_check_branch
      %79 = sbr.rel (%p77) target = $region25
    $region24: #{tpu_custom_call.1} parent=1 // pred_region
      %vm80 = vcmask 7168
      %81 = vst.msk [vmem:[%s3] sm:$0xff] %vm80, 0.0
      %82 = vst.msk [vmem:[%s3 + $0x8] sm:$0xff] %vm80, 0.0
      %83 = vst.msk [vmem:[%s3 + $0x10] sm:$0xff] %vm80, 0.0
      %84 = vst.msk [vmem:[%s3 + $0x18] sm:$0xff] %vm80, 0.0
      %85 = vst.msk [vmem:[%s3 + $0x20] sm:$0xff] %vm80, 0.0
      %86 = vst.msk [vmem:[%s3 + $0x28] sm:$0xff] %vm80, 0.0
      %87 = vst.msk [vmem:[%s3 + $0x30] sm:$0xff] %vm80, 0.0
      %88 = vst.msk [vmem:[%s3 + $0x38] sm:$0xff] %vm80, 0.0
      %89 = vst.msk [vmem:[%s3 + $0x40] sm:$0xff] %vm80, 0.0
      %90 = vst.msk [vmem:[%s3 + $0x48] sm:$0xff] %vm80, 0.0
      %91 = vst.msk [vmem:[%s3 + $0x50] sm:$0xff] %vm80, 0.0
      %92 = vst.msk [vmem:[%s3 + $0x58] sm:$0xff] %vm80, 0.0
      %93 = vst.msk [vmem:[%s3 + $0x60] sm:$0xff] %vm80, 0.0
      %94 = vst.msk [vmem:[%s3 + $0x68] sm:$0xff] %vm80, 0.0
      %95 = vst.msk [vmem:[%s3 + $0x70] sm:$0xff] %vm80, 0.0
      %96 = vst.msk [vmem:[%s3 + $0x78] sm:$0xff] %vm80, 0.0
      %97 = vst.msk [vmem:[%s3 + $0x80] sm:$0xff] %vm80, 0.0
      %98 = vst.msk [vmem:[%s3 + $0x88] sm:$0xff] %vm80, 0.0
      %99 = vst.msk [vmem:[%s3 + $0x90] sm:$0xff] %vm80, 0.0
      %100 = vst.msk [vmem:[%s3 + $0x98] sm:$0xff] %vm80, 0.0
      %101 = vst.msk [vmem:[%s3 + $0xa0] sm:$0xff] %vm80, 0.0
      %102 = vst.msk [vmem:[%s3 + $0xa8] sm:$0xff] %vm80, 0.0
      %103 = vst.msk [vmem:[%s3 + $0xb0] sm:$0xff] %vm80, 0.0
      %104 = vst.msk [vmem:[%s3 + $0xb8] sm:$0xff] %vm80, 0.0
      %105 = vst.msk [vmem:[%s3 + $0xc0] sm:$0xff] %vm80, 0.0
      %106 = vst.msk [vmem:[%s3 + $0xc8] sm:$0xff] %vm80, 0.0
      %107 = vst.msk [vmem:[%s3 + $0xd0] sm:$0xff] %vm80, 0.0
      %108 = vst.msk [vmem:[%s3 + $0xd8] sm:$0xff] %vm80, 0.0
      %109 = vst.msk [vmem:[%s3 + $0xe0] sm:$0xff] %vm80, 0.0
      %110 = vst.msk [vmem:[%s3 + $0xe8] sm:$0xff] %vm80, 0.0
      %111 = vst.msk [vmem:[%s3 + $0xf0] sm:$0xff] %vm80, 0.0
      %112 = vst.msk [vmem:[%s3 + $0xf8] sm:$0xff] %vm80, 0.0
      %113 = vst.msk [vmem:[%s3 + $0x100] sm:$0xff] %vm80, 0.0
      %114 = vst.msk [vmem:[%s3 + $0x108] sm:$0xff] %vm80, 0.0
      %115 = vst.msk [vmem:[%s3 + $0x110] sm:$0xff] %vm80, 0.0
      %116 = vst.msk [vmem:[%s3 + $0x118] sm:$0xff] %vm80, 0.0
      %117 = vst.msk [vmem:[%s3 + $0x120] sm:$0xff] %vm80, 0.0
      %118 = vst.msk [vmem:[%s3 + $0x128] sm:$0xff] %vm80, 0.0
      %119 = vst.msk [vmem:[%s3 + $0x130] sm:$0xff] %vm80, 0.0
      %120 = vst.msk [vmem:[%s3 + $0x138] sm:$0xff] %vm80, 0.0
      %121 = vst.msk [vmem:[%s3 + $0x140] sm:$0xff] %vm80, 0.0
      %122 = vst.msk [vmem:[%s3 + $0x148] sm:$0xff] %vm80, 0.0
      %123 = vst.msk [vmem:[%s3 + $0x150] sm:$0xff] %vm80, 0.0
      %124 = vst.msk [vmem:[%s3 + $0x158] sm:$0xff] %vm80, 0.0
      %125 = vst.msk [vmem:[%s3 + $0x160] sm:$0xff] %vm80, 0.0
      %126 = vst.msk [vmem:[%s3 + $0x168] sm:$0xff] %vm80, 0.0
      %127 = vst.msk [vmem:[%s3 + $0x170] sm:$0xff] %vm80, 0.0
      %128 = vst.msk [vmem:[%s3 + $0x178] sm:$0xff] %vm80, 0.0
      %129 = vst.msk [vmem:[%s3 + $0x180] sm:$0xff] %vm80, 0.0
      %130 = vst.msk [vmem:[%s3 + $0x188] sm:$0xff] %vm80, 0.0
      %131 = vst.msk [vmem:[%s3 + $0x190] sm:$0xff] %vm80, 0.0
      %132 = vst.msk [vmem:[%s3 + $0x198] sm:$0xff] %vm80, 0.0
      %133 = vst.msk [vmem:[%s3 + $0x1a0] sm:$0xff] %vm80, 0.0
      %134 = vst.msk [vmem:[%s3 + $0x1a8] sm:$0xff] %vm80, 0.0
      %135 = vst.msk [vmem:[%s3 + $0x1b0] sm:$0xff] %vm80, 0.0
      %136 = vst.msk [vmem:[%s3 + $0x1b8] sm:$0xff] %vm80, 0.0
      %137 = vst.msk [vmem:[%s3 + $0x1c0] sm:$0xff] %vm80, 0.0
      %138 = vst.msk [vmem:[%s3 + $0x1c8] sm:$0xff] %vm80, 0.0
      %139 = vst.msk [vmem:[%s3 + $0x1d0] sm:$0xff] %vm80, 0.0
      %140 = vst.msk [vmem:[%s3 + $0x1d8] sm:$0xff] %vm80, 0.0
      %141 = vst.msk [vmem:[%s3 + $0x1e0] sm:$0xff] %vm80, 0.0
      %142 = vst.msk [vmem:[%s3 + $0x1e8] sm:$0xff] %vm80, 0.0
      %143 = vst.msk [vmem:[%s3 + $0x1f0] sm:$0xff] %vm80, 0.0
      %144 = vst.msk [vmem:[%s3 + $0x1f8] sm:$0xff] %vm80, 0.0
      %vm145 = vcmask 0
      %146 = vst.msk [vmem:[#allocation7] sm:$0x1] %vm145, 0.0
    $region25: #{tpu_custom_call.1} parent=1 // pred_fallthru
      _
    %v147 = vld [vmem:[#allocation2] sm:$0xff]
    %v148 = vld [vmem:[#allocation2 + $0x8] sm:$0xff]
    %v149 = vld [vmem:[#allocation2 + $0x10] sm:$0xff]
    %v150 = vld [vmem:[#allocation2 + $0x18] sm:$0xff]
    %v151 = vld [vmem:[#allocation2 + $0x20] sm:$0xff]
    %v152 = vld [vmem:[#allocation2 + $0x28] sm:$0xff]
    %v153 = vld [vmem:[#allocation2 + $0x30] sm:$0xff]
    %v154 = vld [vmem:[#allocation2 + $0x38] sm:$0xff]
    %v155 = vld [vmem:[#allocation2 + $0x40] sm:$0xff]
    %v156 = vld [vmem:[#allocation2 + $0x48] sm:$0xff]
    %v157 = vld [vmem:[#allocation2 + $0x50] sm:$0xff]
    %v158 = vld [vmem:[#allocation2 + $0x58] sm:$0xff]
    %v159 = vld [vmem:[#allocation2 + $0x60] sm:$0xff]
    %v160 = vld [vmem:[#allocation2 + $0x68] sm:$0xff]
    %v161 = vld [vmem:[#allocation2 + $0x70] sm:$0xff]
    %v162 = vld [vmem:[#allocation2 + $0x78] sm:$0xff]
    %v163 = vld [vmem:[#allocation2 + $0x80] sm:$0xff]
    %v164 = vld [vmem:[#allocation2 + $0x88] sm:$0xff]
    %v165 = vld [vmem:[#allocation2 + $0x90] sm:$0xff]
    %v166 = vld [vmem:[#allocation2 + $0x98] sm:$0xff]
    %v167 = vld [vmem:[#allocation2 + $0xa0] sm:$0xff]
    %v168 = vld [vmem:[#allocation2 + $0xa8] sm:$0xff]
    %v169 = vld [vmem:[#allocation2 + $0xb0] sm:$0xff]
    %v170 = vld [vmem:[#allocation2 + $0xb8] sm:$0xff]
    %v171 = vld [vmem:[#allocation2 + $0xc0] sm:$0xff]
    %v172 = vld [vmem:[#allocation2 + $0xc8] sm:$0xff]
    %v173 = vld [vmem:[#allocation2 + $0xd0] sm:$0xff]
    %v174 = vld [vmem:[#allocation2 + $0xd8] sm:$0xff]
    %v175 = vld [vmem:[#allocation2 + $0xe0] sm:$0xff]
    %v176 = vld [vmem:[#allocation2 + $0xe8] sm:$0xff]
    %v177 = vld [vmem:[#allocation2 + $0xf0] sm:$0xff]
    %v178 = vld [vmem:[#allocation2 + $0xf8] sm:$0xff]
    %v179 = vld [vmem:[#allocation2 + $0x100] sm:$0xff]
    %v180 = vld [vmem:[#allocation2 + $0x108] sm:$0xff]
    %v181 = vld [vmem:[#allocation2 + $0x110] sm:$0xff]
    %v182 = vld [vmem:[#allocation2 + $0x118] sm:$0xff]
    %v183 = vld [vmem:[#allocation2 + $0x120] sm:$0xff]
    %v184 = vld [vmem:[#allocation2 + $0x128] sm:$0xff]
    %v185 = vld [vmem:[#allocation2 + $0x130] sm:$0xff]
    %v186 = vld [vmem:[#allocation2 + $0x138] sm:$0xff]
    %v187 = vld [vmem:[#allocation2 + $0x140] sm:$0xff]
    %v188 = vld [vmem:[#allocation2 + $0x148] sm:$0xff]
    %v189 = vld [vmem:[#allocation2 + $0x150] sm:$0xff]
    %v190 = vld [vmem:[#allocation2 + $0x158] sm:$0xff]
    %v191 = vld [vmem:[#allocation2 + $0x160] sm:$0xff]
    %v192 = vld [vmem:[#allocation2 + $0x168] sm:$0xff]
    %v193 = vld [vmem:[#allocation2 + $0x170] sm:$0xff]
    %v194 = vld [vmem:[#allocation2 + $0x178] sm:$0xff]
    %v195 = vld [vmem:[#allocation2 + $0x180] sm:$0xff]
    %v196 = vld [vmem:[#allocation2 + $0x188] sm:$0xff]
    %v197 = vld [vmem:[#allocation2 + $0x190] sm:$0xff]
    %v198 = vld [vmem:[#allocation2 + $0x198] sm:$0xff]
    %v199 = vld [vmem:[#allocation2 + $0x1a0] sm:$0xff]
    %v200 = vld [vmem:[#allocation2 + $0x1a8] sm:$0xff]
    %v201 = vld [vmem:[#allocation2 + $0x1b0] sm:$0xff]
    %v202 = vld [vmem:[#allocation2 + $0x1b8] sm:$0xff]
    %v203 = vld [vmem:[#allocation2 + $0x1c0] sm:$0xff]
    %v204 = vld [vmem:[#allocation2 + $0x1c8] sm:$0xff]
    %v205 = vld [vmem:[#allocation2 + $0x1d0] sm:$0xff]
    %v206 = vld [vmem:[#allocation2 + $0x1d8] sm:$0xff]
    %v207 = vld [vmem:[#allocation2 + $0x1e0] sm:$0xff]
    %v208 = vld [vmem:[#allocation2 + $0x1e8] sm:$0xff]
    %v209 = vld [vmem:[#allocation2 + $0x1f0] sm:$0xff]
    %v210 = vld [vmem:[#allocation2 + $0x1f8] sm:$0xff]
    %v211 = vld [vmem:[#allocation2 + $0x200] sm:$0xff]
    %v212 = vld [vmem:[#allocation2 + $0x208] sm:$0xff]
    %v213 = vld [vmem:[#allocation2 + $0x210] sm:$0xff]
    %v214 = vld [vmem:[#allocation2 + $0x218] sm:$0xff]
    %v215 = vld [vmem:[#allocation2 + $0x220] sm:$0xff]
    %v216 = vld [vmem:[#allocation2 + $0x228] sm:$0xff]
    %v217 = vld [vmem:[#allocation2 + $0x230] sm:$0xff]
    %v218 = vld [vmem:[#allocation2 + $0x238] sm:$0xff]
    %v219 = vld [vmem:[#allocation2 + $0x240] sm:$0xff]
    %v220 = vld [vmem:[#allocation2 + $0x248] sm:$0xff]
    %v221 = vld [vmem:[#allocation2 + $0x250] sm:$0xff]
    %v222 = vld [vmem:[#allocation2 + $0x258] sm:$0xff]
    %v223 = vld [vmem:[#allocation2 + $0x260] sm:$0xff]
    %v224 = vld [vmem:[#allocation2 + $0x268] sm:$0xff]
    %v225 = vld [vmem:[#allocation2 + $0x270] sm:$0xff]
    %v226 = vld [vmem:[#allocation2 + $0x278] sm:$0xff]
    %v227 = vld [vmem:[#allocation2 + $0x280] sm:$0xff]
    %v228 = vld [vmem:[#allocation2 + $0x288] sm:$0xff]
    %v229 = vld [vmem:[#allocation2 + $0x290] sm:$0xff]
    %v230 = vld [vmem:[#allocation2 + $0x298] sm:$0xff]
    %v231 = vld [vmem:[#allocation2 + $0x2a0] sm:$0xff]
    %v232 = vld [vmem:[#allocation2 + $0x2a8] sm:$0xff]
    %v233 = vld [vmem:[#allocation2 + $0x2b0] sm:$0xff]
    %v234 = vld [vmem:[#allocation2 + $0x2b8] sm:$0xff]
    %v235 = vld [vmem:[#allocation2 + $0x2c0] sm:$0xff]
    %v236 = vld [vmem:[#allocation2 + $0x2c8] sm:$0xff]
    %v237 = vld [vmem:[#allocation2 + $0x2d0] sm:$0xff]
    %v238 = vld [vmem:[#allocation2 + $0x2d8] sm:$0xff]
    %v239 = vld [vmem:[#allocation2 + $0x2e0] sm:$0xff]
    %v240 = vld [vmem:[#allocation2 + $0x2e8] sm:$0xff]
    %v241 = vld [vmem:[#allocation2 + $0x2f0] sm:$0xff]
    %v242 = vld [vmem:[#allocation2 + $0x2f8] sm:$0xff]
    %v243 = vld [vmem:[#allocation2 + $0x300] sm:$0xff]
    %v244 = vld [vmem:[#allocation2 + $0x308] sm:$0xff]
    %v245 = vld [vmem:[#allocation2 + $0x310] sm:$0xff]
    %v246 = vld [vmem:[#allocation2 + $0x318] sm:$0xff]
    %v247 = vld [vmem:[#allocation2 + $0x320] sm:$0xff]
    %v248 = vld [vmem:[#allocation2 + $0x328] sm:$0xff]
    %v249 = vld [vmem:[#allocation2 + $0x330] sm:$0xff]
    %v250 = vld [vmem:[#allocation2 + $0x338] sm:$0xff]
    %v251 = vld [vmem:[#allocation2 + $0x340] sm:$0xff]
    %v252 = vld [vmem:[#allocation2 + $0x348] sm:$0xff]
    %v253 = vld [vmem:[#allocation2 + $0x350] sm:$0xff]
    %v254 = vld [vmem:[#allocation2 + $0x358] sm:$0xff]
    %v255 = vld [vmem:[#allocation2 + $0x360] sm:$0xff]
    %v256 = vld [vmem:[#allocation2 + $0x368] sm:$0xff]
    %v257 = vld [vmem:[#allocation2 + $0x370] sm:$0xff]
    %v258 = vld [vmem:[#allocation2 + $0x378] sm:$0xff]
    %v259 = vld [vmem:[#allocation2 + $0x380] sm:$0xff]
    %v260 = vld [vmem:[#allocation2 + $0x388] sm:$0xff]
    %v261 = vld [vmem:[#allocation2 + $0x390] sm:$0xff]
    %v262 = vld [vmem:[#allocation2 + $0x398] sm:$0xff]
    %v263 = vld [vmem:[#allocation2 + $0x3a0] sm:$0xff]
    %v264 = vld [vmem:[#allocation2 + $0x3a8] sm:$0xff]
    %v265 = vld [vmem:[#allocation2 + $0x3b0] sm:$0xff]
    %v266 = vld [vmem:[#allocation2 + $0x3b8] sm:$0xff]
    %v267 = vld [vmem:[#allocation2 + $0x3c0] sm:$0xff]
    %v268 = vld [vmem:[#allocation2 + $0x3c8] sm:$0xff]
    %v269 = vld [vmem:[#allocation2 + $0x3d0] sm:$0xff]
    %v270 = vld [vmem:[#allocation2 + $0x3d8] sm:$0xff]
    %v271 = vld [vmem:[#allocation2 + $0x3e0] sm:$0xff]
    %v272 = vld [vmem:[#allocation2 + $0x3e8] sm:$0xff]
    %v273 = vld [vmem:[#allocation2 + $0x3f0] sm:$0xff]
    %v274 = vld [vmem:[#allocation2 + $0x3f8] sm:$0xff]
    %v275 = vld [vmem:[#allocation2 + $0x400] sm:$0xff]
    %v276 = vld [vmem:[#allocation2 + $0x408] sm:$0xff]
    %v277 = vld [vmem:[#allocation2 + $0x410] sm:$0xff]
    %v278 = vld [vmem:[#allocation2 + $0x418] sm:$0xff]
    %v279 = vld [vmem:[#allocation2 + $0x420] sm:$0xff]
    %v280 = vld [vmem:[#allocation2 + $0x428] sm:$0xff]
    %v281 = vld [vmem:[#allocation2 + $0x430] sm:$0xff]
    %v282 = vld [vmem:[#allocation2 + $0x438] sm:$0xff]
    %v283 = vld [vmem:[#allocation2 + $0x440] sm:$0xff]
    %v284 = vld [vmem:[#allocation2 + $0x448] sm:$0xff]
    %v285 = vld [vmem:[#allocation2 + $0x450] sm:$0xff]
    %v286 = vld [vmem:[#allocation2 + $0x458] sm:$0xff]
    %v287 = vld [vmem:[#allocation2 + $0x460] sm:$0xff]
    %v288 = vld [vmem:[#allocation2 + $0x468] sm:$0xff]
    %v289 = vld [vmem:[#allocation2 + $0x470] sm:$0xff]
    %v290 = vld [vmem:[#allocation2 + $0x478] sm:$0xff]
    %v291 = vld [vmem:[#allocation2 + $0x480] sm:$0xff]
    %v292 = vld [vmem:[#allocation2 + $0x488] sm:$0xff]
    %v293 = vld [vmem:[#allocation2 + $0x490] sm:$0xff]
    %v294 = vld [vmem:[#allocation2 + $0x498] sm:$0xff]
    %v295 = vld [vmem:[#allocation2 + $0x4a0] sm:$0xff]
    %v296 = vld [vmem:[#allocation2 + $0x4a8] sm:$0xff]
    %v297 = vld [vmem:[#allocation2 + $0x4b0] sm:$0xff]
    %v298 = vld [vmem:[#allocation2 + $0x4b8] sm:$0xff]
    %v299 = vld [vmem:[#allocation2 + $0x4c0] sm:$0xff]
    %v300 = vld [vmem:[#allocation2 + $0x4c8] sm:$0xff]
    %v301 = vld [vmem:[#allocation2 + $0x4d0] sm:$0xff]
    %v302 = vld [vmem:[#allocation2 + $0x4d8] sm:$0xff]
    %v303 = vld [vmem:[#allocation2 + $0x4e0] sm:$0xff]
    %v304 = vld [vmem:[#allocation2 + $0x4e8] sm:$0xff]
    %v305 = vld [vmem:[#allocation2 + $0x4f0] sm:$0xff]
    %v306 = vld [vmem:[#allocation2 + $0x4f8] sm:$0xff]
    %v307 = vld [vmem:[#allocation2 + $0x500] sm:$0xff]
    %v308 = vld [vmem:[#allocation2 + $0x508] sm:$0xff]
    %v309 = vld [vmem:[#allocation2 + $0x510] sm:$0xff]
    %v310 = vld [vmem:[#allocation2 + $0x518] sm:$0xff]
    %v311 = vld [vmem:[#allocation2 + $0x520] sm:$0xff]
    %v312 = vld [vmem:[#allocation2 + $0x528] sm:$0xff]
    %v313 = vld [vmem:[#allocation2 + $0x530] sm:$0xff]
    %v314 = vld [vmem:[#allocation2 + $0x538] sm:$0xff]
    %v315 = vld [vmem:[#allocation2 + $0x540] sm:$0xff]
    %v316 = vld [vmem:[#allocation2 + $0x548] sm:$0xff]
    %v317 = vld [vmem:[#allocation2 + $0x550] sm:$0xff]
    %v318 = vld [vmem:[#allocation2 + $0x558] sm:$0xff]
    %v319 = vld [vmem:[#allocation2 + $0x560] sm:$0xff]
    %v320 = vld [vmem:[#allocation2 + $0x568] sm:$0xff]
    %v321 = vld [vmem:[#allocation2 + $0x570] sm:$0xff]
    %v322 = vld [vmem:[#allocation2 + $0x578] sm:$0xff]
    %v323 = vld [vmem:[#allocation2 + $0x580] sm:$0xff]
    %v324 = vld [vmem:[#allocation2 + $0x588] sm:$0xff]
    %v325 = vld [vmem:[#allocation2 + $0x590] sm:$0xff]
    %v326 = vld [vmem:[#allocation2 + $0x598] sm:$0xff]
    %v327 = vld [vmem:[#allocation2 + $0x5a0] sm:$0xff]
    %v328 = vld [vmem:[#allocation2 + $0x5a8] sm:$0xff]
    %v329 = vld [vmem:[#allocation2 + $0x5b0] sm:$0xff]
    %v330 = vld [vmem:[#allocation2 + $0x5b8] sm:$0xff]
    %v331 = vld [vmem:[#allocation2 + $0x5c0] sm:$0xff]
    %v332 = vld [vmem:[#allocation2 + $0x5c8] sm:$0xff]
    %v333 = vld [vmem:[#allocation2 + $0x5d0] sm:$0xff]
    %v334 = vld [vmem:[#allocation2 + $0x5d8] sm:$0xff]
    %v335 = vld [vmem:[#allocation2 + $0x5e0] sm:$0xff]
    %v336 = vld [vmem:[#allocation2 + $0x5e8] sm:$0xff]
    %v337 = vld [vmem:[#allocation2 + $0x5f0] sm:$0xff]
    %v338 = vld [vmem:[#allocation2 + $0x5f8] sm:$0xff]
    %v339 = vld [vmem:[#allocation2 + $0x600] sm:$0xff]
    %v340 = vld [vmem:[#allocation2 + $0x608] sm:$0xff]
    %v341 = vld [vmem:[#allocation2 + $0x610] sm:$0xff]
    %v342 = vld [vmem:[#allocation2 + $0x618] sm:$0xff]
    %v343 = vld [vmem:[#allocation2 + $0x620] sm:$0xff]
    %v344 = vld [vmem:[#allocation2 + $0x628] sm:$0xff]
    %v345 = vld [vmem:[#allocation2 + $0x630] sm:$0xff]
    %v346 = vld [vmem:[#allocation2 + $0x638] sm:$0xff]
    %v347 = vld [vmem:[#allocation2 + $0x640] sm:$0xff]
    %v348 = vld [vmem:[#allocation2 + $0x648] sm:$0xff]
    %v349 = vld [vmem:[#allocation2 + $0x650] sm:$0xff]
    %v350 = vld [vmem:[#allocation2 + $0x658] sm:$0xff]
    %v351 = vld [vmem:[#allocation2 + $0x660] sm:$0xff]
    %v352 = vld [vmem:[#allocation2 + $0x668] sm:$0xff]
    %v353 = vld [vmem:[#allocation2 + $0x670] sm:$0xff]
    %v354 = vld [vmem:[#allocation2 + $0x678] sm:$0xff]
    %v355 = vld [vmem:[#allocation2 + $0x680] sm:$0xff]
    %v356 = vld [vmem:[#allocation2 + $0x688] sm:$0xff]
    %v357 = vld [vmem:[#allocation2 + $0x690] sm:$0xff]
    %v358 = vld [vmem:[#allocation2 + $0x698] sm:$0xff]
    %v359 = vld [vmem:[#allocation2 + $0x6a0] sm:$0xff]
    %v360 = vld [vmem:[#allocation2 + $0x6a8] sm:$0xff]
    %v361 = vld [vmem:[#allocation2 + $0x6b0] sm:$0xff]
    %v362 = vld [vmem:[#allocation2 + $0x6b8] sm:$0xff]
    %v363 = vld [vmem:[#allocation2 + $0x6c0] sm:$0xff]
    %v364 = vld [vmem:[#allocation2 + $0x6c8] sm:$0xff]
    %v365 = vld [vmem:[#allocation2 + $0x6d0] sm:$0xff]
    %v366 = vld [vmem:[#allocation2 + $0x6d8] sm:$0xff]
    %v367 = vld [vmem:[#allocation2 + $0x6e0] sm:$0xff]
    %v368 = vld [vmem:[#allocation2 + $0x6e8] sm:$0xff]
    %v369 = vld [vmem:[#allocation2 + $0x6f0] sm:$0xff]
    %v370 = vld [vmem:[#allocation2 + $0x6f8] sm:$0xff]
    %v371 = vld [vmem:[#allocation2 + $0x700] sm:$0xff]
    %v372 = vld [vmem:[#allocation2 + $0x708] sm:$0xff]
    %v373 = vld [vmem:[#allocation2 + $0x710] sm:$0xff]
    %v374 = vld [vmem:[#allocation2 + $0x718] sm:$0xff]
    %v375 = vld [vmem:[#allocation2 + $0x720] sm:$0xff]
    %v376 = vld [vmem:[#allocation2 + $0x728] sm:$0xff]
    %v377 = vld [vmem:[#allocation2 + $0x730] sm:$0xff]
    %v378 = vld [vmem:[#allocation2 + $0x738] sm:$0xff]
    %v379 = vld [vmem:[#allocation2 + $0x740] sm:$0xff]
    %v380 = vld [vmem:[#allocation2 + $0x748] sm:$0xff]
    %v381 = vld [vmem:[#allocation2 + $0x750] sm:$0xff]
    %v382 = vld [vmem:[#allocation2 + $0x758] sm:$0xff]
    %v383 = vld [vmem:[#allocation2 + $0x760] sm:$0xff]
    %v384 = vld [vmem:[#allocation2 + $0x768] sm:$0xff]
    %v385 = vld [vmem:[#allocation2 + $0x770] sm:$0xff]
    %v386 = vld [vmem:[#allocation2 + $0x778] sm:$0xff]
    %v387 = vld [vmem:[#allocation2 + $0x780] sm:$0xff]
    %v388 = vld [vmem:[#allocation2 + $0x788] sm:$0xff]
    %v389 = vld [vmem:[#allocation2 + $0x790] sm:$0xff]
    %v390 = vld [vmem:[#allocation2 + $0x798] sm:$0xff]
    %v391 = vld [vmem:[#allocation2 + $0x7a0] sm:$0xff]
    %v392 = vld [vmem:[#allocation2 + $0x7a8] sm:$0xff]
    %v393 = vld [vmem:[#allocation2 + $0x7b0] sm:$0xff]
    %v394 = vld [vmem:[#allocation2 + $0x7b8] sm:$0xff]
    %v395 = vld [vmem:[#allocation2 + $0x7c0] sm:$0xff]
    %v396 = vld [vmem:[#allocation2 + $0x7c8] sm:$0xff]
    %v397 = vld [vmem:[#allocation2 + $0x7d0] sm:$0xff]
    %v398 = vld [vmem:[#allocation2 + $0x7d8] sm:$0xff]
    %v399 = vld [vmem:[#allocation2 + $0x7e0] sm:$0xff]
    %v400 = vld [vmem:[#allocation2 + $0x7e8] sm:$0xff]
    %v401 = vld [vmem:[#allocation2 + $0x7f0] sm:$0xff]
    %v402 = vld [vmem:[#allocation2 + $0x7f8] sm:$0xff]
    %v403 = vmul.f32 %v147, 20.0
    %v404 = vmul.f32 %v148, 20.0
    %v405 = vmul.f32 %v149, 20.0
    %v406 = vmul.f32 %v150, 20.0
    %v407 = vmul.f32 %v151, 20.0
    %v408 = vmul.f32 %v152, 20.0
    %v409 = vmul.f32 %v153, 20.0
    %v410 = vmul.f32 %v154, 20.0
    %v411 = vmul.f32 %v155, 20.0
    %v412 = vmul.f32 %v156, 20.0
    %v413 = vmul.f32 %v157, 20.0
    %v414 = vmul.f32 %v158, 20.0
    %v415 = vmul.f32 %v159, 20.0
    %v416 = vmul.f32 %v160, 20.0
    %v417 = vmul.f32 %v161, 20.0
    %v418 = vmul.f32 %v162, 20.0
    %v419 = vmul.f32 %v163, 20.0
    %v420 = vmul.f32 %v164, 20.0
    %v421 = vmul.f32 %v165, 20.0
    %v422 = vmul.f32 %v166, 20.0
    %v423 = vmul.f32 %v167, 20.0
    %v424 = vmul.f32 %v168, 20.0
    %v425 = vmul.f32 %v169, 20.0
    %v426 = vmul.f32 %v170, 20.0
    %v427 = vmul.f32 %v171, 20.0
    %v428 = vmul.f32 %v172, 20.0
    %v429 = vmul.f32 %v173, 20.0
    %v430 = vmul.f32 %v174, 20.0
    %v431 = vmul.f32 %v175, 20.0
    %v432 = vmul.f32 %v176, 20.0
    %v433 = vmul.f32 %v177, 20.0
    %v434 = vmul.f32 %v178, 20.0
    %v435 = vmul.f32 %v179, 20.0
    %v436 = vmul.f32 %v180, 20.0
    %v437 = vmul.f32 %v181, 20.0
    %v438 = vmul.f32 %v182, 20.0
    %v439 = vmul.f32 %v183, 20.0
    %v440 = vmul.f32 %v184, 20.0
    %v441 = vmul.f32 %v185, 20.0
    %v442 = vmul.f32 %v186, 20.0
    %v443 = vmul.f32 %v187, 20.0
    %v444 = vmul.f32 %v188, 20.0
    %v445 = vmul.f32 %v189, 20.0
    %v446 = vmul.f32 %v190, 20.0
    %v447 = vmul.f32 %v191, 20.0
    %v448 = vmul.f32 %v192, 20.0
    %v449 = vmul.f32 %v193, 20.0
    %v450 = vmul.f32 %v194, 20.0
    %v451 = vmul.f32 %v195, 20.0
    %v452 = vmul.f32 %v196, 20.0
    %v453 = vmul.f32 %v197, 20.0
    %v454 = vmul.f32 %v198, 20.0
    %v455 = vmul.f32 %v199, 20.0
    %v456 = vmul.f32 %v200, 20.0
    %v457 = vmul.f32 %v201, 20.0
    %v458 = vmul.f32 %v202, 20.0
    %v459 = vmul.f32 %v203, 20.0
    %v460 = vmul.f32 %v204, 20.0
    %v461 = vmul.f32 %v205, 20.0
    %v462 = vmul.f32 %v206, 20.0
    %v463 = vmul.f32 %v207, 20.0
    %v464 = vmul.f32 %v208, 20.0
    %v465 = vmul.f32 %v209, 20.0
    %v466 = vmul.f32 %v210, 20.0
    %v467 = vmul.f32 %v211, 20.0
    %v468 = vmul.f32 %v212, 20.0
    %v469 = vmul.f32 %v213, 20.0
    %v470 = vmul.f32 %v214, 20.0
    %v471 = vmul.f32 %v215, 20.0
    %v472 = vmul.f32 %v216, 20.0
    %v473 = vmul.f32 %v217, 20.0
    %v474 = vmul.f32 %v218, 20.0
    %v475 = vmul.f32 %v219, 20.0
    %v476 = vmul.f32 %v220, 20.0
    %v477 = vmul.f32 %v221, 20.0
    %v478 = vmul.f32 %v222, 20.0
    %v479 = vmul.f32 %v223, 20.0
    %v480 = vmul.f32 %v224, 20.0
    %v481 = vmul.f32 %v225, 20.0
    %v482 = vmul.f32 %v226, 20.0
    %v483 = vmul.f32 %v227, 20.0
    %v484 = vmul.f32 %v228, 20.0
    %v485 = vmul.f32 %v229, 20.0
    %v486 = vmul.f32 %v230, 20.0
    %v487 = vmul.f32 %v231, 20.0
    %v488 = vmul.f32 %v232, 20.0
    %v489 = vmul.f32 %v233, 20.0
    %v490 = vmul.f32 %v234, 20.0
    %v491 = vmul.f32 %v235, 20.0
    %v492 = vmul.f32 %v236, 20.0
    %v493 = vmul.f32 %v237, 20.0
    %v494 = vmul.f32 %v238, 20.0
    %v495 = vmul.f32 %v239, 20.0
    %v496 = vmul.f32 %v240, 20.0
    %v497 = vmul.f32 %v241, 20.0
    %v498 = vmul.f32 %v242, 20.0
    %v499 = vmul.f32 %v243, 20.0
    %v500 = vmul.f32 %v244, 20.0
    %v501 = vmul.f32 %v245, 20.0
    %v502 = vmul.f32 %v246, 20.0
    %v503 = vmul.f32 %v247, 20.0
    %v504 = vmul.f32 %v248, 20.0
    %v505 = vmul.f32 %v249, 20.0
    %v506 = vmul.f32 %v250, 20.0
    %v507 = vmul.f32 %v251, 20.0
    %v508 = vmul.f32 %v252, 20.0
    %v509 = vmul.f32 %v253, 20.0
    %v510 = vmul.f32 %v254, 20.0
    %v511 = vmul.f32 %v255, 20.0
    %v512 = vmul.f32 %v256, 20.0
    %v513 = vmul.f32 %v257, 20.0
    %v514 = vmul.f32 %v258, 20.0
    %v515 = vmul.f32 %v259, 20.0
    %v516 = vmul.f32 %v260, 20.0
    %v517 = vmul.f32 %v261, 20.0
    %v518 = vmul.f32 %v262, 20.0
    %v519 = vmul.f32 %v263, 20.0
    %v520 = vmul.f32 %v264, 20.0
    %v521 = vmul.f32 %v265, 20.0
    %v522 = vmul.f32 %v266, 20.0
    %v523 = vmul.f32 %v267, 20.0
    %v524 = vmul.f32 %v268, 20.0
    %v525 = vmul.f32 %v269, 20.0
    %v526 = vmul.f32 %v270, 20.0
    %v527 = vmul.f32 %v271, 20.0
    %v528 = vmul.f32 %v272, 20.0
    %v529 = vmul.f32 %v273, 20.0
    %v530 = vmul.f32 %v274, 20.0
    %v531 = vmul.f32 %v275, 20.0
    %v532 = vmul.f32 %v276, 20.0
    %v533 = vmul.f32 %v277, 20.0
    %v534 = vmul.f32 %v278, 20.0
    %v535 = vmul.f32 %v279, 20.0
    %v536 = vmul.f32 %v280, 20.0
    %v537 = vmul.f32 %v281, 20.0
    %v538 = vmul.f32 %v282, 20.0
    %v539 = vmul.f32 %v283, 20.0
    %v540 = vmul.f32 %v284, 20.0
    %v541 = vmul.f32 %v285, 20.0
    %v542 = vmul.f32 %v286, 20.0
    %v543 = vmul.f32 %v287, 20.0
    %v544 = vmul.f32 %v288, 20.0
    %v545 = vmul.f32 %v289, 20.0
    %v546 = vmul.f32 %v290, 20.0
    %v547 = vmul.f32 %v291, 20.0
    %v548 = vmul.f32 %v292, 20.0
    %v549 = vmul.f32 %v293, 20.0
    %v550 = vmul.f32 %v294, 20.0
    %v551 = vmul.f32 %v295, 20.0
    %v552 = vmul.f32 %v296, 20.0
    %v553 = vmul.f32 %v297, 20.0
    %v554 = vmul.f32 %v298, 20.0
    %v555 = vmul.f32 %v299, 20.0
    %v556 = vmul.f32 %v300, 20.0
    %v557 = vmul.f32 %v301, 20.0
    %v558 = vmul.f32 %v302, 20.0
    %v559 = vmul.f32 %v303, 20.0
    %v560 = vmul.f32 %v304, 20.0
    %v561 = vmul.f32 %v305, 20.0
    %v562 = vmul.f32 %v306, 20.0
    %v563 = vmul.f32 %v307, 20.0
    %v564 = vmul.f32 %v308, 20.0
    %v565 = vmul.f32 %v309, 20.0
    %v566 = vmul.f32 %v310, 20.0
    %v567 = vmul.f32 %v311, 20.0
    %v568 = vmul.f32 %v312, 20.0
    %v569 = vmul.f32 %v313, 20.0
    %v570 = vmul.f32 %v314, 20.0
    %v571 = vmul.f32 %v315, 20.0
    %v572 = vmul.f32 %v316, 20.0
    %v573 = vmul.f32 %v317, 20.0
    %v574 = vmul.f32 %v318, 20.0
    %v575 = vmul.f32 %v319, 20.0
    %v576 = vmul.f32 %v320, 20.0
    %v577 = vmul.f32 %v321, 20.0
    %v578 = vmul.f32 %v322, 20.0
    %v579 = vmul.f32 %v323, 20.0
    %v580 = vmul.f32 %v324, 20.0
    %v581 = vmul.f32 %v325, 20.0
    %v582 = vmul.f32 %v326, 20.0
    %v583 = vmul.f32 %v327, 20.0
    %v584 = vmul.f32 %v328, 20.0
    %v585 = vmul.f32 %v329, 20.0
    %v586 = vmul.f32 %v330, 20.0
    %v587 = vmul.f32 %v331, 20.0
    %v588 = vmul.f32 %v332, 20.0
    %v589 = vmul.f32 %v333, 20.0
    %v590 = vmul.f32 %v334, 20.0
    %v591 = vmul.f32 %v335, 20.0
    %v592 = vmul.f32 %v336, 20.0
    %v593 = vmul.f32 %v337, 20.0
    %v594 = vmul.f32 %v338, 20.0
    %v595 = vmul.f32 %v339, 20.0
    %v596 = vmul.f32 %v340, 20.0
    %v597 = vmul.f32 %v341, 20.0
    %v598 = vmul.f32 %v342, 20.0
    %v599 = vmul.f32 %v343, 20.0
    %v600 = vmul.f32 %v344, 20.0
    %v601 = vmul.f32 %v345, 20.0
    %v602 = vmul.f32 %v346, 20.0
    %v603 = vmul.f32 %v347, 20.0
    %v604 = vmul.f32 %v348, 20.0
    %v605 = vmul.f32 %v349, 20.0
    %v606 = vmul.f32 %v350, 20.0
    %v607 = vmul.f32 %v351, 20.0
    %v608 = vmul.f32 %v352, 20.0
    %v609 = vmul.f32 %v353, 20.0
    %v610 = vmul.f32 %v354, 20.0
    %v611 = vmul.f32 %v355, 20.0
    %v612 = vmul.f32 %v356, 20.0
    %v613 = vmul.f32 %v357, 20.0
    %v614 = vmul.f32 %v358, 20.0
    %v615 = vmul.f32 %v359, 20.0
    %v616 = vmul.f32 %v360, 20.0
    %v617 = vmul.f32 %v361, 20.0
    %v618 = vmul.f32 %v362, 20.0
    %v619 = vmul.f32 %v363, 20.0
    %v620 = vmul.f32 %v364, 20.0
    %v621 = vmul.f32 %v365, 20.0
    %v622 = vmul.f32 %v366, 20.0
    %v623 = vmul.f32 %v367, 20.0
    %v624 = vmul.f32 %v368, 20.0
    %v625 = vmul.f32 %v369, 20.0
    %v626 = vmul.f32 %v370, 20.0
    %v627 = vmul.f32 %v371, 20.0
    %v628 = vmul.f32 %v372, 20.0
    %v629 = vmul.f32 %v373, 20.0
    %v630 = vmul.f32 %v374, 20.0
    %v631 = vmul.f32 %v375, 20.0
    %v632 = vmul.f32 %v376, 20.0
    %v633 = vmul.f32 %v377, 20.0
    %v634 = vmul.f32 %v378, 20.0
    %v635 = vmul.f32 %v379, 20.0
    %v636 = vmul.f32 %v380, 20.0
    %v637 = vmul.f32 %v381, 20.0
    %v638 = vmul.f32 %v382, 20.0
    %v639 = vmul.f32 %v383, 20.0
    %v640 = vmul.f32 %v384, 20.0
    %v641 = vmul.f32 %v385, 20.0
    %v642 = vmul.f32 %v386, 20.0
    %v643 = vmul.f32 %v387, 20.0
    %v644 = vmul.f32 %v388, 20.0
    %v645 = vmul.f32 %v389, 20.0
    %v646 = vmul.f32 %v390, 20.0
    %v647 = vmul.f32 %v391, 20.0
    %v648 = vmul.f32 %v392, 20.0
    %v649 = vmul.f32 %v393, 20.0
    %v650 = vmul.f32 %v394, 20.0
    %v651 = vmul.f32 %v395, 20.0
    %v652 = vmul.f32 %v396, 20.0
    %v653 = vmul.f32 %v397, 20.0
    %v654 = vmul.f32 %v398, 20.0
    %v655 = vmul.f32 %v399, 20.0
    %v656 = vmul.f32 %v400, 20.0
    %v657 = vmul.f32 %v401, 20.0
    %v658 = vmul.f32 %v402, 20.0
    %v659 = vsub.f32 %v403, 20.0
    %v660 = vsub.f32 %v404, 20.0
    %v661 = vsub.f32 %v405, 20.0
    %v662 = vsub.f32 %v406, 20.0
    %v663 = vsub.f32 %v407, 20.0
    %v664 = vsub.f32 %v408, 20.0
    %v665 = vsub.f32 %v409, 20.0
    %v666 = vsub.f32 %v410, 20.0
    %v667 = vsub.f32 %v411, 20.0
    %v668 = vsub.f32 %v412, 20.0
    %v669 = vsub.f32 %v413, 20.0
    %v670 = vsub.f32 %v414, 20.0
    %v671 = vsub.f32 %v415, 20.0
    %v672 = vsub.f32 %v416, 20.0
    %v673 = vsub.f32 %v417, 20.0
    %v674 = vsub.f32 %v418, 20.0
    %v675 = vsub.f32 %v419, 20.0
    %v676 = vsub.f32 %v420, 20.0
    %v677 = vsub.f32 %v421, 20.0
    %v678 = vsub.f32 %v422, 20.0
    %v679 = vsub.f32 %v423, 20.0
    %v680 = vsub.f32 %v424, 20.0
    %v681 = vsub.f32 %v425, 20.0
    %v682 = vsub.f32 %v426, 20.0
    %v683 = vsub.f32 %v427, 20.0
    %v684 = vsub.f32 %v428, 20.0
    %v685 = vsub.f32 %v429, 20.0
    %v686 = vsub.f32 %v430, 20.0
    %v687 = vsub.f32 %v431, 20.0
    %v688 = vsub.f32 %v432, 20.0
    %v689 = vsub.f32 %v433, 20.0
    %v690 = vsub.f32 %v434, 20.0
    %v691 = vsub.f32 %v435, 20.0
    %v692 = vsub.f32 %v436, 20.0
    %v693 = vsub.f32 %v437, 20.0
    %v694 = vsub.f32 %v438, 20.0
    %v695 = vsub.f32 %v439, 20.0
    %v696 = vsub.f32 %v440, 20.0
    %v697 = vsub.f32 %v441, 20.0
    %v698 = vsub.f32 %v442, 20.0
    %v699 = vsub.f32 %v443, 20.0
    %v700 = vsub.f32 %v444, 20.0
    %v701 = vsub.f32 %v445, 20.0
    %v702 = vsub.f32 %v446, 20.0
    %v703 = vsub.f32 %v447, 20.0
    %v704 = vsub.f32 %v448, 20.0
    %v705 = vsub.f32 %v449, 20.0
    %v706 = vsub.f32 %v450, 20.0
    %v707 = vsub.f32 %v451, 20.0
    %v708 = vsub.f32 %v452, 20.0
    %v709 = vsub.f32 %v453, 20.0
    %v710 = vsub.f32 %v454, 20.0
    %v711 = vsub.f32 %v455, 20.0
    %v712 = vsub.f32 %v456, 20.0
    %v713 = vsub.f32 %v457, 20.0
    %v714 = vsub.f32 %v458, 20.0
    %v715 = vsub.f32 %v459, 20.0
    %v716 = vsub.f32 %v460, 20.0
    %v717 = vsub.f32 %v461, 20.0
    %v718 = vsub.f32 %v462, 20.0
    %v719 = vsub.f32 %v463, 20.0
    %v720 = vsub.f32 %v464, 20.0
    %v721 = vsub.f32 %v465, 20.0
    %v722 = vsub.f32 %v466, 20.0
    %v723 = vsub.f32 %v467, 20.0
    %v724 = vsub.f32 %v468, 20.0
    %v725 = vsub.f32 %v469, 20.0
    %v726 = vsub.f32 %v470, 20.0
    %v727 = vsub.f32 %v471, 20.0
    %v728 = vsub.f32 %v472, 20.0
    %v729 = vsub.f32 %v473, 20.0
    %v730 = vsub.f32 %v474, 20.0
    %v731 = vsub.f32 %v475, 20.0
    %v732 = vsub.f32 %v476, 20.0
    %v733 = vsub.f32 %v477, 20.0
    %v734 = vsub.f32 %v478, 20.0
    %v735 = vsub.f32 %v479, 20.0
    %v736 = vsub.f32 %v480, 20.0
    %v737 = vsub.f32 %v481, 20.0
    %v738 = vsub.f32 %v482, 20.0
    %v739 = vsub.f32 %v483, 20.0
    %v740 = vsub.f32 %v484, 20.0
    %v741 = vsub.f32 %v485, 20.0
    %v742 = vsub.f32 %v486, 20.0
    %v743 = vsub.f32 %v487, 20.0
    %v744 = vsub.f32 %v488, 20.0
    %v745 = vsub.f32 %v489, 20.0
    %v746 = vsub.f32 %v490, 20.0
    %v747 = vsub.f32 %v491, 20.0
    %v748 = vsub.f32 %v492, 20.0
    %v749 = vsub.f32 %v493, 20.0
    %v750 = vsub.f32 %v494, 20.0
    %v751 = vsub.f32 %v495, 20.0
    %v752 = vsub.f32 %v496, 20.0
    %v753 = vsub.f32 %v497, 20.0
    %v754 = vsub.f32 %v498, 20.0
    %v755 = vsub.f32 %v499, 20.0
    %v756 = vsub.f32 %v500, 20.0
    %v757 = vsub.f32 %v501, 20.0
    %v758 = vsub.f32 %v502, 20.0
    %v759 = vsub.f32 %v503, 20.0
    %v760 = vsub.f32 %v504, 20.0
    %v761 = vsub.f32 %v505, 20.0
    %v762 = vsub.f32 %v506, 20.0
    %v763 = vsub.f32 %v507, 20.0
    %v764 = vsub.f32 %v508, 20.0
    %v765 = vsub.f32 %v509, 20.0
    %v766 = vsub.f32 %v510, 20.0
    %v767 = vsub.f32 %v511, 20.0
    %v768 = vsub.f32 %v512, 20.0
    %v769 = vsub.f32 %v513, 20.0
    %v770 = vsub.f32 %v514, 20.0
    %v771 = vsub.f32 %v515, 20.0
    %v772 = vsub.f32 %v516, 20.0
    %v773 = vsub.f32 %v517, 20.0
    %v774 = vsub.f32 %v518, 20.0
    %v775 = vsub.f32 %v519, 20.0
    %v776 = vsub.f32 %v520, 20.0
    %v777 = vsub.f32 %v521, 20.0
    %v778 = vsub.f32 %v522, 20.0
    %v779 = vsub.f32 %v523, 20.0
    %v780 = vsub.f32 %v524, 20.0
    %v781 = vsub.f32 %v525, 20.0
    %v782 = vsub.f32 %v526, 20.0
    %v783 = vsub.f32 %v527, 20.0
    %v784 = vsub.f32 %v528, 20.0
    %v785 = vsub.f32 %v529, 20.0
    %v786 = vsub.f32 %v530, 20.0
    %v787 = vsub.f32 %v531, 20.0
    %v788 = vsub.f32 %v532, 20.0
    %v789 = vsub.f32 %v533, 20.0
    %v790 = vsub.f32 %v534, 20.0
    %v791 = vsub.f32 %v535, 20.0
    %v792 = vsub.f32 %v536, 20.0
    %v793 = vsub.f32 %v537, 20.0
    %v794 = vsub.f32 %v538, 20.0
    %v795 = vsub.f32 %v539, 20.0
    %v796 = vsub.f32 %v540, 20.0
    %v797 = vsub.f32 %v541, 20.0
    %v798 = vsub.f32 %v542, 20.0
    %v799 = vsub.f32 %v543, 20.0
    %v800 = vsub.f32 %v544, 20.0
    %v801 = vsub.f32 %v545, 20.0
    %v802 = vsub.f32 %v546, 20.0
    %v803 = vsub.f32 %v547, 20.0
    %v804 = vsub.f32 %v548, 20.0
    %v805 = vsub.f32 %v549, 20.0
    %v806 = vsub.f32 %v550, 20.0
    %v807 = vsub.f32 %v551, 20.0
    %v808 = vsub.f32 %v552, 20.0
    %v809 = vsub.f32 %v553, 20.0
    %v810 = vsub.f32 %v554, 20.0
    %v811 = vsub.f32 %v555, 20.0
    %v812 = vsub.f32 %v556, 20.0
    %v813 = vsub.f32 %v557, 20.0
    %v814 = vsub.f32 %v558, 20.0
    %v815 = vsub.f32 %v559, 20.0
    %v816 = vsub.f32 %v560, 20.0
    %v817 = vsub.f32 %v561, 20.0
    %v818 = vsub.f32 %v562, 20.0
    %v819 = vsub.f32 %v563, 20.0
    %v820 = vsub.f32 %v564, 20.0
    %v821 = vsub.f32 %v565, 20.0
    %v822 = vsub.f32 %v566, 20.0
    %v823 = vsub.f32 %v567, 20.0
    %v824 = vsub.f32 %v568, 20.0
    %v825 = vsub.f32 %v569, 20.0
    %v826 = vsub.f32 %v570, 20.0
    %v827 = vsub.f32 %v571, 20.0
    %v828 = vsub.f32 %v572, 20.0
    %v829 = vsub.f32 %v573, 20.0
    %v830 = vsub.f32 %v574, 20.0
    %v831 = vsub.f32 %v575, 20.0
    %v832 = vsub.f32 %v576, 20.0
    %v833 = vsub.f32 %v577, 20.0
    %v834 = vsub.f32 %v578, 20.0
    %v835 = vsub.f32 %v579, 20.0
    %v836 = vsub.f32 %v580, 20.0
    %v837 = vsub.f32 %v581, 20.0
    %v838 = vsub.f32 %v582, 20.0
    %v839 = vsub.f32 %v583, 20.0
    %v840 = vsub.f32 %v584, 20.0
    %v841 = vsub.f32 %v585, 20.0
    %v842 = vsub.f32 %v586, 20.0
    %v843 = vsub.f32 %v587, 20.0
    %v844 = vsub.f32 %v588, 20.0
    %v845 = vsub.f32 %v589, 20.0
    %v846 = vsub.f32 %v590, 20.0
    %v847 = vsub.f32 %v591, 20.0
    %v848 = vsub.f32 %v592, 20.0
    %v849 = vsub.f32 %v593, 20.0
    %v850 = vsub.f32 %v594, 20.0
    %v851 = vsub.f32 %v595, 20.0
    %v852 = vsub.f32 %v596, 20.0
    %v853 = vsub.f32 %v597, 20.0
    %v854 = vsub.f32 %v598, 20.0
    %v855 = vsub.f32 %v599, 20.0
    %v856 = vsub.f32 %v600, 20.0
    %v857 = vsub.f32 %v601, 20.0
    %v858 = vsub.f32 %v602, 20.0
    %v859 = vsub.f32 %v603, 20.0
    %v860 = vsub.f32 %v604, 20.0
    %v861 = vsub.f32 %v605, 20.0
    %v862 = vsub.f32 %v606, 20.0
    %v863 = vsub.f32 %v607, 20.0
    %v864 = vsub.f32 %v608, 20.0
    %v865 = vsub.f32 %v609, 20.0
    %v866 = vsub.f32 %v610, 20.0
    %v867 = vsub.f32 %v611, 20.0
    %v868 = vsub.f32 %v612, 20.0
    %v869 = vsub.f32 %v613, 20.0
    %v870 = vsub.f32 %v614, 20.0
    %v871 = vsub.f32 %v615, 20.0
    %v872 = vsub.f32 %v616, 20.0
    %v873 = vsub.f32 %v617, 20.0
    %v874 = vsub.f32 %v618, 20.0
    %v875 = vsub.f32 %v619, 20.0
    %v876 = vsub.f32 %v620, 20.0
    %v877 = vsub.f32 %v621, 20.0
    %v878 = vsub.f32 %v622, 20.0
    %v879 = vsub.f32 %v623, 20.0
    %v880 = vsub.f32 %v624, 20.0
    %v881 = vsub.f32 %v625, 20.0
    %v882 = vsub.f32 %v626, 20.0
    %v883 = vsub.f32 %v627, 20.0
    %v884 = vsub.f32 %v628, 20.0
    %v885 = vsub.f32 %v629, 20.0
    %v886 = vsub.f32 %v630, 20.0
    %v887 = vsub.f32 %v631, 20.0
    %v888 = vsub.f32 %v632, 20.0
    %v889 = vsub.f32 %v633, 20.0
    %v890 = vsub.f32 %v634, 20.0
    %v891 = vsub.f32 %v635, 20.0
    %v892 = vsub.f32 %v636, 20.0
    %v893 = vsub.f32 %v637, 20.0
    %v894 = vsub.f32 %v638, 20.0
    %v895 = vsub.f32 %v639, 20.0
    %v896 = vsub.f32 %v640, 20.0
    %v897 = vsub.f32 %v641, 20.0
    %v898 = vsub.f32 %v642, 20.0
    %v899 = vsub.f32 %v643, 20.0
    %v900 = vsub.f32 %v644, 20.0
    %v901 = vsub.f32 %v645, 20.0
    %v902 = vsub.f32 %v646, 20.0
    %v903 = vsub.f32 %v647, 20.0
    %v904 = vsub.f32 %v648, 20.0
    %v905 = vsub.f32 %v649, 20.0
    %v906 = vsub.f32 %v650, 20.0
    %v907 = vsub.f32 %v651, 20.0
    %v908 = vsub.f32 %v652, 20.0
    %v909 = vsub.f32 %v653, 20.0
    %v910 = vsub.f32 %v654, 20.0
    %v911 = vsub.f32 %v655, 20.0
    %v912 = vsub.f32 %v656, 20.0
    %v913 = vsub.f32 %v657, 20.0
    %v914 = vsub.f32 %v658, 20.0
    %v915 = vmul.f32 %v659, 1.442695
    %v916 = vpow.pop %v915
    %v917 = vmul.f32 %v660, 1.442695
    %v918 = vpow.pop %v917
    %v919 = vmul.f32 %v661, 1.442695
    %v920 = vpow.pop %v919
    %v921 = vmul.f32 %v662, 1.442695
    %v922 = vpow.pop %v921
    %v923 = vmul.f32 %v663, 1.442695
    %v924 = vpow.pop %v923
    %v925 = vmul.f32 %v664, 1.442695
    %v926 = vpow.pop %v925
    %v927 = vmul.f32 %v665, 1.442695
    %v928 = vpow.pop %v927
    %v929 = vmul.f32 %v666, 1.442695
    %v930 = vpow.pop %v929
    %v931 = vmul.f32 %v667, 1.442695
    %v932 = vpow.pop %v931
    %v933 = vmul.f32 %v668, 1.442695
    %v934 = vpow.pop %v933
    %v935 = vmul.f32 %v669, 1.442695
    %v936 = vpow.pop %v935
    %v937 = vmul.f32 %v670, 1.442695
    %v938 = vpow.pop %v937
    %v939 = vmul.f32 %v671, 1.442695
    %v940 = vpow.pop %v939
    %v941 = vmul.f32 %v672, 1.442695
    %v942 = vpow.pop %v941
    %v943 = vmul.f32 %v673, 1.442695
    %v944 = vpow.pop %v943
    %v945 = vmul.f32 %v674, 1.442695
    %v946 = vpow.pop %v945
    %v947 = vmul.f32 %v675, 1.442695
    %v948 = vpow.pop %v947
    %v949 = vmul.f32 %v676, 1.442695
    %v950 = vpow.pop %v949
    %v951 = vmul.f32 %v677, 1.442695
    %v952 = vpow.pop %v951
    %v953 = vmul.f32 %v678, 1.442695
    %v954 = vpow.pop %v953
    %v955 = vmul.f32 %v679, 1.442695
    %v956 = vpow.pop %v955
    %v957 = vmul.f32 %v680, 1.442695
    %v958 = vpow.pop %v957
    %v959 = vmul.f32 %v681, 1.442695
    %v960 = vpow.pop %v959
    %v961 = vmul.f32 %v682, 1.442695
    %v962 = vpow.pop %v961
    %v963 = vmul.f32 %v683, 1.442695
    %v964 = vpow.pop %v963
    %v965 = vmul.f32 %v684, 1.442695
    %v966 = vpow.pop %v965
    %v967 = vmul.f32 %v685, 1.442695
    %v968 = vpow.pop %v967
    %v969 = vmul.f32 %v686, 1.442695
    %v970 = vpow.pop %v969
    %v971 = vmul.f32 %v687, 1.442695
    %v972 = vpow.pop %v971
    %v973 = vmul.f32 %v688, 1.442695
    %v974 = vpow.pop %v973
    %v975 = vmul.f32 %v689, 1.442695
    %v976 = vpow.pop %v975
    %v977 = vmul.f32 %v690, 1.442695
    %v978 = vpow.pop %v977
    %v979 = vmul.f32 %v691, 1.442695
    %v980 = vpow.pop %v979
    %v981 = vmul.f32 %v692, 1.442695
    %v982 = vpow.pop %v981
    %v983 = vmul.f32 %v693, 1.442695
    %v984 = vpow.pop %v983
    %v985 = vmul.f32 %v694, 1.442695
    %v986 = vpow.pop %v985
    %v987 = vmul.f32 %v695, 1.442695
    %v988 = vpow.pop %v987
    %v989 = vmul.f32 %v696, 1.442695
    %v990 = vpow.pop %v989
    %v991 = vmul.f32 %v697, 1.442695
    %v992 = vpow.pop %v991
    %v993 = vmul.f32 %v698, 1.442695
    %v994 = vpow.pop %v993
    %v995 = vmul.f32 %v699, 1.442695
    %v996 = vpow.pop %v995
    %v997 = vmul.f32 %v700, 1.442695
    %v998 = vpow.pop %v997
    %v999 = vmul.f32 %v701, 1.442695
    %v1000 = vpow.pop %v999
    %v1001 = vmul.f32 %v702, 1.442695
    %v1002 = vpow.pop %v1001
    %v1003 = vmul.f32 %v703, 1.442695
    %v1004 = vpow.pop %v1003
    %v1005 = vmul.f32 %v704, 1.442695
    %v1006 = vpow.pop %v1005
    %v1007 = vmul.f32 %v705, 1.442695
    %v1008 = vpow.pop %v1007
    %v1009 = vmul.f32 %v706, 1.442695
    %v1010 = vpow.pop %v1009
    %v1011 = vmul.f32 %v707, 1.442695
    %v1012 = vpow.pop %v1011
    %v1013 = vmul.f32 %v708, 1.442695
    %v1014 = vpow.pop %v1013
    %v1015 = vmul.f32 %v709, 1.442695
    %v1016 = vpow.pop %v1015
    %v1017 = vmul.f32 %v710, 1.442695
    %v1018 = vpow.pop %v1017
    %v1019 = vmul.f32 %v711, 1.442695
    %v1020 = vpow.pop %v1019
    %v1021 = vmul.f32 %v712, 1.442695
    %v1022 = vpow.pop %v1021
    %v1023 = vmul.f32 %v713, 1.442695
    %v1024 = vpow.pop %v1023
    %v1025 = vmul.f32 %v714, 1.442695
    %v1026 = vpow.pop %v1025
    %v1027 = vmul.f32 %v715, 1.442695
    %v1028 = vpow.pop %v1027
    %v1029 = vmul.f32 %v716, 1.442695
    %v1030 = vpow.pop %v1029
    %v1031 = vmul.f32 %v717, 1.442695
    %v1032 = vpow.pop %v1031
    %v1033 = vmul.f32 %v718, 1.442695
    %v1034 = vpow.pop %v1033
    %v1035 = vmul.f32 %v719, 1.442695
    %v1036 = vpow.pop %v1035
    %v1037 = vmul.f32 %v720, 1.442695
    %v1038 = vpow.pop %v1037
    %v1039 = vmul.f32 %v721, 1.442695
    %v1040 = vpow.pop %v1039
    %v1041 = vmul.f32 %v722, 1.442695
    %v1042 = vpow.pop %v1041
    %v1043 = vmul.f32 %v723, 1.442695
    %v1044 = vpow.pop %v1043
    %v1045 = vmul.f32 %v724, 1.442695
    %v1046 = vpow.pop %v1045
    %v1047 = vmul.f32 %v725, 1.442695
    %v1048 = vpow.pop %v1047
    %v1049 = vmul.f32 %v726, 1.442695
    %v1050 = vpow.pop %v1049
    %v1051 = vmul.f32 %v727, 1.442695
    %v1052 = vpow.pop %v1051
    %v1053 = vmul.f32 %v728, 1.442695
    %v1054 = vpow.pop %v1053
    %v1055 = vmul.f32 %v729, 1.442695
    %v1056 = vpow.pop %v1055
    %v1057 = vmul.f32 %v730, 1.442695
    %v1058 = vpow.pop %v1057
    %v1059 = vmul.f32 %v731, 1.442695
    %v1060 = vpow.pop %v1059
    %v1061 = vmul.f32 %v732, 1.442695
    %v1062 = vpow.pop %v1061
    %v1063 = vmul.f32 %v733, 1.442695
    %v1064 = vpow.pop %v1063
    %v1065 = vmul.f32 %v734, 1.442695
    %v1066 = vpow.pop %v1065
    %v1067 = vmul.f32 %v735, 1.442695
    %v1068 = vpow.pop %v1067
    %v1069 = vmul.f32 %v736, 1.442695
    %v1070 = vpow.pop %v1069
    %v1071 = vmul.f32 %v737, 1.442695
    %v1072 = vpow.pop %v1071
    %v1073 = vmul.f32 %v738, 1.442695
    %v1074 = vpow.pop %v1073
    %v1075 = vmul.f32 %v739, 1.442695
    %v1076 = vpow.pop %v1075
    %v1077 = vmul.f32 %v740, 1.442695
    %v1078 = vpow.pop %v1077
    %v1079 = vmul.f32 %v741, 1.442695
    %v1080 = vpow.pop %v1079
    %v1081 = vmul.f32 %v742, 1.442695
    %v1082 = vpow.pop %v1081
    %v1083 = vmul.f32 %v743, 1.442695
    %v1084 = vpow.pop %v1083
    %v1085 = vmul.f32 %v744, 1.442695
    %v1086 = vpow.pop %v1085
    %v1087 = vmul.f32 %v745, 1.442695
    %v1088 = vpow.pop %v1087
    %v1089 = vmul.f32 %v746, 1.442695
    %v1090 = vpow.pop %v1089
    %v1091 = vmul.f32 %v747, 1.442695
    %v1092 = vpow.pop %v1091
    %v1093 = vmul.f32 %v748, 1.442695
    %v1094 = vpow.pop %v1093
    %v1095 = vmul.f32 %v749, 1.442695
    %v1096 = vpow.pop %v1095
    %v1097 = vmul.f32 %v750, 1.442695
    %v1098 = vpow.pop %v1097
    %v1099 = vmul.f32 %v751, 1.442695
    %v1100 = vpow.pop %v1099
    %v1101 = vmul.f32 %v752, 1.442695
    %v1102 = vpow.pop %v1101
    %v1103 = vmul.f32 %v753, 1.442695
    %v1104 = vpow.pop %v1103
    %v1105 = vmul.f32 %v754, 1.442695
    %v1106 = vpow.pop %v1105
    %v1107 = vmul.f32 %v755, 1.442695
    %v1108 = vpow.pop %v1107
    %v1109 = vmul.f32 %v756, 1.442695
    %v1110 = vpow.pop %v1109
    %v1111 = vmul.f32 %v757, 1.442695
    %v1112 = vpow.pop %v1111
    %v1113 = vmul.f32 %v758, 1.442695
    %v1114 = vpow.pop %v1113
    %v1115 = vmul.f32 %v759, 1.442695
    %v1116 = vpow.pop %v1115
    %v1117 = vmul.f32 %v760, 1.442695
    %v1118 = vpow.pop %v1117
    %v1119 = vmul.f32 %v761, 1.442695
    %v1120 = vpow.pop %v1119
    %v1121 = vmul.f32 %v762, 1.442695
    %v1122 = vpow.pop %v1121
    %v1123 = vmul.f32 %v763, 1.442695
    %v1124 = vpow.pop %v1123
    %v1125 = vmul.f32 %v764, 1.442695
    %v1126 = vpow.pop %v1125
    %v1127 = vmul.f32 %v765, 1.442695
    %v1128 = vpow.pop %v1127
    %v1129 = vmul.f32 %v766, 1.442695
    %v1130 = vpow.pop %v1129
    %v1131 = vmul.f32 %v767, 1.442695
    %v1132 = vpow.pop %v1131
    %v1133 = vmul.f32 %v768, 1.442695
    %v1134 = vpow.pop %v1133
    %v1135 = vmul.f32 %v769, 1.442695
    %v1136 = vpow.pop %v1135
    %v1137 = vmul.f32 %v770, 1.442695
    %v1138 = vpow.pop %v1137
    %v1139 = vmul.f32 %v771, 1.442695
    %v1140 = vpow.pop %v1139
    %v1141 = vmul.f32 %v772, 1.442695
    %v1142 = vpow.pop %v1141
    %v1143 = vmul.f32 %v773, 1.442695
    %v1144 = vpow.pop %v1143
    %v1145 = vmul.f32 %v774, 1.442695
    %v1146 = vpow.pop %v1145
    %v1147 = vmul.f32 %v775, 1.442695
    %v1148 = vpow.pop %v1147
    %v1149 = vmul.f32 %v776, 1.442695
    %v1150 = vpow.pop %v1149
    %v1151 = vmul.f32 %v777, 1.442695
    %v1152 = vpow.pop %v1151
    %v1153 = vmul.f32 %v778, 1.442695
    %v1154 = vpow.pop %v1153
    %v1155 = vmul.f32 %v779, 1.442695
    %v1156 = vpow.pop %v1155
    %v1157 = vmul.f32 %v780, 1.442695
    %v1158 = vpow.pop %v1157
    %v1159 = vmul.f32 %v781, 1.442695
    %v1160 = vpow.pop %v1159
    %v1161 = vmul.f32 %v782, 1.442695
    %v1162 = vpow.pop %v1161
    %v1163 = vmul.f32 %v783, 1.442695
    %v1164 = vpow.pop %v1163
    %v1165 = vmul.f32 %v784, 1.442695
    %v1166 = vpow.pop %v1165
    %v1167 = vmul.f32 %v785, 1.442695
    %v1168 = vpow.pop %v1167
    %v1169 = vmul.f32 %v786, 1.442695
    %v1170 = vpow.pop %v1169
    %v1171 = vmul.f32 %v787, 1.442695
    %v1172 = vpow.pop %v1171
    %v1173 = vmul.f32 %v788, 1.442695
    %v1174 = vpow.pop %v1173
    %v1175 = vmul.f32 %v789, 1.442695
    %v1176 = vpow.pop %v1175
    %v1177 = vmul.f32 %v790, 1.442695
    %v1178 = vpow.pop %v1177
    %v1179 = vmul.f32 %v791, 1.442695
    %v1180 = vpow.pop %v1179
    %v1181 = vmul.f32 %v792, 1.442695
    %v1182 = vpow.pop %v1181
    %v1183 = vmul.f32 %v793, 1.442695
    %v1184 = vpow.pop %v1183
    %v1185 = vmul.f32 %v794, 1.442695
    %v1186 = vpow.pop %v1185
    %v1187 = vmul.f32 %v795, 1.442695
    %v1188 = vpow.pop %v1187
    %v1189 = vmul.f32 %v796, 1.442695
    %v1190 = vpow.pop %v1189
    %v1191 = vmul.f32 %v797, 1.442695
    %v1192 = vpow.pop %v1191
    %v1193 = vmul.f32 %v798, 1.442695
    %v1194 = vpow.pop %v1193
    %v1195 = vmul.f32 %v799, 1.442695
    %v1196 = vpow.pop %v1195
    %v1197 = vmul.f32 %v800, 1.442695
    %v1198 = vpow.pop %v1197
    %v1199 = vmul.f32 %v801, 1.442695
    %v1200 = vpow.pop %v1199
    %v1201 = vmul.f32 %v802, 1.442695
    %v1202 = vpow.pop %v1201
    %v1203 = vmul.f32 %v803, 1.442695
    %v1204 = vpow.pop %v1203
    %v1205 = vmul.f32 %v804, 1.442695
    %v1206 = vpow.pop %v1205
    %v1207 = vmul.f32 %v805, 1.442695
    %v1208 = vpow.pop %v1207
    %v1209 = vmul.f32 %v806, 1.442695
    %v1210 = vpow.pop %v1209
    %v1211 = vmul.f32 %v807, 1.442695
    %v1212 = vpow.pop %v1211
    %v1213 = vmul.f32 %v808, 1.442695
    %v1214 = vpow.pop %v1213
    %v1215 = vmul.f32 %v809, 1.442695
    %v1216 = vpow.pop %v1215
    %v1217 = vmul.f32 %v810, 1.442695
    %v1218 = vpow.pop %v1217
    %v1219 = vmul.f32 %v811, 1.442695
    %v1220 = vpow.pop %v1219
    %v1221 = vmul.f32 %v812, 1.442695
    %v1222 = vpow.pop %v1221
    %v1223 = vmul.f32 %v813, 1.442695
    %v1224 = vpow.pop %v1223
    %v1225 = vmul.f32 %v814, 1.442695
    %v1226 = vpow.pop %v1225
    %v1227 = vmul.f32 %v815, 1.442695
    %v1228 = vpow.pop %v1227
    %v1229 = vmul.f32 %v816, 1.442695
    %v1230 = vpow.pop %v1229
    %v1231 = vmul.f32 %v817, 1.442695
    %v1232 = vpow.pop %v1231
    %v1233 = vmul.f32 %v818, 1.442695
    %v1234 = vpow.pop %v1233
    %v1235 = vmul.f32 %v819, 1.442695
    %v1236 = vpow.pop %v1235
    %v1237 = vmul.f32 %v820, 1.442695
    %v1238 = vpow.pop %v1237
    %v1239 = vmul.f32 %v821, 1.442695
    %v1240 = vpow.pop %v1239
    %v1241 = vmul.f32 %v822, 1.442695
    %v1242 = vpow.pop %v1241
    %v1243 = vmul.f32 %v823, 1.442695
    %v1244 = vpow.pop %v1243
    %v1245 = vmul.f32 %v824, 1.442695
    %v1246 = vpow.pop %v1245
    %v1247 = vmul.f32 %v825, 1.442695
    %v1248 = vpow.pop %v1247
    %v1249 = vmul.f32 %v826, 1.442695
    %v1250 = vpow.pop %v1249
    %v1251 = vmul.f32 %v827, 1.442695
    %v1252 = vpow.pop %v1251
    %v1253 = vmul.f32 %v828, 1.442695
    %v1254 = vpow.pop %v1253
    %v1255 = vmul.f32 %v829, 1.442695
    %v1256 = vpow.pop %v1255
    %v1257 = vmul.f32 %v830, 1.442695
    %v1258 = vpow.pop %v1257
    %v1259 = vmul.f32 %v831, 1.442695
    %v1260 = vpow.pop %v1259
    %v1261 = vmul.f32 %v832, 1.442695
    %v1262 = vpow.pop %v1261
    %v1263 = vmul.f32 %v833, 1.442695
    %v1264 = vpow.pop %v1263
    %v1265 = vmul.f32 %v834, 1.442695
    %v1266 = vpow.pop %v1265
    %v1267 = vmul.f32 %v835, 1.442695
    %v1268 = vpow.pop %v1267
    %v1269 = vmul.f32 %v836, 1.442695
    %v1270 = vpow.pop %v1269
    %v1271 = vmul.f32 %v837, 1.442695
    %v1272 = vpow.pop %v1271
    %v1273 = vmul.f32 %v838, 1.442695
    %v1274 = vpow.pop %v1273
    %v1275 = vmul.f32 %v839, 1.442695
    %v1276 = vpow.pop %v1275
    %v1277 = vmul.f32 %v840, 1.442695
    %v1278 = vpow.pop %v1277
    %v1279 = vmul.f32 %v841, 1.442695
    %v1280 = vpow.pop %v1279
    %v1281 = vmul.f32 %v842, 1.442695
    %v1282 = vpow.pop %v1281
    %v1283 = vmul.f32 %v843, 1.442695
    %v1284 = vpow.pop %v1283
    %v1285 = vmul.f32 %v844, 1.442695
    %v1286 = vpow.pop %v1285
    %v1287 = vmul.f32 %v845, 1.442695
    %v1288 = vpow.pop %v1287
    %v1289 = vmul.f32 %v846, 1.442695
    %v1290 = vpow.pop %v1289
    %v1291 = vmul.f32 %v847, 1.442695
    %v1292 = vpow.pop %v1291
    %v1293 = vmul.f32 %v848, 1.442695
    %v1294 = vpow.pop %v1293
    %v1295 = vmul.f32 %v849, 1.442695
    %v1296 = vpow.pop %v1295
    %v1297 = vmul.f32 %v850, 1.442695
    %v1298 = vpow.pop %v1297
    %v1299 = vmul.f32 %v851, 1.442695
    %v1300 = vpow.pop %v1299
    %v1301 = vmul.f32 %v852, 1.442695
    %v1302 = vpow.pop %v1301
    %v1303 = vmul.f32 %v853, 1.442695
    %v1304 = vpow.pop %v1303
    %v1305 = vmul.f32 %v854, 1.442695
    %v1306 = vpow.pop %v1305
    %v1307 = vmul.f32 %v855, 1.442695
    %v1308 = vpow.pop %v1307
    %v1309 = vmul.f32 %v856, 1.442695
    %v1310 = vpow.pop %v1309
    %v1311 = vmul.f32 %v857, 1.442695
    %v1312 = vpow.pop %v1311
    %v1313 = vmul.f32 %v858, 1.442695
    %v1314 = vpow.pop %v1313
    %v1315 = vmul.f32 %v859, 1.442695
    %v1316 = vpow.pop %v1315
    %v1317 = vmul.f32 %v860, 1.442695
    %v1318 = vpow.pop %v1317
    %v1319 = vmul.f32 %v861, 1.442695
    %v1320 = vpow.pop %v1319
    %v1321 = vmul.f32 %v862, 1.442695
    %v1322 = vpow.pop %v1321
    %v1323 = vmul.f32 %v863, 1.442695
    %v1324 = vpow.pop %v1323
    %v1325 = vmul.f32 %v864, 1.442695
    %v1326 = vpow.pop %v1325
    %v1327 = vmul.f32 %v865, 1.442695
    %v1328 = vpow.pop %v1327
    %v1329 = vmul.f32 %v866, 1.442695
    %v1330 = vpow.pop %v1329
    %v1331 = vmul.f32 %v867, 1.442695
    %v1332 = vpow.pop %v1331
    %v1333 = vmul.f32 %v868, 1.442695
    %v1334 = vpow.pop %v1333
    %v1335 = vmul.f32 %v869, 1.442695
    %v1336 = vpow.pop %v1335
    %v1337 = vmul.f32 %v870, 1.442695
    %v1338 = vpow.pop %v1337
    %v1339 = vmul.f32 %v871, 1.442695
    %v1340 = vpow.pop %v1339
    %v1341 = vmul.f32 %v872, 1.442695
    %v1342 = vpow.pop %v1341
    %v1343 = vmul.f32 %v873, 1.442695
    %v1344 = vpow.pop %v1343
    %v1345 = vmul.f32 %v874, 1.442695
    %v1346 = vpow.pop %v1345
    %v1347 = vmul.f32 %v875, 1.442695
    %v1348 = vpow.pop %v1347
    %v1349 = vmul.f32 %v876, 1.442695
    %v1350 = vpow.pop %v1349
    %v1351 = vmul.f32 %v877, 1.442695
    %v1352 = vpow.pop %v1351
    %v1353 = vmul.f32 %v878, 1.442695
    %v1354 = vpow.pop %v1353
    %v1355 = vmul.f32 %v879, 1.442695
    %v1356 = vpow.pop %v1355
    %v1357 = vmul.f32 %v880, 1.442695
    %v1358 = vpow.pop %v1357
    %v1359 = vmul.f32 %v881, 1.442695
    %v1360 = vpow.pop %v1359
    %v1361 = vmul.f32 %v882, 1.442695
    %v1362 = vpow.pop %v1361
    %v1363 = vmul.f32 %v883, 1.442695
    %v1364 = vpow.pop %v1363
    %v1365 = vmul.f32 %v884, 1.442695
    %v1366 = vpow.pop %v1365
    %v1367 = vmul.f32 %v885, 1.442695
    %v1368 = vpow.pop %v1367
    %v1369 = vmul.f32 %v886, 1.442695
    %v1370 = vpow.pop %v1369
    %v1371 = vmul.f32 %v887, 1.442695
    %v1372 = vpow.pop %v1371
    %v1373 = vmul.f32 %v888, 1.442695
    %v1374 = vpow.pop %v1373
    %v1375 = vmul.f32 %v889, 1.442695
    %v1376 = vpow.pop %v1375
    %v1377 = vmul.f32 %v890, 1.442695
    %v1378 = vpow.pop %v1377
    %v1379 = vmul.f32 %v891, 1.442695
    %v1380 = vpow.pop %v1379
    %v1381 = vmul.f32 %v892, 1.442695
    %v1382 = vpow.pop %v1381
    %v1383 = vmul.f32 %v893, 1.442695
    %v1384 = vpow.pop %v1383
    %v1385 = vmul.f32 %v894, 1.442695
    %v1386 = vpow.pop %v1385
    %v1387 = vmul.f32 %v895, 1.442695
    %v1388 = vpow.pop %v1387
    %v1389 = vmul.f32 %v896, 1.442695
    %v1390 = vpow.pop %v1389
    %v1391 = vmul.f32 %v897, 1.442695
    %v1392 = vpow.pop %v1391
    %v1393 = vmul.f32 %v898, 1.442695
    %v1394 = vpow.pop %v1393
    %v1395 = vmul.f32 %v899, 1.442695
    %v1396 = vpow.pop %v1395
    %v1397 = vmul.f32 %v900, 1.442695
    %v1398 = vpow.pop %v1397
    %v1399 = vmul.f32 %v901, 1.442695
    %v1400 = vpow.pop %v1399
    %v1401 = vmul.f32 %v902, 1.442695
    %v1402 = vpow.pop %v1401
    %v1403 = vmul.f32 %v903, 1.442695
    %v1404 = vpow.pop %v1403
    %v1405 = vmul.f32 %v904, 1.442695
    %v1406 = vpow.pop %v1405
    %v1407 = vmul.f32 %v905, 1.442695
    %v1408 = vpow.pop %v1407
    %v1409 = vmul.f32 %v906, 1.442695
    %v1410 = vpow.pop %v1409
    %v1411 = vmul.f32 %v907, 1.442695
    %v1412 = vpow.pop %v1411
    %v1413 = vmul.f32 %v908, 1.442695
    %v1414 = vpow.pop %v1413
    %v1415 = vmul.f32 %v909, 1.442695
    %v1416 = vpow.pop %v1415
    %v1417 = vmul.f32 %v910, 1.442695
    %v1418 = vpow.pop %v1417
    %v1419 = vmul.f32 %v911, 1.442695
    %v1420 = vpow.pop %v1419
    %v1421 = vmul.f32 %v912, 1.442695
    %v1422 = vpow.pop %v1421
    %v1423 = vmul.f32 %v913, 1.442695
    %v1424 = vpow.pop %v1423
    %v1425 = vmul.f32 %v914, 1.442695
    %v1426 = vpow.pop %v1425
    %v1427 = vld [vmem:[#allocation5] sm:$0xff]
    %v1428 = vld [vmem:[#allocation5 + $0x8] sm:$0xff]
    %v1429 = vld [vmem:[#allocation5 + $0x10] sm:$0xff]
    %v1430 = vld [vmem:[#allocation5 + $0x18] sm:$0xff]
    %v1431 = vld [vmem:[#allocation5 + $0x20] sm:$0x3]
    %v1432 = vld [vmem:[#allocation5 + $0x28] sm:$0x3]
    %v1433 = vld [vmem:[#allocation5 + $0x30] sm:$0x3]
    %v1434 = vld [vmem:[#allocation5 + $0x38] sm:$0x3]
    %v1435 = vmul.f32 %v1427, 20.0
    %v1436 = vmul.f32 %v1428, 20.0
    %v1437 = vmul.f32 %v1429, 20.0
    %v1438 = vmul.f32 %v1430, 20.0
    %v1439 = vmul.f32 %v1431, 20.0
    %v1440 = vmul.f32 %v1432, 20.0
    %v1441 = vmul.f32 %v1433, 20.0
    %v1442 = vmul.f32 %v1434, 20.0
    %v1443 = vsub.f32 %v1435, 20.0
    %v1444 = vsub.f32 %v1436, 20.0
    %v1445 = vsub.f32 %v1437, 20.0
    %v1446 = vsub.f32 %v1438, 20.0
    %v1447 = vsub.f32 %v1439, 20.0
    %v1448 = vsub.f32 %v1440, 20.0
    %v1449 = vsub.f32 %v1441, 20.0
    %v1450 = vsub.f32 %v1442, 20.0
    %v1451 = vmul.f32 %v1443, 1.442695
    %v1452 = vpow.pop %v1451
    %v1453 = vmul.f32 %v1444, 1.442695
    %v1454 = vpow.pop %v1453
    %v1455 = vmul.f32 %v1445, 1.442695
    %v1456 = vpow.pop %v1455
    %v1457 = vmul.f32 %v1446, 1.442695
    %v1458 = vpow.pop %v1457
    %v1459 = vmul.f32 %v1447, 1.442695
    %v1460 = vpow.pop %v1459
    %v1461 = vmul.f32 %v1448, 1.442695
    %v1462 = vpow.pop %v1461
    %v1463 = vmul.f32 %v1449, 1.442695
    %v1464 = vpow.pop %v1463
    %v1465 = vmul.f32 %v1450, 1.442695
    %v1466 = vpow.pop %v1465
    %vm1467 = vcmask 1041408
    %v1468 = vsel %vm1467, %v1460, 0.0
    %v1469 = vadd.f32 %v1452, %v1468
    %v1470 = vrot.slane %v1469, 4
    %v1471 = vadd.f32 %v1469, %v1470
    %v1472 = vrot.slane %v1471, 2
    %v1473 = vadd.f32 %v1471, %v1472
    %v1474 = vrot.slane %v1473, 1
    %v1475 = vadd.f32 %v1473, %v1474
    %v1476 = vsel %vm1467, %v1462, 0.0
    %v1477 = vadd.f32 %v1454, %v1476
    %v1478 = vrot.slane %v1477, 4
    %v1479 = vadd.f32 %v1477, %v1478
    %v1480 = vrot.slane %v1479, 2
    %v1481 = vadd.f32 %v1479, %v1480
    %v1482 = vrot.slane %v1481, 1
    %v1483 = vadd.f32 %v1481, %v1482
    %v1484 = vsel %vm1467, %v1464, 0.0
    %v1485 = vadd.f32 %v1456, %v1484
    %v1486 = vrot.slane %v1485, 4
    %v1487 = vadd.f32 %v1485, %v1486
    %v1488 = vrot.slane %v1487, 2
    %v1489 = vadd.f32 %v1487, %v1488
    %v1490 = vrot.slane %v1489, 1
    %v1491 = vadd.f32 %v1489, %v1490
    %v1492 = vsel %vm1467, %v1466, 0.0
    %v1493 = vadd.f32 %v1458, %v1492
    %v1494 = vrot.slane %v1493, 4
    %v1495 = vadd.f32 %v1493, %v1494
    %v1496 = vrot.slane %v1495, 2
    %v1497 = vadd.f32 %v1495, %v1496
    %v1498 = vrot.slane %v1497, 1
    %v1499 = vadd.f32 %v1497, %v1498
    %1500 = vmatprep.subr.mxu0 %v918
    %1501 = vmatpush1.msra.mxu0 %v916
    %1502 = vmatprep.subr.mxu0 %v926
    %1503 = vmatpush1.msra.mxu0 %v924
    %1504 = vmatprep.subr.mxu0 %v934
    %1505 = vmatpush1.msra.mxu0 %v932
    %1506 = vmatprep.subr.mxu0 %v942
    %1507 = vmatpush1.msra.mxu0 %v940
    %1508 = vmatprep.subr.mxu0 %v950
    %1509 = vmatpush1.msra.mxu0 %v948
    %1510 = vmatprep.subr.mxu0 %v958
    %1511 = vmatpush1.msra.mxu0 %v956
    %1512 = vmatprep.subr.mxu0 %v966
    %1513 = vmatpush1.msra.mxu0 %v964
    %1514 = vmatprep.subr.mxu0 %v974
    %1515 = vmatpush1.msra.mxu0 %v972
    %1516 = vmatprep.subr.mxu0 %v982
    %1517 = vmatpush1.msra.mxu0 %v980
    %1518 = vmatprep.subr.mxu0 %v990
    %1519 = vmatpush1.msra.mxu0 %v988
    %1520 = vmatprep.subr.mxu0 %v998
    %1521 = vmatpush1.msra.mxu0 %v996
    %1522 = vmatprep.subr.mxu0 %v1006
    %1523 = vmatpush1.msra.mxu0 %v1004
    %1524 = vmatprep.subr.mxu0 %v1014
    %1525 = vmatpush1.msra.mxu0 %v1012
    %1526 = vmatprep.subr.mxu0 %v1022
    %1527 = vmatpush1.msra.mxu0 %v1020
    %1528 = vmatprep.subr.mxu0 %v1030
    %1529 = vmatpush1.msra.mxu0 %v1028
    %1530 = vmatprep.subr.mxu0 %v1038
    %1531 = vmatpush1.msra.mxu0 %v1036
    %1532 = vmatprep.subr.mxu0 %v1046
    %1533 = vmatpush1.msra.mxu0 %v1044
    %1534 = vmatprep.subr.mxu0 %v1054
    %1535 = vmatpush1.msra.mxu0 %v1052
    %1536 = vmatprep.subr.mxu0 %v1062
    %1537 = vmatpush1.msra.mxu0 %v1060
    %1538 = vmatprep.subr.mxu0 %v1070
    %1539 = vmatpush1.msra.mxu0 %v1068
    %1540 = vmatprep.subr.mxu0 %v1078
    %1541 = vmatpush1.msra.mxu0 %v1076
    %1542 = vmatprep.subr.mxu0 %v1086
    %1543 = vmatpush1.msra.mxu0 %v1084
    %1544 = vmatprep.subr.mxu0 %v1094
    %1545 = vmatpush1.msra.mxu0 %v1092
    %1546 = vmatprep.subr.mxu0 %v1102
    %1547 = vmatpush1.msra.mxu0 %v1100
    %1548 = vmatprep.subr.mxu0 %v1110
    %1549 = vmatpush1.msra.mxu0 %v1108
    %1550 = vmatprep.subr.mxu0 %v1118
    %1551 = vmatpush1.msra.mxu0 %v1116
    %1552 = vmatprep.subr.mxu0 %v1126
    %1553 = vmatpush1.msra.mxu0 %v1124
    %1554 = vmatprep.subr.mxu0 %v1134
    %1555 = vmatpush1.msra.mxu0 %v1132
    %1556 = vmatprep.subr.mxu0 %v1142
    %1557 = vmatpush1.msra.mxu0 %v1140
    %1558 = vmatprep.subr.mxu0 %v1150
    %1559 = vmatpush1.msra.mxu0 %v1148
    %1560 = vmatprep.subr.mxu0 %v1158
    %1561 = vmatpush1.msra.mxu0 %v1156
    %1562 = vmatprep.subr.mxu0 %v1166
    %1563 = vmatpush1.msra.mxu0 %v1164
    %1564 = vmatprep.mubr.f32.mxu0 1.0
    %1565 = vmatmul.mubr.f32.gmra.mrb[0].mxu0 1.0
    %v1566 = vpop.f32.mrb[0].mxu0
    %v1567 = vadd.f32 %v1475, %v1566
    %v1568 = vpop.f32.mrb[0].mxu0
    %v1569 = vadd.f32 %v1483, %v1568
    %1570 = vdwg.mxu0
    %1571 = vmatprep.subr.mxu0 %v1174
    %1572 = vmatpush1.msra.mxu0 %v1172
    %1573 = vmatprep.subr.mxu0 %v1182
    %1574 = vmatpush1.msra.mxu0 %v1180
    %1575 = vmatprep.subr.mxu0 %v1190
    %1576 = vmatpush1.msra.mxu0 %v1188
    %1577 = vmatprep.subr.mxu0 %v1198
    %1578 = vmatpush1.msra.mxu0 %v1196
    %1579 = vmatprep.subr.mxu0 %v1206
    %1580 = vmatpush1.msra.mxu0 %v1204
    %1581 = vmatprep.subr.mxu0 %v1214
    %1582 = vmatpush1.msra.mxu0 %v1212
    %1583 = vmatprep.subr.mxu0 %v1222
    %1584 = vmatpush1.msra.mxu0 %v1220
    %1585 = vmatprep.subr.mxu0 %v1230
    %1586 = vmatpush1.msra.mxu0 %v1228
    %1587 = vmatprep.subr.mxu0 %v1238
    %1588 = vmatpush1.msra.mxu0 %v1236
    %1589 = vmatprep.subr.mxu0 %v1246
    %1590 = vmatpush1.msra.mxu0 %v1244
    %1591 = vmatprep.subr.mxu0 %v1254
    %1592 = vmatpush1.msra.mxu0 %v1252
    %1593 = vmatprep.subr.mxu0 %v1262
    %1594 = vmatpush1.msra.mxu0 %v1260
    %1595 = vmatprep.subr.mxu0 %v1270
    %1596 = vmatpush1.msra.mxu0 %v1268
    %1597 = vmatprep.subr.mxu0 %v1278
    %1598 = vmatpush1.msra.mxu0 %v1276
    %1599 = vmatprep.subr.mxu0 %v1286
    %1600 = vmatpush1.msra.mxu0 %v1284
    %1601 = vmatprep.subr.mxu0 %v1294
    %1602 = vmatpush1.msra.mxu0 %v1292
    %1603 = vmatprep.subr.mxu0 %v1302
    %1604 = vmatpush1.msra.mxu0 %v1300
    %1605 = vmatprep.subr.mxu0 %v1310
    %1606 = vmatpush1.msra.mxu0 %v1308
    %1607 = vmatprep.subr.mxu0 %v1318
    %1608 = vmatpush1.msra.mxu0 %v1316
    %1609 = vmatprep.subr.mxu0 %v1326
    %1610 = vmatpush1.msra.mxu0 %v1324
    %1611 = vmatprep.subr.mxu0 %v1334
    %1612 = vmatpush1.msra.mxu0 %v1332
    %1613 = vmatprep.subr.mxu0 %v1342
    %1614 = vmatpush1.msra.mxu0 %v1340
    %1615 = vmatprep.subr.mxu0 %v1350
    %1616 = vmatpush1.msra.mxu0 %v1348
    %1617 = vmatprep.subr.mxu0 %v1358
    %1618 = vmatpush1.msra.mxu0 %v1356
    %1619 = vmatprep.subr.mxu0 %v1366
    %1620 = vmatpush1.msra.mxu0 %v1364
    %1621 = vmatprep.subr.mxu0 %v1374
    %1622 = vmatpush1.msra.mxu0 %v1372
    %1623 = vmatprep.subr.mxu0 %v1382
    %1624 = vmatpush1.msra.mxu0 %v1380
    %1625 = vmatprep.subr.mxu0 %v1390
    %1626 = vmatpush1.msra.mxu0 %v1388
    %1627 = vmatprep.subr.mxu0 %v1398
    %1628 = vmatpush1.msra.mxu0 %v1396
    %1629 = vmatprep.subr.mxu0 %v1406
    %1630 = vmatpush1.msra.mxu0 %v1404
    %1631 = vmatprep.subr.mxu0 %v1414
    %1632 = vmatpush1.msra.mxu0 %v1412
    %1633 = vmatprep.subr.mxu0 %v1422
    %1634 = vmatpush1.msra.mxu0 %v1420
    %1635 = vmatprep.mubr.f32.mxu0 1.0
    %1636 = vmatmul.mubr.f32.gmra.mrb[0].mxu0 1.0
    %v1637 = vpop.f32.mrb[0].mxu0
    %v1638 = vadd.f32 %v1567, %v1637
    %v1639 = vpop.f32.mrb[0].mxu0
    %v1640 = vadd.f32 %v1569, %v1639
    %1641 = vdwg.mxu0
    %1642 = vmatprep.subr.mxu0 %v922
    %1643 = vmatpush1.msra.mxu0 %v920
    %1644 = vmatprep.subr.mxu0 %v930
    %1645 = vmatpush1.msra.mxu0 %v928
    %1646 = vmatprep.subr.mxu0 %v938
    %1647 = vmatpush1.msra.mxu0 %v936
    %1648 = vmatprep.subr.mxu0 %v946
    %1649 = vmatpush1.msra.mxu0 %v944
    %1650 = vmatprep.subr.mxu0 %v954
    %1651 = vmatpush1.msra.mxu0 %v952
    %1652 = vmatprep.subr.mxu0 %v962
    %1653 = vmatpush1.msra.mxu0 %v960
    %1654 = vmatprep.subr.mxu0 %v970
    %1655 = vmatpush1.msra.mxu0 %v968
    %1656 = vmatprep.subr.mxu0 %v978
    %1657 = vmatpush1.msra.mxu0 %v976
    %1658 = vmatprep.subr.mxu0 %v986
    %1659 = vmatpush1.msra.mxu0 %v984
    %1660 = vmatprep.subr.mxu0 %v994
    %1661 = vmatpush1.msra.mxu0 %v992
    %1662 = vmatprep.subr.mxu0 %v1002
    %1663 = vmatpush1.msra.mxu0 %v1000
    %1664 = vmatprep.subr.mxu0 %v1010
    %1665 = vmatpush1.msra.mxu0 %v1008
    %1666 = vmatprep.subr.mxu0 %v1018
    %1667 = vmatpush1.msra.mxu0 %v1016
    %1668 = vmatprep.subr.mxu0 %v1026
    %1669 = vmatpush1.msra.mxu0 %v1024
    %1670 = vmatprep.subr.mxu0 %v1034
    %1671 = vmatpush1.msra.mxu0 %v1032
    %1672 = vmatprep.subr.mxu0 %v1042
    %1673 = vmatpush1.msra.mxu0 %v1040
    %1674 = vmatprep.subr.mxu0 %v1050
    %1675 = vmatpush1.msra.mxu0 %v1048
    %1676 = vmatprep.subr.mxu0 %v1058
    %1677 = vmatpush1.msra.mxu0 %v1056
    %1678 = vmatprep.subr.mxu0 %v1066
    %1679 = vmatpush1.msra.mxu0 %v1064
    %1680 = vmatprep.subr.mxu0 %v1074
    %1681 = vmatpush1.msra.mxu0 %v1072
    %1682 = vmatprep.subr.mxu0 %v1082
    %1683 = vmatpush1.msra.mxu0 %v1080
    %1684 = vmatprep.subr.mxu0 %v1090
    %1685 = vmatpush1.msra.mxu0 %v1088
    %1686 = vmatprep.subr.mxu0 %v1098
    %1687 = vmatpush1.msra.mxu0 %v1096
    %1688 = vmatprep.subr.mxu0 %v1106
    %1689 = vmatpush1.msra.mxu0 %v1104
    %1690 = vmatprep.subr.mxu0 %v1114
    %1691 = vmatpush1.msra.mxu0 %v1112
    %1692 = vmatprep.subr.mxu0 %v1122
    %1693 = vmatpush1.msra.mxu0 %v1120
    %1694 = vmatprep.subr.mxu0 %v1130
    %1695 = vmatpush1.msra.mxu0 %v1128
    %1696 = vmatprep.subr.mxu0 %v1138
    %1697 = vmatpush1.msra.mxu0 %v1136
    %1698 = vmatprep.subr.mxu0 %v1146
    %1699 = vmatpush1.msra.mxu0 %v1144
    %1700 = vmatprep.subr.mxu0 %v1154
    %1701 = vmatpush1.msra.mxu0 %v1152
    %1702 = vmatprep.subr.mxu0 %v1162
    %1703 = vmatpush1.msra.mxu0 %v1160
    %1704 = vmatprep.subr.mxu0 %v1170
    %1705 = vmatpush1.msra.mxu0 %v1168
    %1706 = vmatprep.mubr.f32.mxu0 1.0
    %1707 = vmatmul.mubr.f32.gmra.mrb[0].mxu0 1.0
    %v1708 = vpop.f32.mrb[0].mxu0
    %v1709 = vadd.f32 %v1491, %v1708
    %v1710 = vpop.f32.mrb[0].mxu0
    %v1711 = vadd.f32 %v1499, %v1710
    %1712 = vdwg.mxu0
    %1713 = vmatprep.subr.mxu0 %v1178
    %1714 = vmatpush1.msra.mxu0 %v1176
    %1715 = vmatprep.subr.mxu0 %v1186
    %1716 = vmatpush1.msra.mxu0 %v1184
    %1717 = vmatprep.subr.mxu0 %v1194
    %1718 = vmatpush1.msra.mxu0 %v1192
    %1719 = vmatprep.subr.mxu0 %v1202
    %1720 = vmatpush1.msra.mxu0 %v1200
    %1721 = vmatprep.subr.mxu0 %v1210
    %1722 = vmatpush1.msra.mxu0 %v1208
    %1723 = vmatprep.subr.mxu0 %v1218
    %1724 = vmatpush1.msra.mxu0 %v1216
    %1725 = vmatprep.subr.mxu0 %v1226
    %1726 = vmatpush1.msra.mxu0 %v1224
    %1727 = vmatprep.subr.mxu0 %v1234
    %1728 = vmatpush1.msra.mxu0 %v1232
    %1729 = vmatprep.subr.mxu0 %v1242
    %1730 = vmatpush1.msra.mxu0 %v1240
    %1731 = vmatprep.subr.mxu0 %v1250
    %1732 = vmatpush1.msra.mxu0 %v1248
    %1733 = vmatprep.subr.mxu0 %v1258
    %1734 = vmatpush1.msra.mxu0 %v1256
    %1735 = vmatprep.subr.mxu0 %v1266
    %1736 = vmatpush1.msra.mxu0 %v1264
    %1737 = vmatprep.subr.mxu0 %v1274
    %1738 = vmatpush1.msra.mxu0 %v1272
    %1739 = vmatprep.subr.mxu0 %v1282
    %1740 = vmatpush1.msra.mxu0 %v1280
    %1741 = vmatprep.subr.mxu0 %v1290
    %1742 = vmatpush1.msra.mxu0 %v1288
    %1743 = vmatprep.subr.mxu0 %v1298
    %1744 = vmatpush1.msra.mxu0 %v1296
    %1745 = vmatprep.subr.mxu0 %v1306
    %1746 = vmatpush1.msra.mxu0 %v1304
    %1747 = vmatprep.subr.mxu0 %v1314
    %1748 = vmatpush1.msra.mxu0 %v1312
    %1749 = vmatprep.subr.mxu0 %v1322
    %1750 = vmatpush1.msra.mxu0 %v1320
    %1751 = vmatprep.subr.mxu0 %v1330
    %1752 = vmatpush1.msra.mxu0 %v1328
    %1753 = vmatprep.subr.mxu0 %v1338
    %1754 = vmatpush1.msra.mxu0 %v1336
    %1755 = vmatprep.subr.mxu0 %v1346
    %1756 = vmatpush1.msra.mxu0 %v1344
    %1757 = vmatprep.subr.mxu0 %v1354
    %1758 = vmatpush1.msra.mxu0 %v1352
    %1759 = vmatprep.subr.mxu0 %v1362
    %1760 = vmatpush1.msra.mxu0 %v1360
    %1761 = vmatprep.subr.mxu0 %v1370
    %1762 = vmatpush1.msra.mxu0 %v1368
    %1763 = vmatprep.subr.mxu0 %v1378
    %1764 = vmatpush1.msra.mxu0 %v1376
    %1765 = vmatprep.subr.mxu0 %v1386
    %1766 = vmatpush1.msra.mxu0 %v1384
    %1767 = vmatprep.subr.mxu0 %v1394
    %1768 = vmatpush1.msra.mxu0 %v1392
    %1769 = vmatprep.subr.mxu0 %v1402
    %1770 = vmatpush1.msra.mxu0 %v1400
    %1771 = vmatprep.subr.mxu0 %v1410
    %1772 = vmatpush1.msra.mxu0 %v1408
    %1773 = vmatprep.subr.mxu0 %v1418
    %1774 = vmatpush1.msra.mxu0 %v1416
    %1775 = vmatprep.subr.mxu0 %v1426
    %1776 = vmatpush1.msra.mxu0 %v1424
    %1777 = vmatprep.mubr.f32.mxu0 1.0
    %1778 = vmatmul.mubr.f32.gmra.mrb[0].mxu0 1.0
    %v1779 = vpop.f32.mrb[0].mxu0
    %v1780 = vadd.f32 %v1709, %v1779
    %v1781 = vpop.f32.mrb[0].mxu0
    %v1782 = vadd.f32 %v1711, %v1781
    %1783 = vdwg.mxu0
    %v1784 = vlog2.pop %v1638
    %v1785 = vmul.f32 %v1784, 0.6931472
    %v1786 = vlog2.pop %v1640
    %v1787 = vmul.f32 %v1786, 0.6931472
    %v1788 = vlog2.pop %v1780
    %v1789 = vmul.f32 %v1788, 0.6931472
    %v1790 = vlog2.pop %v1782
    %v1791 = vmul.f32 %v1790, 0.6931472
    %v1792 = vadd.f32 %v1785, 20.0
    %v1793 = vadd.f32 %v1787, 20.0
    %v1794 = vadd.f32 %v1789, 20.0
    %v1795 = vadd.f32 %v1791, 20.0
    %v1796 = vld [vmem:[%s73] sm:$0xf]
    %v1797 = vmul.f32 %v1796, 20.0
    %v1798 = vmul.f32 %v1797, 2.0
    %v1800 = vlaneseq
    %v1801 = vshrl.u32 %v1800, 7
    %v1802 = vsub.s32 0, %v1801
    %v1803 = vrot.slane %v1798, %v1802
    %v1804 = vlaneseq
    %v1805 = vshrl.u32 %v1804, 7
    %v1806 = vsub.s32 1, %v1805
    %v1807 = vrot.slane %v1798, %v1806
    %v1808 = vlaneseq
    %v1809 = vshrl.u32 %v1808, 7
    %v1810 = vsub.s32 2, %v1809
    %v1811 = vrot.slane %v1798, %v1810
    %v1812 = vlaneseq
    %v1813 = vshrl.u32 %v1812, 7
    %v1814 = vsub.s32 3, %v1813
    %v1815 = vrot.slane %v1798, %v1814
    %v1820 = vsub.f32 %v1792, %v1803
    %v1821 = vsub.f32 %v1793, %v1807
    %v1822 = vsub.f32 %v1794, %v1811
    %v1823 = vsub.f32 %v1795, %v1815
    %vm1824 = vcmask 1040384
    %v1825 = vsel %vm1824, %v1820, 0.0
    %v1826 = vsel %vm1824, %v1821, 0.0
    %v1827 = vadd.f32 %v1825, %v1826
    %v1828 = vsel %vm1824, %v1822, 0.0
    %v1829 = vadd.f32 %v1827, %v1828
    %v1830 = vsel %vm1824, %v1823, 0.0
    %v1831 = vadd.f32 %v1829, %v1830
    %1832 = vadd.xlane.f32.xlu0 %v1831
    %v1833 = vpop.xlane.xlu0 %1832
    %v1834 = vrot.slane %v1833, 4
    %v1835 = vadd.f32 %v1833, %v1834
    %v1836 = vrot.slane %v1835, 2
    %v1837 = vadd.f32 %v1835, %v1836
    %v1838 = vrot.slane %v1837, 1
    %v1839 = vadd.f32 %v1837, %v1838
    %s1840 = vtos %v1839
    %v1841 = vld [vmem:[#allocation7] sm:$0x1]
    %v1842 = vstv %s1840
    %v1843 = vadd.f32 %v1841, %v1842
    %vm1844 = vcmask 0
    %1845 = vst.msk [vmem:[#allocation7] sm:$0x1] %vm1844, %v1843
    %1846 = vmatprep.subr.mxu0 0.0
    %1847 = vmatpush1.msra.mxu0 1.0
    %1848 = vmatprep.subr.mxu0 0.0
    %1849 = vmatpush1.msra.mxu0 1.0
    %1850 = vmatprep.subr.mxu0 0.0
    %1851 = vmatpush1.msra.mxu0 1.0
    %1852 = vmatprep.subr.mxu0 0.0
    %1853 = vmatpush1.msra.mxu0 1.0
    %1854 = vmatprep.subr.mxu0 0.0
    %1855 = vmatpush1.msra.mxu0 1.0
    %1856 = vmatprep.subr.mxu0 0.0
    %1857 = vmatpush1.msra.mxu0 1.0
    %1858 = vmatprep.subr.mxu0 0.0
    %1859 = vmatpush1.msra.mxu0 1.0
    %1860 = vmatprep.subr.mxu0 0.0
    %1861 = vmatpush1.msra.mxu0 1.0
    %1862 = vmatprep.subr.mxu0 0.0
    %1863 = vmatpush1.msra.mxu0 1.0
    %1864 = vmatprep.subr.mxu0 0.0
    %1865 = vmatpush1.msra.mxu0 1.0
    %1866 = vmatprep.subr.mxu0 0.0
    %1867 = vmatpush1.msra.mxu0 1.0
    %1868 = vmatprep.subr.mxu0 0.0
    %1869 = vmatpush1.msra.mxu0 1.0
    %1870 = vmatprep.subr.mxu0 0.0
    %1871 = vmatpush1.msra.mxu0 1.0
    %1872 = vmatprep.subr.mxu0 0.0
    %1873 = vmatpush1.msra.mxu0 1.0
    %1874 = vmatprep.subr.mxu0 0.0
    %1875 = vmatpush1.msra.mxu0 1.0
    %1876 = vmatprep.subr.mxu0 0.0
    %1877 = vmatpush1.msra.mxu0 1.0
    %1878 = vmatprep.subr.mxu0 0.0
    %1879 = vmatpush1.msra.mxu0 1.0
    %1880 = vmatprep.subr.mxu0 0.0
    %1881 = vmatpush1.msra.mxu0 1.0
    %1882 = vmatprep.subr.mxu0 0.0
    %1883 = vmatpush1.msra.mxu0 1.0
    %1884 = vmatprep.subr.mxu0 0.0
    %1885 = vmatpush1.msra.mxu0 1.0
    %1886 = vmatprep.subr.mxu0 0.0
    %1887 = vmatpush1.msra.mxu0 1.0
    %1888 = vmatprep.subr.mxu0 0.0
    %1889 = vmatpush1.msra.mxu0 1.0
    %1890 = vmatprep.subr.mxu0 0.0
    %1891 = vmatpush1.msra.mxu0 1.0
    %1892 = vmatprep.subr.mxu0 0.0
    %1893 = vmatpush1.msra.mxu0 1.0
    %1894 = vmatprep.subr.mxu0 0.0
    %1895 = vmatpush1.msra.mxu0 1.0
    %1896 = vmatprep.subr.mxu0 0.0
    %1897 = vmatpush1.msra.mxu0 1.0
    %1898 = vmatprep.subr.mxu0 0.0
    %1899 = vmatpush1.msra.mxu0 1.0
    %1900 = vmatprep.subr.mxu0 0.0
    %1901 = vmatpush1.msra.mxu0 1.0
    %1902 = vmatprep.subr.mxu0 0.0
    %1903 = vmatpush1.msra.mxu0 1.0
    %1904 = vmatprep.subr.mxu0 0.0
    %1905 = vmatpush1.msra.mxu0 1.0
    %1906 = vmatprep.subr.mxu0 0.0
    %1907 = vmatpush1.msra.mxu0 1.0
    %1908 = vmatprep.subr.mxu0 0.0
    %1909 = vmatpush1.msra.mxu0 1.0
    %1910 = vmatprep.mubr.f32.mxu0 %v918
    %1911 = vmatmul.mubr.f32.gmra.mrb[0].mxu0 %v916
    %v1912 = vpop.f32.mrb[0].mxu0
    %v1913 = vadd.f32 0.0, %v1912
    %v1914 = vpop.f32.mrb[0].mxu0
    %1915 = vmatprep.mubr.f32.mxu0 %v926
    %1916 = vmatmul.mubr.f32.gmra.mrb[0].mxu0 %v924
    %v1917 = vpop.f32.mrb[0].mxu0
    %v1918 = vadd.f32 0.0, %v1917
    %v1919 = vpop.f32.mrb[0].mxu0
    %1920 = vmatprep.mubr.f32.mxu0 %v934
    %1921 = vmatmul.mubr.f32.gmra.mrb[0].mxu0 %v932
    %v1922 = vpop.f32.mrb[0].mxu0
    %v1923 = vadd.f32 0.0, %v1922
    %v1924 = vpop.f32.mrb[0].mxu0
    %1925 = vmatprep.mubr.f32.mxu0 %v942
    %1926 = vmatmul.mubr.f32.gmra.mrb[0].mxu0 %v940
    %v1927 = vpop.f32.mrb[0].mxu0
    %v1928 = vadd.f32 0.0, %v1927
    %v1929 = vpop.f32.mrb[0].mxu0
    %1930 = vmatprep.mubr.f32.mxu0 %v950
    %1931 = vmatmul.mubr.f32.gmra.mrb[0].mxu0 %v948
    %v1932 = vpop.f32.mrb[0].mxu0
    %v1933 = vadd.f32 0.0, %v1932
    %v1934 = vpop.f32.mrb[0].mxu0
    %1935 = vmatprep.mubr.f32.mxu0 %v958
    %1936 = vmatmul.mubr.f32.gmra.mrb[0].mxu0 %v956
    %v1937 = vpop.f32.mrb[0].mxu0
    %v1938 = vadd.f32 0.0, %v1937
    %v1939 = vpop.f32.mrb[0].mxu0
    %1940 = vmatprep.mubr.f32.mxu0 %v966
    %1941 = vmatmul.mubr.f32.gmra.mrb[0].mxu0 %v964
    %v1942 = vpop.f32.mrb[0].mxu0
    %v1943 = vadd.f32 0.0, %v1942
    %v1944 = vpop.f32.mrb[0].mxu0
    %1945 = vmatprep.mubr.f32.mxu0 %v974
    %1946 = vmatmul.mubr.f32.gmra.mrb[0].mxu0 %v972
    %v1947 = vpop.f32.mrb[0].mxu0
    %v1948 = vadd.f32 0.0, %v1947
    %v1949 = vpop.f32.mrb[0].mxu0
    %1950 = vmatprep.mubr.f32.mxu0 %v982
    %1951 = vmatmul.mubr.f32.gmra.mrb[0].mxu0 %v980
    %v1952 = vpop.f32.mrb[0].mxu0
    %v1953 = vadd.f32 0.0, %v1952
    %v1954 = vpop.f32.mrb[0].mxu0
    %1955 = vmatprep.mubr.f32.mxu0 %v990
    %1956 = vmatmul.mubr.f32.gmra.mrb[0].mxu0 %v988
    %v1957 = vpop.f32.mrb[0].mxu0
    %v1958 = vadd.f32 0.0, %v1957
    %v1959 = vpop.f32.mrb[0].mxu0
    %1960 = vmatprep.mubr.f32.mxu0 %v998
    %1961 = vmatmul.mubr.f32.gmra.mrb[0].mxu0 %v996
    %v1962 = vpop.f32.mrb[0].mxu0
    %v1963 = vadd.f32 0.0, %v1962
    %v1964 = vpop.f32.mrb[0].mxu0
    %1965 = vmatprep.mubr.f32.mxu0 %v1006
    %1966 = vmatmul.mubr.f32.gmra.mrb[0].mxu0 %v1004
    %v1967 = vpop.f32.mrb[0].mxu0
    %v1968 = vadd.f32 0.0, %v1967
    %v1969 = vpop.f32.mrb[0].mxu0
    %1970 = vmatprep.mubr.f32.mxu0 %v1014
    %1971 = vmatmul.mubr.f32.gmra.mrb[0].mxu0 %v1012
    %v1972 = vpop.f32.mrb[0].mxu0
    %v1973 = vadd.f32 0.0, %v1972
    %v1974 = vpop.f32.mrb[0].mxu0
    %1975 = vmatprep.mubr.f32.mxu0 %v1022
    %1976 = vmatmul.mubr.f32.gmra.mrb[0].mxu0 %v1020
    %v1977 = vpop.f32.mrb[0].mxu0
    %v1978 = vadd.f32 0.0, %v1977
    %v1979 = vpop.f32.mrb[0].mxu0
    %1980 = vmatprep.mubr.f32.mxu0 %v1030
    %1981 = vmatmul.mubr.f32.gmra.mrb[0].mxu0 %v1028
    %v1982 = vpop.f32.mrb[0].mxu0
    %v1983 = vadd.f32 0.0, %v1982
    %v1984 = vpop.f32.mrb[0].mxu0
    %1985 = vmatprep.mubr.f32.mxu0 %v1038
    %1986 = vmatmul.mubr.f32.gmra.mrb[0].mxu0 %v1036
    %v1987 = vpop.f32.mrb[0].mxu0
    %v1988 = vadd.f32 0.0, %v1987
    %v1989 = vpop.f32.mrb[0].mxu0
    %1990 = vmatprep.mubr.f32.mxu0 %v1046
    %1991 = vmatmul.mubr.f32.gmra.mrb[0].mxu0 %v1044
    %v1992 = vpop.f32.mrb[0].mxu0
    %v1993 = vadd.f32 0.0, %v1992
    %v1994 = vpop.f32.mrb[0].mxu0
    %1995 = vmatprep.mubr.f32.mxu0 %v1054
    %1996 = vmatmul.mubr.f32.gmra.mrb[0].mxu0 %v1052
    %v1997 = vpop.f32.mrb[0].mxu0
    %v1998 = vadd.f32 0.0, %v1997
    %v1999 = vpop.f32.mrb[0].mxu0
    %2000 = vmatprep.mubr.f32.mxu0 %v1062
    %2001 = vmatmul.mubr.f32.gmra.mrb[0].mxu0 %v1060
    %v2002 = vpop.f32.mrb[0].mxu0
    %v2003 = vadd.f32 0.0, %v2002
    %v2004 = vpop.f32.mrb[0].mxu0
    %2005 = vmatprep.mubr.f32.mxu0 %v1070
    %2006 = vmatmul.mubr.f32.gmra.mrb[0].mxu0 %v1068
    %v2007 = vpop.f32.mrb[0].mxu0
    %v2008 = vadd.f32 0.0, %v2007
    %v2009 = vpop.f32.mrb[0].mxu0
    %2010 = vmatprep.mubr.f32.mxu0 %v1078
    %2011 = vmatmul.mubr.f32.gmra.mrb[0].mxu0 %v1076
    %v2012 = vpop.f32.mrb[0].mxu0
    %v2013 = vadd.f32 0.0, %v2012
    %v2014 = vpop.f32.mrb[0].mxu0
    %2015 = vmatprep.mubr.f32.mxu0 %v1086
    %2016 = vmatmul.mubr.f32.gmra.mrb[0].mxu0 %v1084
    %v2017 = vpop.f32.mrb[0].mxu0
    %v2018 = vadd.f32 0.0, %v2017
    %v2019 = vpop.f32.mrb[0].mxu0
    %2020 = vmatprep.mubr.f32.mxu0 %v1094
    %2021 = vmatmul.mubr.f32.gmra.mrb[0].mxu0 %v1092
    %v2022 = vpop.f32.mrb[0].mxu0
    %v2023 = vadd.f32 0.0, %v2022
    %v2024 = vpop.f32.mrb[0].mxu0
    %2025 = vmatprep.mubr.f32.mxu0 %v1102
    %2026 = vmatmul.mubr.f32.gmra.mrb[0].mxu0 %v1100
    %v2027 = vpop.f32.mrb[0].mxu0
    %v2028 = vadd.f32 0.0, %v2027
    %v2029 = vpop.f32.mrb[0].mxu0
    %2030 = vmatprep.mubr.f32.mxu0 %v1110
    %2031 = vmatmul.mubr.f32.gmra.mrb[0].mxu0 %v1108
    %v2032 = vpop.f32.mrb[0].mxu0
    %v2033 = vadd.f32 0.0, %v2032
    %v2034 = vpop.f32.mrb[0].mxu0
    %2035 = vmatprep.mubr.f32.mxu0 %v1118
    %2036 = vmatmul.mubr.f32.gmra.mrb[0].mxu0 %v1116
    %v2037 = vpop.f32.mrb[0].mxu0
    %v2038 = vadd.f32 0.0, %v2037
    %v2039 = vpop.f32.mrb[0].mxu0
    %2040 = vmatprep.mubr.f32.mxu0 %v1126
    %2041 = vmatmul.mubr.f32.gmra.mrb[0].mxu0 %v1124
    %v2042 = vpop.f32.mrb[0].mxu0
    %v2043 = vadd.f32 0.0, %v2042
    %v2044 = vpop.f32.mrb[0].mxu0
    %2045 = vmatprep.mubr.f32.mxu0 %v1134
    %2046 = vmatmul.mubr.f32.gmra.mrb[0].mxu0 %v1132
    %v2047 = vpop.f32.mrb[0].mxu0
    %v2048 = vadd.f32 0.0, %v2047
    %v2049 = vpop.f32.mrb[0].mxu0
    %2050 = vmatprep.mubr.f32.mxu0 %v1142
    %2051 = vmatmul.mubr.f32.gmra.mrb[0].mxu0 %v1140
    %v2052 = vpop.f32.mrb[0].mxu0
    %v2053 = vadd.f32 0.0, %v2052
    %v2054 = vpop.f32.mrb[0].mxu0
    %2055 = vmatprep.mubr.f32.mxu0 %v1150
    %2056 = vmatmul.mubr.f32.gmra.mrb[0].mxu0 %v1148
    %v2057 = vpop.f32.mrb[0].mxu0
    %v2058 = vadd.f32 0.0, %v2057
    %v2059 = vpop.f32.mrb[0].mxu0
    %2060 = vmatprep.mubr.f32.mxu0 %v1158
    %2061 = vmatmul.mubr.f32.gmra.mrb[0].mxu0 %v1156
    %v2062 = vpop.f32.mrb[0].mxu0
    %v2063 = vadd.f32 0.0, %v2062
    %v2064 = vpop.f32.mrb[0].mxu0
    %2065 = vmatprep.mubr.f32.mxu0 %v1166
    %2066 = vmatmul.mubr.f32.gmra.mrb[0].mxu0 %v1164
    %v2067 = vpop.f32.mrb[0].mxu0
    %v2068 = vadd.f32 0.0, %v2067
    %v2069 = vpop.f32.mrb[0].mxu0
    %2070 = vmatprep.mubr.f32.mxu0 %v1174
    %2071 = vmatmul.mubr.f32.gmra.mrb[0].mxu0 %v1172
    %v2072 = vpop.f32.mrb[0].mxu0
    %v2073 = vadd.f32 0.0, %v2072
    %v2074 = vpop.f32.mrb[0].mxu0
    %2075 = vmatprep.mubr.f32.mxu0 %v1182
    %2076 = vmatmul.mubr.f32.gmra.mrb[0].mxu0 %v1180
    %v2077 = vpop.f32.mrb[0].mxu0
    %v2078 = vadd.f32 0.0, %v2077
    %v2079 = vpop.f32.mrb[0].mxu0
    %2080 = vmatprep.mubr.f32.mxu0 %v1190
    %2081 = vmatmul.mubr.f32.gmra.mrb[0].mxu0 %v1188
    %v2082 = vpop.f32.mrb[0].mxu0
    %v2083 = vadd.f32 0.0, %v2082
    %v2084 = vpop.f32.mrb[0].mxu0
    %2085 = vmatprep.mubr.f32.mxu0 %v1198
    %2086 = vmatmul.mubr.f32.gmra.mrb[0].mxu0 %v1196
    %v2087 = vpop.f32.mrb[0].mxu0
    %v2088 = vadd.f32 0.0, %v2087
    %v2089 = vpop.f32.mrb[0].mxu0
    %2090 = vmatprep.mubr.f32.mxu0 %v1206
    %2091 = vmatmul.mubr.f32.gmra.mrb[0].mxu0 %v1204
    %v2092 = vpop.f32.mrb[0].mxu0
    %v2093 = vadd.f32 0.0, %v2092
    %v2094 = vpop.f32.mrb[0].mxu0
    %2095 = vmatprep.mubr.f32.mxu0 %v1214
    %2096 = vmatmul.mubr.f32.gmra.mrb[0].mxu0 %v1212
    %v2097 = vpop.f32.mrb[0].mxu0
    %v2098 = vadd.f32 0.0, %v2097
    %v2099 = vpop.f32.mrb[0].mxu0
    %2100 = vmatprep.mubr.f32.mxu0 %v1222
    %2101 = vmatmul.mubr.f32.gmra.mrb[0].mxu0 %v1220
    %v2102 = vpop.f32.mrb[0].mxu0
    %v2103 = vadd.f32 0.0, %v2102
    %v2104 = vpop.f32.mrb[0].mxu0
    %2105 = vmatprep.mubr.f32.mxu0 %v1230
    %2106 = vmatmul.mubr.f32.gmra.mrb[0].mxu0 %v1228
    %v2107 = vpop.f32.mrb[0].mxu0
    %v2108 = vadd.f32 0.0, %v2107
    %v2109 = vpop.f32.mrb[0].mxu0
    %2110 = vmatprep.mubr.f32.mxu0 %v1238
    %2111 = vmatmul.mubr.f32.gmra.mrb[0].mxu0 %v1236
    %v2112 = vpop.f32.mrb[0].mxu0
    %v2113 = vadd.f32 0.0, %v2112
    %v2114 = vpop.f32.mrb[0].mxu0
    %2115 = vmatprep.mubr.f32.mxu0 %v1246
    %2116 = vmatmul.mubr.f32.gmra.mrb[0].mxu0 %v1244
    %v2117 = vpop.f32.mrb[0].mxu0
    %v2118 = vadd.f32 0.0, %v2117
    %v2119 = vpop.f32.mrb[0].mxu0
    %2120 = vmatprep.mubr.f32.mxu0 %v1254
    %2121 = vmatmul.mubr.f32.gmra.mrb[0].mxu0 %v1252
    %v2122 = vpop.f32.mrb[0].mxu0
    %v2123 = vadd.f32 0.0, %v2122
    %v2124 = vpop.f32.mrb[0].mxu0
    %2125 = vmatprep.mubr.f32.mxu0 %v1262
    %2126 = vmatmul.mubr.f32.gmra.mrb[0].mxu0 %v1260
    %v2127 = vpop.f32.mrb[0].mxu0
    %v2128 = vadd.f32 0.0, %v2127
    %v2129 = vpop.f32.mrb[0].mxu0
    %2130 = vmatprep.mubr.f32.mxu0 %v1270
    %2131 = vmatmul.mubr.f32.gmra.mrb[0].mxu0 %v1268
    %v2132 = vpop.f32.mrb[0].mxu0
    %v2133 = vadd.f32 0.0, %v2132
    %v2134 = vpop.f32.mrb[0].mxu0
    %2135 = vmatprep.mubr.f32.mxu0 %v1278
    %2136 = vmatmul.mubr.f32.gmra.mrb[0].mxu0 %v1276
    %v2137 = vpop.f32.mrb[0].mxu0
    %v2138 = vadd.f32 0.0, %v2137
    %v2139 = vpop.f32.mrb[0].mxu0
    %2140 = vmatprep.mubr.f32.mxu0 %v1286
    %2141 = vmatmul.mubr.f32.gmra.mrb[0].mxu0 %v1284
    %v2142 = vpop.f32.mrb[0].mxu0
    %v2143 = vadd.f32 0.0, %v2142
    %v2144 = vpop.f32.mrb[0].mxu0
    %2145 = vmatprep.mubr.f32.mxu0 %v1294
    %2146 = vmatmul.mubr.f32.gmra.mrb[0].mxu0 %v1292
    %v2147 = vpop.f32.mrb[0].mxu0
    %v2148 = vadd.f32 0.0, %v2147
    %v2149 = vpop.f32.mrb[0].mxu0
    %2150 = vmatprep.mubr.f32.mxu0 %v1302
    %2151 = vmatmul.mubr.f32.gmra.mrb[0].mxu0 %v1300
    %v2152 = vpop.f32.mrb[0].mxu0
    %v2153 = vadd.f32 0.0, %v2152
    %v2154 = vpop.f32.mrb[0].mxu0
    %2155 = vmatprep.mubr.f32.mxu0 %v1310
    %2156 = vmatmul.mubr.f32.gmra.mrb[0].mxu0 %v1308
    %v2157 = vpop.f32.mrb[0].mxu0
    %v2158 = vadd.f32 0.0, %v2157
    %v2159 = vpop.f32.mrb[0].mxu0
    %2160 = vmatprep.mubr.f32.mxu0 %v1318
    %2161 = vmatmul.mubr.f32.gmra.mrb[0].mxu0 %v1316
    %v2162 = vpop.f32.mrb[0].mxu0
    %v2163 = vadd.f32 0.0, %v2162
    %v2164 = vpop.f32.mrb[0].mxu0
    %2165 = vmatprep.mubr.f32.mxu0 %v1326
    %2166 = vmatmul.mubr.f32.gmra.mrb[0].mxu0 %v1324
    %v2167 = vpop.f32.mrb[0].mxu0
    %v2168 = vadd.f32 0.0, %v2167
    %v2169 = vpop.f32.mrb[0].mxu0
    %2170 = vmatprep.mubr.f32.mxu0 %v1334
    %2171 = vmatmul.mubr.f32.gmra.mrb[0].mxu0 %v1332
    %v2172 = vpop.f32.mrb[0].mxu0
    %v2173 = vadd.f32 0.0, %v2172
    %v2174 = vpop.f32.mrb[0].mxu0
    %2175 = vmatprep.mubr.f32.mxu0 %v1342
    %2176 = vmatmul.mubr.f32.gmra.mrb[0].mxu0 %v1340
    %v2177 = vpop.f32.mrb[0].mxu0
    %v2178 = vadd.f32 0.0, %v2177
    %v2179 = vpop.f32.mrb[0].mxu0
    %2180 = vmatprep.mubr.f32.mxu0 %v1350
    %2181 = vmatmul.mubr.f32.gmra.mrb[0].mxu0 %v1348
    %v2182 = vpop.f32.mrb[0].mxu0
    %v2183 = vadd.f32 0.0, %v2182
    %v2184 = vpop.f32.mrb[0].mxu0
    %2185 = vmatprep.mubr.f32.mxu0 %v1358
    %2186 = vmatmul.mubr.f32.gmra.mrb[0].mxu0 %v1356
    %v2187 = vpop.f32.mrb[0].mxu0
    %v2188 = vadd.f32 0.0, %v2187
    %v2189 = vpop.f32.mrb[0].mxu0
    %2190 = vmatprep.mubr.f32.mxu0 %v1366
    %2191 = vmatmul.mubr.f32.gmra.mrb[0].mxu0 %v1364
    %v2192 = vpop.f32.mrb[0].mxu0
    %v2193 = vadd.f32 0.0, %v2192
    %v2194 = vpop.f32.mrb[0].mxu0
    %2195 = vmatprep.mubr.f32.mxu0 %v1374
    %2196 = vmatmul.mubr.f32.gmra.mrb[0].mxu0 %v1372
    %v2197 = vpop.f32.mrb[0].mxu0
    %v2198 = vadd.f32 0.0, %v2197
    %v2199 = vpop.f32.mrb[0].mxu0
    %2200 = vmatprep.mubr.f32.mxu0 %v1382
    %2201 = vmatmul.mubr.f32.gmra.mrb[0].mxu0 %v1380
    %v2202 = vpop.f32.mrb[0].mxu0
    %v2203 = vadd.f32 0.0, %v2202
    %v2204 = vpop.f32.mrb[0].mxu0
    %2205 = vmatprep.mubr.f32.mxu0 %v1390
    %2206 = vmatmul.mubr.f32.gmra.mrb[0].mxu0 %v1388
    %v2207 = vpop.f32.mrb[0].mxu0
    %v2208 = vadd.f32 0.0, %v2207
    %v2209 = vpop.f32.mrb[0].mxu0
    %2210 = vmatprep.mubr.f32.mxu0 %v1398
    %2211 = vmatmul.mubr.f32.gmra.mrb[0].mxu0 %v1396
    %v2212 = vpop.f32.mrb[0].mxu0
    %v2213 = vadd.f32 0.0, %v2212
    %v2214 = vpop.f32.mrb[0].mxu0
    %2215 = vmatprep.mubr.f32.mxu0 %v1406
    %2216 = vmatmul.mubr.f32.gmra.mrb[0].mxu0 %v1404
    %v2217 = vpop.f32.mrb[0].mxu0
    %v2218 = vadd.f32 0.0, %v2217
    %v2219 = vpop.f32.mrb[0].mxu0
    %2220 = vmatprep.mubr.f32.mxu0 %v1414
    %2221 = vmatmul.mubr.f32.gmra.mrb[0].mxu0 %v1412
    %v2222 = vpop.f32.mrb[0].mxu0
    %v2223 = vadd.f32 0.0, %v2222
    %v2224 = vpop.f32.mrb[0].mxu0
    %2225 = vmatprep.mubr.f32.mxu0 %v1422
    %2226 = vmatmul.mubr.f32.gmra.mrb[0].mxu0 %v1420
    %v2227 = vpop.f32.mrb[0].mxu0
    %v2228 = vadd.f32 0.0, %v2227
    %v2229 = vpop.f32.mrb[0].mxu0
    %2230 = vdwg.mxu0
    %2231 = vmatprep.subr.mxu0 0.0
    %2232 = vmatpush1.msra.mxu0 1.0
    %2233 = vmatprep.subr.mxu0 0.0
    %2234 = vmatpush1.msra.mxu0 1.0
    %2235 = vmatprep.subr.mxu0 0.0
    %2236 = vmatpush1.msra.mxu0 1.0
    %2237 = vmatprep.subr.mxu0 0.0
    %2238 = vmatpush1.msra.mxu0 1.0
    %2239 = vmatprep.subr.mxu0 0.0
    %2240 = vmatpush1.msra.mxu0 1.0
    %2241 = vmatprep.subr.mxu0 0.0
    %2242 = vmatpush1.msra.mxu0 1.0
    %2243 = vmatprep.subr.mxu0 0.0
    %2244 = vmatpush1.msra.mxu0 1.0
    %2245 = vmatprep.subr.mxu0 0.0
    %2246 = vmatpush1.msra.mxu0 1.0
    %2247 = vmatprep.subr.mxu0 0.0
    %2248 = vmatpush1.msra.mxu0 1.0
    %2249 = vmatprep.subr.mxu0 0.0
    %2250 = vmatpush1.msra.mxu0 1.0
    %2251 = vmatprep.subr.mxu0 0.0
    %2252 = vmatpush1.msra.mxu0 1.0
    %2253 = vmatprep.subr.mxu0 0.0
    %2254 = vmatpush1.msra.mxu0 1.0
    %2255 = vmatprep.subr.mxu0 0.0
    %2256 = vmatpush1.msra.mxu0 1.0
    %2257 = vmatprep.subr.mxu0 0.0
    %2258 = vmatpush1.msra.mxu0 1.0
    %2259 = vmatprep.subr.mxu0 0.0
    %2260 = vmatpush1.msra.mxu0 1.0
    %2261 = vmatprep.subr.mxu0 0.0
    %2262 = vmatpush1.msra.mxu0 1.0
    %2263 = vmatprep.subr.mxu0 0.0
    %2264 = vmatpush1.msra.mxu0 1.0
    %2265 = vmatprep.subr.mxu0 0.0
    %2266 = vmatpush1.msra.mxu0 1.0
    %2267 = vmatprep.subr.mxu0 0.0
    %2268 = vmatpush1.msra.mxu0 1.0
    %2269 = vmatprep.subr.mxu0 0.0
    %2270 = vmatpush1.msra.mxu0 1.0
    %2271 = vmatprep.subr.mxu0 0.0
    %2272 = vmatpush1.msra.mxu0 1.0
    %2273 = vmatprep.subr.mxu0 0.0
    %2274 = vmatpush1.msra.mxu0 1.0
    %2275 = vmatprep.subr.mxu0 0.0
    %2276 = vmatpush1.msra.mxu0 1.0
    %2277 = vmatprep.subr.mxu0 0.0
    %2278 = vmatpush1.msra.mxu0 1.0
    %2279 = vmatprep.subr.mxu0 0.0
    %2280 = vmatpush1.msra.mxu0 1.0
    %2281 = vmatprep.subr.mxu0 0.0
    %2282 = vmatpush1.msra.mxu0 1.0
    %2283 = vmatprep.subr.mxu0 0.0
    %2284 = vmatpush1.msra.mxu0 1.0
    %2285 = vmatprep.subr.mxu0 0.0
    %2286 = vmatpush1.msra.mxu0 1.0
    %2287 = vmatprep.subr.mxu0 0.0
    %2288 = vmatpush1.msra.mxu0 1.0
    %2289 = vmatprep.subr.mxu0 0.0
    %2290 = vmatpush1.msra.mxu0 1.0
    %2291 = vmatprep.subr.mxu0 0.0
    %2292 = vmatpush1.msra.mxu0 1.0
    %2293 = vmatprep.subr.mxu0 0.0
    %2294 = vmatpush1.msra.mxu0 1.0
    %2295 = vmatprep.mubr.f32.mxu0 %v922
    %2296 = vmatmul.mubr.f32.gmra.mrb[0].mxu0 %v920
    %v2297 = vpop.f32.mrb[0].mxu0
    %v2298 = vadd.f32 %v1913, %v2297
    %v2299 = vpop.f32.mrb[0].mxu0
    %2300 = vmatprep.mubr.f32.mxu0 %v930
    %2301 = vmatmul.mubr.f32.gmra.mrb[0].mxu0 %v928
    %v2302 = vpop.f32.mrb[0].mxu0
    %v2303 = vadd.f32 %v1918, %v2302
    %v2304 = vpop.f32.mrb[0].mxu0
    %2305 = vmatprep.mubr.f32.mxu0 %v938
    %2306 = vmatmul.mubr.f32.gmra.mrb[0].mxu0 %v936
    %v2307 = vpop.f32.mrb[0].mxu0
    %v2308 = vadd.f32 %v1923, %v2307
    %v2309 = vpop.f32.mrb[0].mxu0
    %2310 = vmatprep.mubr.f32.mxu0 %v946
    %2311 = vmatmul.mubr.f32.gmra.mrb[0].mxu0 %v944
    %v2312 = vpop.f32.mrb[0].mxu0
    %v2313 = vadd.f32 %v1928, %v2312
    %v2314 = vpop.f32.mrb[0].mxu0
    %2315 = vmatprep.mubr.f32.mxu0 %v954
    %2316 = vmatmul.mubr.f32.gmra.mrb[0].mxu0 %v952
    %v2317 = vpop.f32.mrb[0].mxu0
    %v2318 = vadd.f32 %v1933, %v2317
    %v2319 = vpop.f32.mrb[0].mxu0
    %2320 = vmatprep.mubr.f32.mxu0 %v962
    %2321 = vmatmul.mubr.f32.gmra.mrb[0].mxu0 %v960
    %v2322 = vpop.f32.mrb[0].mxu0
    %v2323 = vadd.f32 %v1938, %v2322
    %v2324 = vpop.f32.mrb[0].mxu0
    %2325 = vmatprep.mubr.f32.mxu0 %v970
    %2326 = vmatmul.mubr.f32.gmra.mrb[0].mxu0 %v968
    %v2327 = vpop.f32.mrb[0].mxu0
    %v2328 = vadd.f32 %v1943, %v2327
    %v2329 = vpop.f32.mrb[0].mxu0
    %2330 = vmatprep.mubr.f32.mxu0 %v978
    %2331 = vmatmul.mubr.f32.gmra.mrb[0].mxu0 %v976
    %v2332 = vpop.f32.mrb[0].mxu0
    %v2333 = vadd.f32 %v1948, %v2332
    %v2334 = vpop.f32.mrb[0].mxu0
    %2335 = vmatprep.mubr.f32.mxu0 %v986
    %2336 = vmatmul.mubr.f32.gmra.mrb[0].mxu0 %v984
    %v2337 = vpop.f32.mrb[0].mxu0
    %v2338 = vadd.f32 %v1953, %v2337
    %v2339 = vpop.f32.mrb[0].mxu0
    %2340 = vmatprep.mubr.f32.mxu0 %v994
    %2341 = vmatmul.mubr.f32.gmra.mrb[0].mxu0 %v992
    %v2342 = vpop.f32.mrb[0].mxu0
    %v2343 = vadd.f32 %v1958, %v2342
    %v2344 = vpop.f32.mrb[0].mxu0
    %2345 = vmatprep.mubr.f32.mxu0 %v1002
    %2346 = vmatmul.mubr.f32.gmra.mrb[0].mxu0 %v1000
    %v2347 = vpop.f32.mrb[0].mxu0
    %v2348 = vadd.f32 %v1963, %v2347
    %v2349 = vpop.f32.mrb[0].mxu0
    %2350 = vmatprep.mubr.f32.mxu0 %v1010
    %2351 = vmatmul.mubr.f32.gmra.mrb[0].mxu0 %v1008
    %v2352 = vpop.f32.mrb[0].mxu0
    %v2353 = vadd.f32 %v1968, %v2352
    %v2354 = vpop.f32.mrb[0].mxu0
    %2355 = vmatprep.mubr.f32.mxu0 %v1018
    %2356 = vmatmul.mubr.f32.gmra.mrb[0].mxu0 %v1016
    %v2357 = vpop.f32.mrb[0].mxu0
    %v2358 = vadd.f32 %v1973, %v2357
    %v2359 = vpop.f32.mrb[0].mxu0
    %2360 = vmatprep.mubr.f32.mxu0 %v1026
    %2361 = vmatmul.mubr.f32.gmra.mrb[0].mxu0 %v1024
    %v2362 = vpop.f32.mrb[0].mxu0
    %v2363 = vadd.f32 %v1978, %v2362
    %v2364 = vpop.f32.mrb[0].mxu0
    %2365 = vmatprep.mubr.f32.mxu0 %v1034
    %2366 = vmatmul.mubr.f32.gmra.mrb[0].mxu0 %v1032
    %v2367 = vpop.f32.mrb[0].mxu0
    %v2368 = vadd.f32 %v1983, %v2367
    %v2369 = vpop.f32.mrb[0].mxu0
    %2370 = vmatprep.mubr.f32.mxu0 %v1042
    %2371 = vmatmul.mubr.f32.gmra.mrb[0].mxu0 %v1040
    %v2372 = vpop.f32.mrb[0].mxu0
    %v2373 = vadd.f32 %v1988, %v2372
    %v2374 = vpop.f32.mrb[0].mxu0
    %2375 = vmatprep.mubr.f32.mxu0 %v1050
    %2376 = vmatmul.mubr.f32.gmra.mrb[0].mxu0 %v1048
    %v2377 = vpop.f32.mrb[0].mxu0
    %v2378 = vadd.f32 %v1993, %v2377
    %v2379 = vpop.f32.mrb[0].mxu0
    %2380 = vmatprep.mubr.f32.mxu0 %v1058
    %2381 = vmatmul.mubr.f32.gmra.mrb[0].mxu0 %v1056
    %v2382 = vpop.f32.mrb[0].mxu0
    %v2383 = vadd.f32 %v1998, %v2382
    %v2384 = vpop.f32.mrb[0].mxu0
    %2385 = vmatprep.mubr.f32.mxu0 %v1066
    %2386 = vmatmul.mubr.f32.gmra.mrb[0].mxu0 %v1064
    %v2387 = vpop.f32.mrb[0].mxu0
    %v2388 = vadd.f32 %v2003, %v2387
    %v2389 = vpop.f32.mrb[0].mxu0
    %2390 = vmatprep.mubr.f32.mxu0 %v1074
    %2391 = vmatmul.mubr.f32.gmra.mrb[0].mxu0 %v1072
    %v2392 = vpop.f32.mrb[0].mxu0
    %v2393 = vadd.f32 %v2008, %v2392
    %v2394 = vpop.f32.mrb[0].mxu0
    %2395 = vmatprep.mubr.f32.mxu0 %v1082
    %2396 = vmatmul.mubr.f32.gmra.mrb[0].mxu0 %v1080
    %v2397 = vpop.f32.mrb[0].mxu0
    %v2398 = vadd.f32 %v2013, %v2397
    %v2399 = vpop.f32.mrb[0].mxu0
    %2400 = vmatprep.mubr.f32.mxu0 %v1090
    %2401 = vmatmul.mubr.f32.gmra.mrb[0].mxu0 %v1088
    %v2402 = vpop.f32.mrb[0].mxu0
    %v2403 = vadd.f32 %v2018, %v2402
    %v2404 = vpop.f32.mrb[0].mxu0
    %2405 = vmatprep.mubr.f32.mxu0 %v1098
    %2406 = vmatmul.mubr.f32.gmra.mrb[0].mxu0 %v1096
    %v2407 = vpop.f32.mrb[0].mxu0
    %v2408 = vadd.f32 %v2023, %v2407
    %v2409 = vpop.f32.mrb[0].mxu0
    %2410 = vmatprep.mubr.f32.mxu0 %v1106
    %2411 = vmatmul.mubr.f32.gmra.mrb[0].mxu0 %v1104
    %v2412 = vpop.f32.mrb[0].mxu0
    %v2413 = vadd.f32 %v2028, %v2412
    %v2414 = vpop.f32.mrb[0].mxu0
    %2415 = vmatprep.mubr.f32.mxu0 %v1114
    %2416 = vmatmul.mubr.f32.gmra.mrb[0].mxu0 %v1112
    %v2417 = vpop.f32.mrb[0].mxu0
    %v2418 = vadd.f32 %v2033, %v2417
    %v2419 = vpop.f32.mrb[0].mxu0
    %2420 = vmatprep.mubr.f32.mxu0 %v1122
    %2421 = vmatmul.mubr.f32.gmra.mrb[0].mxu0 %v1120
    %v2422 = vpop.f32.mrb[0].mxu0
    %v2423 = vadd.f32 %v2038, %v2422
    %v2424 = vpop.f32.mrb[0].mxu0
    %2425 = vmatprep.mubr.f32.mxu0 %v1130
    %2426 = vmatmul.mubr.f32.gmra.mrb[0].mxu0 %v1128
    %v2427 = vpop.f32.mrb[0].mxu0
    %v2428 = vadd.f32 %v2043, %v2427
    %v2429 = vpop.f32.mrb[0].mxu0
    %2430 = vmatprep.mubr.f32.mxu0 %v1138
    %2431 = vmatmul.mubr.f32.gmra.mrb[0].mxu0 %v1136
    %v2432 = vpop.f32.mrb[0].mxu0
    %v2433 = vadd.f32 %v2048, %v2432
    %v2434 = vpop.f32.mrb[0].mxu0
    %2435 = vmatprep.mubr.f32.mxu0 %v1146
    %2436 = vmatmul.mubr.f32.gmra.mrb[0].mxu0 %v1144
    %v2437 = vpop.f32.mrb[0].mxu0
    %v2438 = vadd.f32 %v2053, %v2437
    %v2439 = vpop.f32.mrb[0].mxu0
    %2440 = vmatprep.mubr.f32.mxu0 %v1154
    %2441 = vmatmul.mubr.f32.gmra.mrb[0].mxu0 %v1152
    %v2442 = vpop.f32.mrb[0].mxu0
    %v2443 = vadd.f32 %v2058, %v2442
    %v2444 = vpop.f32.mrb[0].mxu0
    %2445 = vmatprep.mubr.f32.mxu0 %v1162
    %2446 = vmatmul.mubr.f32.gmra.mrb[0].mxu0 %v1160
    %v2447 = vpop.f32.mrb[0].mxu0
    %v2448 = vadd.f32 %v2063, %v2447
    %v2449 = vpop.f32.mrb[0].mxu0
    %2450 = vmatprep.mubr.f32.mxu0 %v1170
    %2451 = vmatmul.mubr.f32.gmra.mrb[0].mxu0 %v1168
    %v2452 = vpop.f32.mrb[0].mxu0
    %v2453 = vadd.f32 %v2068, %v2452
    %v2454 = vpop.f32.mrb[0].mxu0
    %2455 = vmatprep.mubr.f32.mxu0 %v1178
    %2456 = vmatmul.mubr.f32.gmra.mrb[0].mxu0 %v1176
    %v2457 = vpop.f32.mrb[0].mxu0
    %v2458 = vadd.f32 %v2073, %v2457
    %v2459 = vpop.f32.mrb[0].mxu0
    %2460 = vmatprep.mubr.f32.mxu0 %v1186
    %2461 = vmatmul.mubr.f32.gmra.mrb[0].mxu0 %v1184
    %v2462 = vpop.f32.mrb[0].mxu0
    %v2463 = vadd.f32 %v2078, %v2462
    %v2464 = vpop.f32.mrb[0].mxu0
    %2465 = vmatprep.mubr.f32.mxu0 %v1194
    %2466 = vmatmul.mubr.f32.gmra.mrb[0].mxu0 %v1192
    %v2467 = vpop.f32.mrb[0].mxu0
    %v2468 = vadd.f32 %v2083, %v2467
    %v2469 = vpop.f32.mrb[0].mxu0
    %2470 = vmatprep.mubr.f32.mxu0 %v1202
    %2471 = vmatmul.mubr.f32.gmra.mrb[0].mxu0 %v1200
    %v2472 = vpop.f32.mrb[0].mxu0
    %v2473 = vadd.f32 %v2088, %v2472
    %v2474 = vpop.f32.mrb[0].mxu0
    %2475 = vmatprep.mubr.f32.mxu0 %v1210
    %2476 = vmatmul.mubr.f32.gmra.mrb[0].mxu0 %v1208
    %v2477 = vpop.f32.mrb[0].mxu0
    %v2478 = vadd.f32 %v2093, %v2477
    %v2479 = vpop.f32.mrb[0].mxu0
    %2480 = vmatprep.mubr.f32.mxu0 %v1218
    %2481 = vmatmul.mubr.f32.gmra.mrb[0].mxu0 %v1216
    %v2482 = vpop.f32.mrb[0].mxu0
    %v2483 = vadd.f32 %v2098, %v2482
    %v2484 = vpop.f32.mrb[0].mxu0
    %2485 = vmatprep.mubr.f32.mxu0 %v1226
    %2486 = vmatmul.mubr.f32.gmra.mrb[0].mxu0 %v1224
    %v2487 = vpop.f32.mrb[0].mxu0
    %v2488 = vadd.f32 %v2103, %v2487
    %v2489 = vpop.f32.mrb[0].mxu0
    %2490 = vmatprep.mubr.f32.mxu0 %v1234
    %2491 = vmatmul.mubr.f32.gmra.mrb[0].mxu0 %v1232
    %v2492 = vpop.f32.mrb[0].mxu0
    %v2493 = vadd.f32 %v2108, %v2492
    %v2494 = vpop.f32.mrb[0].mxu0
    %2495 = vmatprep.mubr.f32.mxu0 %v1242
    %2496 = vmatmul.mubr.f32.gmra.mrb[0].mxu0 %v1240
    %v2497 = vpop.f32.mrb[0].mxu0
    %v2498 = vadd.f32 %v2113, %v2497
    %v2499 = vpop.f32.mrb[0].mxu0
    %2500 = vmatprep.mubr.f32.mxu0 %v1250
    %2501 = vmatmul.mubr.f32.gmra.mrb[0].mxu0 %v1248
    %v2502 = vpop.f32.mrb[0].mxu0
    %v2503 = vadd.f32 %v2118, %v2502
    %v2504 = vpop.f32.mrb[0].mxu0
    %2505 = vmatprep.mubr.f32.mxu0 %v1258
    %2506 = vmatmul.mubr.f32.gmra.mrb[0].mxu0 %v1256
    %v2507 = vpop.f32.mrb[0].mxu0
    %v2508 = vadd.f32 %v2123, %v2507
    %v2509 = vpop.f32.mrb[0].mxu0
    %2510 = vmatprep.mubr.f32.mxu0 %v1266
    %2511 = vmatmul.mubr.f32.gmra.mrb[0].mxu0 %v1264
    %v2512 = vpop.f32.mrb[0].mxu0
    %v2513 = vadd.f32 %v2128, %v2512
    %v2514 = vpop.f32.mrb[0].mxu0
    %2515 = vmatprep.mubr.f32.mxu0 %v1274
    %2516 = vmatmul.mubr.f32.gmra.mrb[0].mxu0 %v1272
    %v2517 = vpop.f32.mrb[0].mxu0
    %v2518 = vadd.f32 %v2133, %v2517
    %v2519 = vpop.f32.mrb[0].mxu0
    %2520 = vmatprep.mubr.f32.mxu0 %v1282
    %2521 = vmatmul.mubr.f32.gmra.mrb[0].mxu0 %v1280
    %v2522 = vpop.f32.mrb[0].mxu0
    %v2523 = vadd.f32 %v2138, %v2522
    %v2524 = vpop.f32.mrb[0].mxu0
    %2525 = vmatprep.mubr.f32.mxu0 %v1290
    %2526 = vmatmul.mubr.f32.gmra.mrb[0].mxu0 %v1288
    %v2527 = vpop.f32.mrb[0].mxu0
    %v2528 = vadd.f32 %v2143, %v2527
    %v2529 = vpop.f32.mrb[0].mxu0
    %2530 = vmatprep.mubr.f32.mxu0 %v1298
    %2531 = vmatmul.mubr.f32.gmra.mrb[0].mxu0 %v1296
    %v2532 = vpop.f32.mrb[0].mxu0
    %v2533 = vadd.f32 %v2148, %v2532
    %v2534 = vpop.f32.mrb[0].mxu0
    %2535 = vmatprep.mubr.f32.mxu0 %v1306
    %2536 = vmatmul.mubr.f32.gmra.mrb[0].mxu0 %v1304
    %v2537 = vpop.f32.mrb[0].mxu0
    %v2538 = vadd.f32 %v2153, %v2537
    %v2539 = vpop.f32.mrb[0].mxu0
    %2540 = vmatprep.mubr.f32.mxu0 %v1314
    %2541 = vmatmul.mubr.f32.gmra.mrb[0].mxu0 %v1312
    %v2542 = vpop.f32.mrb[0].mxu0
    %v2543 = vadd.f32 %v2158, %v2542
    %v2544 = vpop.f32.mrb[0].mxu0
    %2545 = vmatprep.mubr.f32.mxu0 %v1322
    %2546 = vmatmul.mubr.f32.gmra.mrb[0].mxu0 %v1320
    %v2547 = vpop.f32.mrb[0].mxu0
    %v2548 = vadd.f32 %v2163, %v2547
    %v2549 = vpop.f32.mrb[0].mxu0
    %2550 = vmatprep.mubr.f32.mxu0 %v1330
    %2551 = vmatmul.mubr.f32.gmra.mrb[0].mxu0 %v1328
    %v2552 = vpop.f32.mrb[0].mxu0
    %v2553 = vadd.f32 %v2168, %v2552
    %v2554 = vpop.f32.mrb[0].mxu0
    %2555 = vmatprep.mubr.f32.mxu0 %v1338
    %2556 = vmatmul.mubr.f32.gmra.mrb[0].mxu0 %v1336
    %v2557 = vpop.f32.mrb[0].mxu0
    %v2558 = vadd.f32 %v2173, %v2557
    %v2559 = vpop.f32.mrb[0].mxu0
    %2560 = vmatprep.mubr.f32.mxu0 %v1346
    %2561 = vmatmul.mubr.f32.gmra.mrb[0].mxu0 %v1344
    %v2562 = vpop.f32.mrb[0].mxu0
    %v2563 = vadd.f32 %v2178, %v2562
    %v2564 = vpop.f32.mrb[0].mxu0
    %2565 = vmatprep.mubr.f32.mxu0 %v1354
    %2566 = vmatmul.mubr.f32.gmra.mrb[0].mxu0 %v1352
    %v2567 = vpop.f32.mrb[0].mxu0
    %v2568 = vadd.f32 %v2183, %v2567
    %v2569 = vpop.f32.mrb[0].mxu0
    %2570 = vmatprep.mubr.f32.mxu0 %v1362
    %2571 = vmatmul.mubr.f32.gmra.mrb[0].mxu0 %v1360
    %v2572 = vpop.f32.mrb[0].mxu0
    %v2573 = vadd.f32 %v2188, %v2572
    %v2574 = vpop.f32.mrb[0].mxu0
    %2575 = vmatprep.mubr.f32.mxu0 %v1370
    %2576 = vmatmul.mubr.f32.gmra.mrb[0].mxu0 %v1368
    %v2577 = vpop.f32.mrb[0].mxu0
    %v2578 = vadd.f32 %v2193, %v2577
    %v2579 = vpop.f32.mrb[0].mxu0
    %2580 = vmatprep.mubr.f32.mxu0 %v1378
    %2581 = vmatmul.mubr.f32.gmra.mrb[0].mxu0 %v1376
    %v2582 = vpop.f32.mrb[0].mxu0
    %v2583 = vadd.f32 %v2198, %v2582
    %v2584 = vpop.f32.mrb[0].mxu0
    %2585 = vmatprep.mubr.f32.mxu0 %v1386
    %2586 = vmatmul.mubr.f32.gmra.mrb[0].mxu0 %v1384
    %v2587 = vpop.f32.mrb[0].mxu0
    %v2588 = vadd.f32 %v2203, %v2587
    %v2589 = vpop.f32.mrb[0].mxu0
    %2590 = vmatprep.mubr.f32.mxu0 %v1394
    %2591 = vmatmul.mubr.f32.gmra.mrb[0].mxu0 %v1392
    %v2592 = vpop.f32.mrb[0].mxu0
    %v2593 = vadd.f32 %v2208, %v2592
    %v2594 = vpop.f32.mrb[0].mxu0
    %2595 = vmatprep.mubr.f32.mxu0 %v1402
    %2596 = vmatmul.mubr.f32.gmra.mrb[0].mxu0 %v1400
    %v2597 = vpop.f32.mrb[0].mxu0
    %v2598 = vadd.f32 %v2213, %v2597
    %v2599 = vpop.f32.mrb[0].mxu0
    %2600 = vmatprep.mubr.f32.mxu0 %v1410
    %2601 = vmatmul.mubr.f32.gmra.mrb[0].mxu0 %v1408
    %v2602 = vpop.f32.mrb[0].mxu0
    %v2603 = vadd.f32 %v2218, %v2602
    %v2604 = vpop.f32.mrb[0].mxu0
    %2605 = vmatprep.mubr.f32.mxu0 %v1418
    %2606 = vmatmul.mubr.f32.gmra.mrb[0].mxu0 %v1416
    %v2607 = vpop.f32.mrb[0].mxu0
    %v2608 = vadd.f32 %v2223, %v2607
    %v2609 = vpop.f32.mrb[0].mxu0
    %2610 = vmatprep.mubr.f32.mxu0 %v1426
    %2611 = vmatmul.mubr.f32.gmra.mrb[0].mxu0 %v1424
    %v2612 = vpop.f32.mrb[0].mxu0
    %v2613 = vadd.f32 %v2228, %v2612
    %v2614 = vpop.f32.mrb[0].mxu0
    %2615 = vdwg.mxu0
    %v2616 = vld [vmem:[%s3] sm:$0xff]
    %v2617 = vld [vmem:[%s3 + $0x8] sm:$0xff]
    %v2618 = vld [vmem:[%s3 + $0x10] sm:$0xff]
    %v2619 = vld [vmem:[%s3 + $0x18] sm:$0xff]
    %v2620 = vld [vmem:[%s3 + $0x20] sm:$0xff]
    %v2621 = vld [vmem:[%s3 + $0x28] sm:$0xff]
    %v2622 = vld [vmem:[%s3 + $0x30] sm:$0xff]
    %v2623 = vld [vmem:[%s3 + $0x38] sm:$0xff]
    %v2624 = vld [vmem:[%s3 + $0x40] sm:$0xff]
    %v2625 = vld [vmem:[%s3 + $0x48] sm:$0xff]
    %v2626 = vld [vmem:[%s3 + $0x50] sm:$0xff]
    %v2627 = vld [vmem:[%s3 + $0x58] sm:$0xff]
    %v2628 = vld [vmem:[%s3 + $0x60] sm:$0xff]
    %v2629 = vld [vmem:[%s3 + $0x68] sm:$0xff]
    %v2630 = vld [vmem:[%s3 + $0x70] sm:$0xff]
    %v2631 = vld [vmem:[%s3 + $0x78] sm:$0xff]
    %v2632 = vld [vmem:[%s3 + $0x80] sm:$0xff]
    %v2633 = vld [vmem:[%s3 + $0x88] sm:$0xff]
    %v2634 = vld [vmem:[%s3 + $0x90] sm:$0xff]
    %v2635 = vld [vmem:[%s3 + $0x98] sm:$0xff]
    %v2636 = vld [vmem:[%s3 + $0xa0] sm:$0xff]
    %v2637 = vld [vmem:[%s3 + $0xa8] sm:$0xff]
    %v2638 = vld [vmem:[%s3 + $0xb0] sm:$0xff]
    %v2639 = vld [vmem:[%s3 + $0xb8] sm:$0xff]
    %v2640 = vld [vmem:[%s3 + $0xc0] sm:$0xff]
    %v2641 = vld [vmem:[%s3 + $0xc8] sm:$0xff]
    %v2642 = vld [vmem:[%s3 + $0xd0] sm:$0xff]
    %v2643 = vld [vmem:[%s3 + $0xd8] sm:$0xff]
    %v2644 = vld [vmem:[%s3 + $0xe0] sm:$0xff]
    %v2645 = vld [vmem:[%s3 + $0xe8] sm:$0xff]
    %v2646 = vld [vmem:[%s3 + $0xf0] sm:$0xff]
    %v2647 = vld [vmem:[%s3 + $0xf8] sm:$0xff]
    %v2648 = vld [vmem:[%s3 + $0x100] sm:$0xff]
    %v2649 = vld [vmem:[%s3 + $0x108] sm:$0xff]
    %v2650 = vld [vmem:[%s3 + $0x110] sm:$0xff]
    %v2651 = vld [vmem:[%s3 + $0x118] sm:$0xff]
    %v2652 = vld [vmem:[%s3 + $0x120] sm:$0xff]
    %v2653 = vld [vmem:[%s3 + $0x128] sm:$0xff]
    %v2654 = vld [vmem:[%s3 + $0x130] sm:$0xff]
    %v2655 = vld [vmem:[%s3 + $0x138] sm:$0xff]
    %v2656 = vld [vmem:[%s3 + $0x140] sm:$0xff]
    %v2657 = vld [vmem:[%s3 + $0x148] sm:$0xff]
    %v2658 = vld [vmem:[%s3 + $0x150] sm:$0xff]
    %v2659 = vld [vmem:[%s3 + $0x158] sm:$0xff]
    %v2660 = vld [vmem:[%s3 + $0x160] sm:$0xff]
    %v2661 = vld [vmem:[%s3 + $0x168] sm:$0xff]
    %v2662 = vld [vmem:[%s3 + $0x170] sm:$0xff]
    %v2663 = vld [vmem:[%s3 + $0x178] sm:$0xff]
    %v2664 = vld [vmem:[%s3 + $0x180] sm:$0xff]
    %v2665 = vld [vmem:[%s3 + $0x188] sm:$0xff]
    %v2666 = vld [vmem:[%s3 + $0x190] sm:$0xff]
    %v2667 = vld [vmem:[%s3 + $0x198] sm:$0xff]
    %v2668 = vld [vmem:[%s3 + $0x1a0] sm:$0xff]
    %v2669 = vld [vmem:[%s3 + $0x1a8] sm:$0xff]
    %v2670 = vld [vmem:[%s3 + $0x1b0] sm:$0xff]
    %v2671 = vld [vmem:[%s3 + $0x1b8] sm:$0xff]
    %v2672 = vld [vmem:[%s3 + $0x1c0] sm:$0xff]
    %v2673 = vld [vmem:[%s3 + $0x1c8] sm:$0xff]
    %v2674 = vld [vmem:[%s3 + $0x1d0] sm:$0xff]
    %v2675 = vld [vmem:[%s3 + $0x1d8] sm:$0xff]
    %v2676 = vld [vmem:[%s3 + $0x1e0] sm:$0xff]
    %v2677 = vld [vmem:[%s3 + $0x1e8] sm:$0xff]
    %v2678 = vld [vmem:[%s3 + $0x1f0] sm:$0xff]
    %v2679 = vld [vmem:[%s3 + $0x1f8] sm:$0xff]
    %v2680 = vadd.f32 %v2616, %v2298
    %v2681 = vadd.f32 %v2617, %v2303
    %v2682 = vadd.f32 %v2618, %v2308
    %v2683 = vadd.f32 %v2619, %v2313
    %v2684 = vadd.f32 %v2620, %v2318
    %v2685 = vadd.f32 %v2621, %v2323
    %v2686 = vadd.f32 %v2622, %v2328
    %v2687 = vadd.f32 %v2623, %v2333
    %v2688 = vadd.f32 %v2624, %v2338
    %v2689 = vadd.f32 %v2625, %v2343
    %v2690 = vadd.f32 %v2626, %v2348
    %v2691 = vadd.f32 %v2627, %v2353
    %v2692 = vadd.f32 %v2628, %v2358
    %v2693 = vadd.f32 %v2629, %v2363
    %v2694 = vadd.f32 %v2630, %v2368
    %v2695 = vadd.f32 %v2631, %v2373
    %v2696 = vadd.f32 %v2632, %v2378
    %v2697 = vadd.f32 %v2633, %v2383
    %v2698 = vadd.f32 %v2634, %v2388
    %v2699 = vadd.f32 %v2635, %v2393
    %v2700 = vadd.f32 %v2636, %v2398
    %v2701 = vadd.f32 %v2637, %v2403
    %v2702 = vadd.f32 %v2638, %v2408
    %v2703 = vadd.f32 %v2639, %v2413
    %v2704 = vadd.f32 %v2640, %v2418
    %v2705 = vadd.f32 %v2641, %v2423
    %v2706 = vadd.f32 %v2642, %v2428
    %v2707 = vadd.f32 %v2643, %v2433
    %v2708 = vadd.f32 %v2644, %v2438
    %v2709 = vadd.f32 %v2645, %v2443
    %v2710 = vadd.f32 %v2646, %v2448
    %v2711 = vadd.f32 %v2647, %v2453
    %v2712 = vadd.f32 %v2648, %v2458
    %v2713 = vadd.f32 %v2649, %v2463
    %v2714 = vadd.f32 %v2650, %v2468
    %v2715 = vadd.f32 %v2651, %v2473
    %v2716 = vadd.f32 %v2652, %v2478
    %v2717 = vadd.f32 %v2653, %v2483
    %v2718 = vadd.f32 %v2654, %v2488
    %v2719 = vadd.f32 %v2655, %v2493
    %v2720 = vadd.f32 %v2656, %v2498
    %v2721 = vadd.f32 %v2657, %v2503
    %v2722 = vadd.f32 %v2658, %v2508
    %v2723 = vadd.f32 %v2659, %v2513
    %v2724 = vadd.f32 %v2660, %v2518
    %v2725 = vadd.f32 %v2661, %v2523
    %v2726 = vadd.f32 %v2662, %v2528
    %v2727 = vadd.f32 %v2663, %v2533
    %v2728 = vadd.f32 %v2664, %v2538
    %v2729 = vadd.f32 %v2665, %v2543
    %v2730 = vadd.f32 %v2666, %v2548
    %v2731 = vadd.f32 %v2667, %v2553
    %v2732 = vadd.f32 %v2668, %v2558
    %v2733 = vadd.f32 %v2669, %v2563
    %v2734 = vadd.f32 %v2670, %v2568
    %v2735 = vadd.f32 %v2671, %v2573
    %v2736 = vadd.f32 %v2672, %v2578
    %v2737 = vadd.f32 %v2673, %v2583
    %v2738 = vadd.f32 %v2674, %v2588
    %v2739 = vadd.f32 %v2675, %v2593
    %v2740 = vadd.f32 %v2676, %v2598
    %v2741 = vadd.f32 %v2677, %v2603
    %v2742 = vadd.f32 %v2678, %v2608
    %v2743 = vadd.f32 %v2679, %v2613
    %vm2744 = vcmask 7168
    %2745 = vst.msk [vmem:[%s3] sm:$0xff] %vm2744, %v2680
    %2746 = vst.msk [vmem:[%s3 + $0x8] sm:$0xff] %vm2744, %v2681
    %2747 = vst.msk [vmem:[%s3 + $0x10] sm:$0xff] %vm2744, %v2682
    %2748 = vst.msk [vmem:[%s3 + $0x18] sm:$0xff] %vm2744, %v2683
    %2749 = vst.msk [vmem:[%s3 + $0x20] sm:$0xff] %vm2744, %v2684
    %2750 = vst.msk [vmem:[%s3 + $0x28] sm:$0xff] %vm2744, %v2685
    %2751 = vst.msk [vmem:[%s3 + $0x30] sm:$0xff] %vm2744, %v2686
    %2752 = vst.msk [vmem:[%s3 + $0x38] sm:$0xff] %vm2744, %v2687
    %2753 = vst.msk [vmem:[%s3 + $0x40] sm:$0xff] %vm2744, %v2688
    %2754 = vst.msk [vmem:[%s3 + $0x48] sm:$0xff] %vm2744, %v2689
    %2755 = vst.msk [vmem:[%s3 + $0x50] sm:$0xff] %vm2744, %v2690
    %2756 = vst.msk [vmem:[%s3 + $0x58] sm:$0xff] %vm2744, %v2691
    %2757 = vst.msk [vmem:[%s3 + $0x60] sm:$0xff] %vm2744, %v2692
    %2758 = vst.msk [vmem:[%s3 + $0x68] sm:$0xff] %vm2744, %v2693
    %2759 = vst.msk [vmem:[%s3 + $0x70] sm:$0xff] %vm2744, %v2694
    %2760 = vst.msk [vmem:[%s3 + $0x78] sm:$0xff] %vm2744, %v2695
    %2761 = vst.msk [vmem:[%s3 + $0x80] sm:$0xff] %vm2744, %v2696
    %2762 = vst.msk [vmem:[%s3 + $0x88] sm:$0xff] %vm2744, %v2697
    %2763 = vst.msk [vmem:[%s3 + $0x90] sm:$0xff] %vm2744, %v2698
    %2764 = vst.msk [vmem:[%s3 + $0x98] sm:$0xff] %vm2744, %v2699
    %2765 = vst.msk [vmem:[%s3 + $0xa0] sm:$0xff] %vm2744, %v2700
    %2766 = vst.msk [vmem:[%s3 + $0xa8] sm:$0xff] %vm2744, %v2701
    %2767 = vst.msk [vmem:[%s3 + $0xb0] sm:$0xff] %vm2744, %v2702
    %2768 = vst.msk [vmem:[%s3 + $0xb8] sm:$0xff] %vm2744, %v2703
    %2769 = vst.msk [vmem:[%s3 + $0xc0] sm:$0xff] %vm2744, %v2704
    %2770 = vst.msk [vmem:[%s3 + $0xc8] sm:$0xff] %vm2744, %v2705
    %2771 = vst.msk [vmem:[%s3 + $0xd0] sm:$0xff] %vm2744, %v2706
    %2772 = vst.msk [vmem:[%s3 + $0xd8] sm:$0xff] %vm2744, %v2707
    %2773 = vst.msk [vmem:[%s3 + $0xe0] sm:$0xff] %vm2744, %v2708
    %2774 = vst.msk [vmem:[%s3 + $0xe8] sm:$0xff] %vm2744, %v2709
    %2775 = vst.msk [vmem:[%s3 + $0xf0] sm:$0xff] %vm2744, %v2710
    %2776 = vst.msk [vmem:[%s3 + $0xf8] sm:$0xff] %vm2744, %v2711
    %2777 = vst.msk [vmem:[%s3 + $0x100] sm:$0xff] %vm2744, %v2712
    %2778 = vst.msk [vmem:[%s3 + $0x108] sm:$0xff] %vm2744, %v2713
    %2779 = vst.msk [vmem:[%s3 + $0x110] sm:$0xff] %vm2744, %v2714
    %2780 = vst.msk [vmem:[%s3 + $0x118] sm:$0xff] %vm2744, %v2715
    %2781 = vst.msk [vmem:[%s3 + $0x120] sm:$0xff] %vm2744, %v2716
    %2782 = vst.msk [vmem:[%s3 + $0x128] sm:$0xff] %vm2744, %v2717
    %2783 = vst.msk [vmem:[%s3 + $0x130] sm:$0xff] %vm2744, %v2718
    %2784 = vst.msk [vmem:[%s3 + $0x138] sm:$0xff] %vm2744, %v2719
    %2785 = vst.msk [vmem:[%s3 + $0x140] sm:$0xff] %vm2744, %v2720
    %2786 = vst.msk [vmem:[%s3 + $0x148] sm:$0xff] %vm2744, %v2721
    %2787 = vst.msk [vmem:[%s3 + $0x150] sm:$0xff] %vm2744, %v2722
    %2788 = vst.msk [vmem:[%s3 + $0x158] sm:$0xff] %vm2744, %v2723
    %2789 = vst.msk [vmem:[%s3 + $0x160] sm:$0xff] %vm2744, %v2724
    %2790 = vst.msk [vmem:[%s3 + $0x168] sm:$0xff] %vm2744, %v2725
    %2791 = vst.msk [vmem:[%s3 + $0x170] sm:$0xff] %vm2744, %v2726
    %2792 = vst.msk [vmem:[%s3 + $0x178] sm:$0xff] %vm2744, %v2727
    %2793 = vst.msk [vmem:[%s3 + $0x180] sm:$0xff] %vm2744, %v2728
    %2794 = vst.msk [vmem:[%s3 + $0x188] sm:$0xff] %vm2744, %v2729
    %2795 = vst.msk [vmem:[%s3 + $0x190] sm:$0xff] %vm2744, %v2730
    %2796 = vst.msk [vmem:[%s3 + $0x198] sm:$0xff] %vm2744, %v2731
    %2797 = vst.msk [vmem:[%s3 + $0x1a0] sm:$0xff] %vm2744, %v2732
    %2798 = vst.msk [vmem:[%s3 + $0x1a8] sm:$0xff] %vm2744, %v2733
    %2799 = vst.msk [vmem:[%s3 + $0x1b0] sm:$0xff] %vm2744, %v2734
    %2800 = vst.msk [vmem:[%s3 + $0x1b8] sm:$0xff] %vm2744, %v2735
    %2801 = vst.msk [vmem:[%s3 + $0x1c0] sm:$0xff] %vm2744, %v2736
    %2802 = vst.msk [vmem:[%s3 + $0x1c8] sm:$0xff] %vm2744, %v2737
    %2803 = vst.msk [vmem:[%s3 + $0x1d0] sm:$0xff] %vm2744, %v2738
    %2804 = vst.msk [vmem:[%s3 + $0x1d8] sm:$0xff] %vm2744, %v2739
    %2805 = vst.msk [vmem:[%s3 + $0x1e0] sm:$0xff] %vm2744, %v2740
    %2806 = vst.msk [vmem:[%s3 + $0x1e8] sm:$0xff] %vm2744, %v2741
    %2807 = vst.msk [vmem:[%s3 + $0x1f0] sm:$0xff] %vm2744, %v2742
    %2808 = vst.msk [vmem:[%s3 + $0x1f8] sm:$0xff] %vm2744, %v2743
    // Predicated region
    $region26: #{tpu_custom_call.1} parent=1 // pred_check
      _
    $region27: #{tpu_custom_call.1} parent=1 // pred_check_branch
      %2810 = sbr.rel (0) target = $region29
    $region28: #{tpu_custom_call.1} parent=1 // pred_region
      _
    $region29: #{tpu_custom_call.1} parent=1 // pred_fallthru
      _
    // Predicated region
    $region30: #{tpu_custom_call.1} parent=1 // pred_check
      _
    $region31: #{tpu_custom_call.1} parent=1 // pred_check_branch
      %2812 = sbr.rel (0) target = $region33
    $region32: #{tpu_custom_call.1} parent=1 // pred_region
      %s2814 = ssub.s32 16, 16
      %2815 = vsyncadd [#allocation4], %s2814
      %s2817 = sshll.u32 [#allocation7], 4
      %s2818 = int_to_ptr.vmem [resolvable:$true] %s2817
      %2820 = dma.vmem_to_hbm [thread:$0]  %s2818, 16, %s4, [#allocation4]
    $region33: #{tpu_custom_call.1} parent=1 // pred_fallthru
      _
    // Predicated region
    $region34: #{tpu_custom_call.1} parent=1 // pred_check
      _
    $region35: #{tpu_custom_call.1} parent=1 // pred_check_branch
      %2822 = sbr.rel (0) target = $region37
    $region36: #{tpu_custom_call.1} parent=1 // pred_region
      _
    $region37: #{tpu_custom_call.1} parent=1 // pred_fallthru
      _
    // Predicated region
    $region38: #{tpu_custom_call.1} parent=1 // pred_check
      _
    $region39: #{tpu_custom_call.1} parent=1 // pred_check_branch
      %2824 = sbr.rel (0) target = $region41
    $region40: #{tpu_custom_call.1} parent=1 // pred_region
      %2825 = dma.done [#allocation4], 16
    $region41: #{tpu_custom_call.1} parent=1 // pred_fallthru
      _
    %2826 = vsyncpa [#allocation3], 1
    %2827 = vsyncpa [#allocation6], 1
    %2828 = vsyncpa [#allocation4], 1

</llo_original>
